<compile_context>
chip_gen: v7x
topology: tpu7x:2x2x1
jax: 0.10.0
libtpu: 0.0.40
codegen_flags: <defaults>
</compile_context>

<pallas_src>
import jax
import jax.numpy as jnp
import numpy as np
from jax import lax
from jax.experimental import pallas as pl
from jax.experimental.pallas import tpu as pltpu

C0 = 16   # conv0 output channels
C1 = 8    # conv1 output channels (similarity input channels)
EPS = 1e-5


def _round_up(n, m):
    return (n + m - 1) // m * m


# ----------------------------------------------------------------------------
# Kernel 1: fused 1x1x1 conv stack (G -> 16 -> 8 -> 1), BN folded, ReLU.
# Channel-major, lane-dense: voxels on the lane axis, weights in SMEM,
# compute as scalar-broadcast FMAs on the VPU over (8, 128) vreg chunks.
# ----------------------------------------------------------------------------
def mlp_kernel(x_ref, w0_ref, b0_ref, w1_ref, b1_ref, w2b_ref, o_ref):
    # x_ref : (1, G, TS, 128) VMEM   (voxels on sublane x lane)
    # w0_ref: (G, 16)  SMEM          (BN0 folded in)
    # b0_ref: (16,)    SMEM
    # w1_ref: (16, 8)  SMEM          (BN1 folded in)
    # b1_ref: (8,)     SMEM
    # w2b_ref: (9,)    SMEM          (similarity weight[0:8], bias at [8])
    # o_ref : (1, TS, 128) VMEM      (lane-dense score output)
    g_dim = x_ref.shape[1]
    ts = x_ref.shape[2]
    ch = 8                       # chunk height: one full f32 vreg per channel
    n_chunks = ts // ch

    # Hoist the tiny SMEM weights into scalars once per block (outside loop).
    w0 = [[w0_ref[g, c] for c in range(C0)] for g in range(g_dim)]
    b0 = [b0_ref[c] for c in range(C0)]
    w1 = [[w1_ref[j, c] for c in range(C1)] for j in range(C0)]
    b1 = [b1_ref[c] for c in range(C1)]
    w2 = [w2b_ref[j] for j in range(C1)]
    b2 = w2b_ref[C1]

    def chunk(i, carry):
        s = pl.multiple_of(i * ch, ch)
        xs = x_ref[0, :, pl.ds(s, ch), :]                 # (G, 8, 128) f32

        # layer 0: G -> 16, folded BN, ReLU
        h0 = []
        for c in range(C0):
            acc = w0[0][c] * xs[0]
            for g in range(1, g_dim):
                acc = acc + w0[g][c] * xs[g]
            h0.append(jnp.maximum(acc + b0[c], 0.0))

        # layer 1: 16 -> 8, folded BN, ReLU
        h1 = []
        for c in range(C1):
            acc = w1[0][c] * h0[0]
            for j in range(1, C0):
                acc = acc + w1[j][c] * h0[j]
            h1.append(jnp.maximum(acc + b1[c], 0.0))

        # similarity: 8 -> 1 with bias
        out = w2[0] * h1[0]
        for j in range(1, C1):
            out = out + w2[j] * h1[j]
        o_ref[0, pl.ds(s, ch), :] = (out + b2).astype(o_ref.dtype)
        return carry

    lax.fori_loop(0, n_chunks, chunk, 0, unroll=2)


def _pick_ts(r, ts_max, batch):
    """Tile height in rows-of-128 voxels.

    Multiple of 8, as large as possible (amortize per-grid-step overhead),
    preferring an exact divisor of `r` (skips the wrapper pad copy), and kept
    small enough that the parallel grid has >= 2 steps (v7x has 2 TCs).
    """
    cap = max(8, min(ts_max, _round_up(r, 8)) // 8 * 8)
    ts = 0
    for cand in range(cap, 0, -8):
        if r % cand == 0:
            ts = cand
            break
    if ts == 0 or ts * 4 < cap:        # only tiny exact divisors -> pad instead
        ts = cap
    while batch * (-(-r // ts)) < 2 and ts > 8:
        ts = _round_up(ts // 2, 8)
    return ts


def mlp_pallas(x1, params, ts_max=512):
    """Per-voxel MLP (all convs are 1x1x1) -> score volume (B, D, H, W)."""
    b, g, d, h, w = x1.shape
    dhw = d * h * w

    x_flat = x1.reshape(b, g, dhw).astype(jnp.float32)

    # Pad the voxel count to a multiple of 128 lanes only when needed (rare).
    r = -(-dhw // 128)
    if r * 128 != dhw:
        # TODO(synk): a pl.when-masked ragged tail inside the kernel would
        #             avoid this full extra HBM copy when it fires.
        x_flat = jnp.pad(x_flat, ((0, 0), (0, 0), (0, r * 128 - dhw)))
    x4 = x_flat.reshape(b, g, r, 128)

    ts = _pick_ts(r, ts_max, b)
    n_tiles = -(-r // ts)
    r_pad = n_tiles * ts
    if r_pad != r:
        # Padded tail voxels compute garbage scores that are sliced off below;
        # nothing in the kernel reduces over the voxel axis.
        x4 = jnp.pad(x4, ((0, 0), (0, 0), (0, r_pad - r), (0, 0)))

    smem_spec = pl.BlockSpec(memory_space=pltpu.MemorySpace.SMEM)
    out4 = pl.pallas_call(
        mlp_kernel,
        out_shape=jax.ShapeDtypeStruct((b, r_pad, 128), jnp.float32),
        grid_spec=pltpu.PrefetchScalarGridSpec(
            num_scalar_prefetch=0,
            grid=(b, n_tiles),
            in_specs=[
                pl.BlockSpec((1, g, ts, 128), lambda i, j: (i, 0, j, 0)),
                smem_spec,   # w0 folded
                smem_spec,   # b0 folded
                smem_spec,   # w1 folded
                smem_spec,   # b1 folded
                smem_spec,   # similarity weight + bias
            ],
            out_specs=pl.BlockSpec((1, ts, 128), lambda i, j: (i, j, 0)),
        ),
        compiler_params=pltpu.CompilerParams(
            dimension_semantics=("parallel", "parallel"),
            vmem_limit_bytes=32 * 1024 * 1024,
        ),
    )(x4, params["w0f"], params["b0f"], params["w1f"], params["b1f"],
      params["w2b"])

    return out4.reshape(b, r_pad * 128)[:, :dhw].reshape(b, d, h, w)


# ----------------------------------------------------------------------------
# grid_sample (bilinear, border, align_corners=False) fused with the
# per-neighbor weighting and sum over neighbors.  The 4 corner gathers per
# neighbor are batched into one stacked-index gather (9 gathers total) and the
# (B, D, neighbors, H, W) sampled tensor is never materialized in HBM.
# TODO(synk): the data-dependent per-pixel bilinear gather has no clean Pallas
#             TPU lowering at tiny D (per-lane dynamic gather); at production
#             sizes (D >= 64) the right move is a Pallas row-gather kernel
#             over a (H*W, Dpad) lane-dense score layout with scalar-prefetched
#             indices — this XLA path is the remaining end-to-end bottleneck.
# ----------------------------------------------------------------------------
def fused_grid_sample_wsum(score, grid, weight, neighbors):
    b, d, h, w = score.shape
    gx = grid[..., 0].reshape(b, neighbors, h, w)
    gy = grid[..., 1].reshape(b, neighbors, h, w)

    # unnormalize (align_corners=False) + border padding (clip coordinates)
    ix = jnp.clip(((gx + 1.0) * w - 1.0) * 0.5, 0.0, w - 1.0)
    iy = jnp.clip(((gy + 1.0) * h - 1.0) * 0.5, 0.0, h - 1.0)
    ix0f = jnp.floor(ix)
    iy0f = jnp.floor(iy)
    wx = ix - ix0f
    wy = iy - iy0f
    ix0 = ix0f.astype(jnp.int32)
    iy0 = iy0f.astype(jnp.int32)
    ix1 = jnp.minimum(ix0 + 1, w - 1)
    iy1 = jnp.minimum(iy0 + 1, h - 1)

    wgt = weight[:, 0]                                    # (B, nb, H, W)
    # bilinear coefficients fused with the neighbor weights: (B, nb, 4, H, W)
    coef = jnp.stack([(1.0 - wx) * (1.0 - wy),
                      wx * (1.0 - wy),
                      (1.0 - wx) * wy,
                      wx * wy], axis=2) * wgt[:, :, None]
    # flattened corner indices: (B, nb, 4, H, W)
    idx = jnp.stack([iy0 * w + ix0,
                     iy0 * w + ix1,
                     iy1 * w + ix0,
                     iy1 * w + ix1], axis=2)

    flat = score.reshape(b, d, h * w)

    def gather4(f, i):                                    # f:(D,HW)  i:(4,H,W)
        return f[:, i]                                    # -> (D, 4, H, W)

    out = jnp.zeros((b, d, h, w), jnp.float32)
    for n in range(neighbors):
        g4 = jax.vmap(gather4)(flat, idx[:, n])           # (B, D, 4, H, W)
        out = out + (g4 * coef[:, n][:, None]).sum(axis=2)
    return out


# ----------------------------------------------------------------------------
# SimilarityNet forward
# ----------------------------------------------------------------------------
def similarity_net_forward(x1, grid, weight, params, neighbors=9):
    score = mlp_pallas(x1, params)                        # (B, D, H, W)
    return fused_grid_sample_wsum(score, grid, weight, neighbors)


# ----------------------------------------------------------------------------
# Pure-JAX reference: un-folded BN, un-fused grid_sample + weighted sum.
# (A torch-generated golden check is not possible in this sandbox; the
#  border / align_corners=False formulas follow torch's grid_sampler.)
# ----------------------------------------------------------------------------
def grid_sample_bilinear_border_ref(img, grid):
    b, c, h, w = img.shape
    gx = grid[..., 0]
    gy = grid[..., 1]
    ix = jnp.clip(((gx + 1.0) * w - 1.0) * 0.5, 0.0, w - 1.0)
    iy = jnp.clip(((gy + 1.0) * h - 1.0) * 0.5, 0.0, h - 1.0)
    ix0f = jnp.floor(ix)
    iy0f = jnp.floor(iy)
    wx = ix - ix0f
    wy = iy - iy0f
    ix0 = ix0f.astype(jnp.int32)
    iy0 = iy0f.astype(jnp.int32)
    ix1 = jnp.minimum(ix0 + 1, w - 1)
    iy1 = jnp.minimum(iy0 + 1, h - 1)
    flat = img.reshape(b, c, h * w)

    def gather(iy_, ix_):
        idx = iy_ * w + ix_
        return jax.vmap(lambda f, i: f[:, i])(flat, idx)

    v00 = gather(iy0, ix0)
    v01 = gather(iy0, ix1)
    v10 = gather(iy1, ix0)
    v11 = gather(iy1, ix1)
    wx = wx[:, None]
    wy = wy[:, None]
    return (v00 * (1 - wx) * (1 - wy) + v01 * wx * (1 - wy)
            + v10 * (1 - wx) * wy + v11 * wx * wy)


def ref_forward(x1, grid, weight, raw, neighbors=9):
    b, g, d, h, w = x1.shape
    x = jnp.transpose(x1, (0, 2, 3, 4, 1))                     # (B,D,H,W,G)
    y0 = jnp.einsum("bdhwg,cg->bdhwc", x, raw["conv0_w"])
    h0 = jnp.maximum((y0 - raw["bn0_mean"]) / jnp.sqrt(raw["bn0_var"] + EPS)
                     * raw["bn0_gamma"] + raw["bn0_beta"], 0.0)
    y1 = jnp.einsum("bdhwc,kc->bdhwk", h0, raw["conv1_w"])
    h1 = jnp.maximum((y1 - raw["bn1_mean"]) / jnp.sqrt(raw["bn1_var"] + EPS)
                     * raw["bn1_gamma"] + raw["bn1_beta"], 0.0)
    s = jnp.einsum("bdhwk,k->bdhw", h1, raw["sim_w"]) + raw["sim_b"]
    samp = grid_sample_bilinear_border_ref(s, grid)            # (B,D,nb*H,W)
    samp = samp.reshape(b, d, neighbors, h, w)
    return jnp.sum(samp * weight, axis=2)


# ----------------------------------------------------------------------------
# Parameters: raw (torch-like) + BN folding for the kernel.
# ----------------------------------------------------------------------------
def init_params(key, g):
    ks = jax.random.split(key, 12)
    return dict(
        conv0_w=0.3 * jax.random.normal(ks[0], (C0, g), jnp.float32),
        bn0_gamma=1.0 + 0.1 * jax.random.normal(ks[1], (C0,), jnp.float32),
        bn0_beta=0.1 * jax.random.normal(ks[2], (C0,), jnp.float32),
        bn0_mean=0.1 * jax.random.normal(ks[3], (C0,), jnp.float32),
        bn0_var=0.5 + 0.2 * jnp.abs(jax.random.normal(ks[4], (C0,), jnp.float32)),
        conv1_w=0.3 * jax.random.normal(ks[5], (C1, C0), jnp.float32),
        bn1_gamma=1.0 + 0.1 * jax.random.normal(ks[6], (C1,), jnp.float32),
        bn1_beta=0.1 * jax.random.normal(ks[7], (C1,), jnp.float32),
        bn1_mean=0.1 * jax.random.normal(ks[8], (C1,), jnp.float32),
        bn1_var=0.5 + 0.2 * jnp.abs(jax.random.normal(ks[9], (C1,), jnp.float32)),
        sim_w=0.3 * jax.random.normal(ks[10], (C1,), jnp.float32),
        sim_b=0.1 * jax.random.normal(ks[11], (), jnp.float32),
    )


def fold_params(raw):
    """Fold eval-mode BatchNorm into the 1x1x1 conv weights (kernel operands)."""
    s0 = raw["bn0_gamma"] / jnp.sqrt(raw["bn0_var"] + EPS)        # (16,)
    w0f = raw["conv0_w"].T * s0[None, :]                          # (G, 16)
    b0f = raw["bn0_beta"] - raw["bn0_mean"] * s0                  # (16,)
    s1 = raw["bn1_gamma"] / jnp.sqrt(raw["bn1_var"] + EPS)        # (8,)
    w1f = raw["conv1_w"].T * s1[None, :]                          # (16, 8)
    b1f = raw["bn1_beta"] - raw["bn1_mean"] * s1                  # (8,)
    w2b = jnp.concatenate([raw["sim_w"], raw["sim_b"][None]])     # (9,)
    return dict(w0f=w0f, b0f=b0f, w1f=w1f, b1f=b1f, w2b=w2b)


if __name__ == "__main__":
    B, G, D, H, W = 2, 4, 8, 16, 16
    NEIGHBORS = 9

    key = jax.random.PRNGKey(0)
    k_x, k_g, k_w, k_p = jax.random.split(key, 4)

    x1 = jax.random.normal(k_x, (B, G, D, H, W), jnp.float32)
    # sampling grid, slightly outside [-1, 1] to exercise border padding
    grid = 1.2 * jax.random.uniform(k_g, (B, NEIGHBORS * H, W, 2),
                                    jnp.float32, minval=-1.0, maxval=1.0)
    weight = jax.random.uniform(k_w, (B, 1, NEIGHBORS, H, W), jnp.float32)

    raw = init_params(k_p, G)
    params = fold_params(raw)

    fwd = jax.jit(lambda x, gr, wt: similarity_net_forward(x, gr, wt, params,
                                                           NEIGHBORS))
    out = jax.block_until_ready(fwd(x1, grid, weight))

    ref = jax.block_until_ready(ref_forward(x1, grid, weight, raw, NEIGHBORS))
    np.testing.assert_allclose(np.asarray(out), np.asarray(ref),
                               rtol=1e-4, atol=1e-4)
    assert out.shape == (B, D, H, W)
    print("KERNEL_OK")
</pallas_src>

<mosaic_0001>
module attributes {stable_mosaic.version = 11 : i64} {
  func.func @mlp_kernel(%arg0: i32, %arg1: i32, %arg2: memref<1x4x16x128xf32, #tpu.memory_space<vmem>>, %arg3: memref<4x16xf32, #tpu.memory_space<smem>>, %arg4: memref<16xf32, #tpu.memory_space<smem>>, %arg5: memref<16x8xf32, #tpu.memory_space<smem>>, %arg6: memref<8xf32, #tpu.memory_space<smem>>, %arg7: memref<9xf32, #tpu.memory_space<smem>>, %arg8: memref<1x16x128xf32, #tpu.memory_space<vmem>>) attributes {dimension_semantics = [#tpu.dimension_semantics<parallel>, #tpu.dimension_semantics<parallel>], iteration_bounds = array<i64: 2, 1>, scalar_prefetch = 0 : i64, scratch_operands = 0 : i64, tpu.core_type = #tpu.core_type<tc>, window_params = [{transform_indices = @transform_0, window_bounds = array<i64: 1, 4, 16, 128>}, {transform_indices = @transform_1, window_bounds = array<i64: 4, 16>}, {transform_indices = @transform_2, window_bounds = array<i64: 16>}, {transform_indices = @transform_3, window_bounds = array<i64: 16, 8>}, {transform_indices = @transform_4, window_bounds = array<i64: 8>}, {transform_indices = @transform_5, window_bounds = array<i64: 9>}, {transform_indices = @transform_6, window_bounds = array<i64: 1, 16, 128>}]} {
    %c0 = arith.constant 0 : index
    %c0_0 = arith.constant 0 : index
    %0 = memref.load %arg3[%c0, %c0_0] : memref<4x16xf32, #tpu.memory_space<smem>>
    %c0_1 = arith.constant 0 : index
    %c1 = arith.constant 1 : index
    %1 = memref.load %arg3[%c0_1, %c1] : memref<4x16xf32, #tpu.memory_space<smem>>
    %c0_2 = arith.constant 0 : index
    %c2 = arith.constant 2 : index
    %2 = memref.load %arg3[%c0_2, %c2] : memref<4x16xf32, #tpu.memory_space<smem>>
    %c0_3 = arith.constant 0 : index
    %c3 = arith.constant 3 : index
    %3 = memref.load %arg3[%c0_3, %c3] : memref<4x16xf32, #tpu.memory_space<smem>>
    %c0_4 = arith.constant 0 : index
    %c4 = arith.constant 4 : index
    %4 = memref.load %arg3[%c0_4, %c4] : memref<4x16xf32, #tpu.memory_space<smem>>
    %c0_5 = arith.constant 0 : index
    %c5 = arith.constant 5 : index
    %5 = memref.load %arg3[%c0_5, %c5] : memref<4x16xf32, #tpu.memory_space<smem>>
    %c0_6 = arith.constant 0 : index
    %c6 = arith.constant 6 : index
    %6 = memref.load %arg3[%c0_6, %c6] : memref<4x16xf32, #tpu.memory_space<smem>>
    %c0_7 = arith.constant 0 : index
    %c7 = arith.constant 7 : index
    %7 = memref.load %arg3[%c0_7, %c7] : memref<4x16xf32, #tpu.memory_space<smem>>
    %c0_8 = arith.constant 0 : index
    %c8 = arith.constant 8 : index
    %8 = memref.load %arg3[%c0_8, %c8] : memref<4x16xf32, #tpu.memory_space<smem>>
    %c0_9 = arith.constant 0 : index
    %c9 = arith.constant 9 : index
    %9 = memref.load %arg3[%c0_9, %c9] : memref<4x16xf32, #tpu.memory_space<smem>>
    %c0_10 = arith.constant 0 : index
    %c10 = arith.constant 10 : index
    %10 = memref.load %arg3[%c0_10, %c10] : memref<4x16xf32, #tpu.memory_space<smem>>
    %c0_11 = arith.constant 0 : index
    %c11 = arith.constant 11 : index
    %11 = memref.load %arg3[%c0_11, %c11] : memref<4x16xf32, #tpu.memory_space<smem>>
    %c0_12 = arith.constant 0 : index
    %c12 = arith.constant 12 : index
    %12 = memref.load %arg3[%c0_12, %c12] : memref<4x16xf32, #tpu.memory_space<smem>>
    %c0_13 = arith.constant 0 : index
    %c13 = arith.constant 13 : index
    %13 = memref.load %arg3[%c0_13, %c13] : memref<4x16xf32, #tpu.memory_space<smem>>
    %c0_14 = arith.constant 0 : index
    %c14 = arith.constant 14 : index
    %14 = memref.load %arg3[%c0_14, %c14] : memref<4x16xf32, #tpu.memory_space<smem>>
    %c0_15 = arith.constant 0 : index
    %c15 = arith.constant 15 : index
    %15 = memref.load %arg3[%c0_15, %c15] : memref<4x16xf32, #tpu.memory_space<smem>>
    %c1_16 = arith.constant 1 : index
    %c0_17 = arith.constant 0 : index
    %16 = memref.load %arg3[%c1_16, %c0_17] : memref<4x16xf32, #tpu.memory_space<smem>>
    %c1_18 = arith.constant 1 : index
    %c1_19 = arith.constant 1 : index
    %17 = memref.load %arg3[%c1_18, %c1_19] : memref<4x16xf32, #tpu.memory_space<smem>>
    %c1_20 = arith.constant 1 : index
    %c2_21 = arith.constant 2 : index
    %18 = memref.load %arg3[%c1_20, %c2_21] : memref<4x16xf32, #tpu.memory_space<smem>>
    %c1_22 = arith.constant 1 : index
    %c3_23 = arith.constant 3 : index
    %19 = memref.load %arg3[%c1_22, %c3_23] : memref<4x16xf32, #tpu.memory_space<smem>>
    %c1_24 = arith.constant 1 : index
    %c4_25 = arith.constant 4 : index
    %20 = memref.load %arg3[%c1_24, %c4_25] : memref<4x16xf32, #tpu.memory_space<smem>>
    %c1_26 = arith.constant 1 : index
    %c5_27 = arith.constant 5 : index
    %21 = memref.load %arg3[%c1_26, %c5_27] : memref<4x16xf32, #tpu.memory_space<smem>>
    %c1_28 = arith.constant 1 : index
    %c6_29 = arith.constant 6 : index
    %22 = memref.load %arg3[%c1_28, %c6_29] : memref<4x16xf32, #tpu.memory_space<smem>>
    %c1_30 = arith.constant 1 : index
    %c7_31 = arith.constant 7 : index
    %23 = memref.load %arg3[%c1_30, %c7_31] : memref<4x16xf32, #tpu.memory_space<smem>>
    %c1_32 = arith.constant 1 : index
    %c8_33 = arith.constant 8 : index
    %24 = memref.load %arg3[%c1_32, %c8_33] : memref<4x16xf32, #tpu.memory_space<smem>>
    %c1_34 = arith.constant 1 : index
    %c9_35 = arith.constant 9 : index
    %25 = memref.load %arg3[%c1_34, %c9_35] : memref<4x16xf32, #tpu.memory_space<smem>>
    %c1_36 = arith.constant 1 : index
    %c10_37 = arith.constant 10 : index
    %26 = memref.load %arg3[%c1_36, %c10_37] : memref<4x16xf32, #tpu.memory_space<smem>>
    %c1_38 = arith.constant 1 : index
    %c11_39 = arith.constant 11 : index
    %27 = memref.load %arg3[%c1_38, %c11_39] : memref<4x16xf32, #tpu.memory_space<smem>>
    %c1_40 = arith.constant 1 : index
    %c12_41 = arith.constant 12 : index
    %28 = memref.load %arg3[%c1_40, %c12_41] : memref<4x16xf32, #tpu.memory_space<smem>>
    %c1_42 = arith.constant 1 : index
    %c13_43 = arith.constant 13 : index
    %29 = memref.load %arg3[%c1_42, %c13_43] : memref<4x16xf32, #tpu.memory_space<smem>>
    %c1_44 = arith.constant 1 : index
    %c14_45 = arith.constant 14 : index
    %30 = memref.load %arg3[%c1_44, %c14_45] : memref<4x16xf32, #tpu.memory_space<smem>>
    %c1_46 = arith.constant 1 : index
    %c15_47 = arith.constant 15 : index
    %31 = memref.load %arg3[%c1_46, %c15_47] : memref<4x16xf32, #tpu.memory_space<smem>>
    %c2_48 = arith.constant 2 : index
    %c0_49 = arith.constant 0 : index
    %32 = memref.load %arg3[%c2_48, %c0_49] : memref<4x16xf32, #tpu.memory_space<smem>>
    %c2_50 = arith.constant 2 : index
    %c1_51 = arith.constant 1 : index
    %33 = memref.load %arg3[%c2_50, %c1_51] : memref<4x16xf32, #tpu.memory_space<smem>>
    %c2_52 = arith.constant 2 : index
    %c2_53 = arith.constant 2 : index
    %34 = memref.load %arg3[%c2_52, %c2_53] : memref<4x16xf32, #tpu.memory_space<smem>>
    %c2_54 = arith.constant 2 : index
    %c3_55 = arith.constant 3 : index
    %35 = memref.load %arg3[%c2_54, %c3_55] : memref<4x16xf32, #tpu.memory_space<smem>>
    %c2_56 = arith.constant 2 : index
    %c4_57 = arith.constant 4 : index
    %36 = memref.load %arg3[%c2_56, %c4_57] : memref<4x16xf32, #tpu.memory_space<smem>>
    %c2_58 = arith.constant 2 : index
    %c5_59 = arith.constant 5 : index
    %37 = memref.load %arg3[%c2_58, %c5_59] : memref<4x16xf32, #tpu.memory_space<smem>>
    %c2_60 = arith.constant 2 : index
    %c6_61 = arith.constant 6 : index
    %38 = memref.load %arg3[%c2_60, %c6_61] : memref<4x16xf32, #tpu.memory_space<smem>>
    %c2_62 = arith.constant 2 : index
    %c7_63 = arith.constant 7 : index
    %39 = memref.load %arg3[%c2_62, %c7_63] : memref<4x16xf32, #tpu.memory_space<smem>>
    %c2_64 = arith.constant 2 : index
    %c8_65 = arith.constant 8 : index
    %40 = memref.load %arg3[%c2_64, %c8_65] : memref<4x16xf32, #tpu.memory_space<smem>>
    %c2_66 = arith.constant 2 : index
    %c9_67 = arith.constant 9 : index
    %41 = memref.load %arg3[%c2_66, %c9_67] : memref<4x16xf32, #tpu.memory_space<smem>>
    %c2_68 = arith.constant 2 : index
    %c10_69 = arith.constant 10 : index
    %42 = memref.load %arg3[%c2_68, %c10_69] : memref<4x16xf32, #tpu.memory_space<smem>>
    %c2_70 = arith.constant 2 : index
    %c11_71 = arith.constant 11 : index
    %43 = memref.load %arg3[%c2_70, %c11_71] : memref<4x16xf32, #tpu.memory_space<smem>>
    %c2_72 = arith.constant 2 : index
    %c12_73 = arith.constant 12 : index
    %44 = memref.load %arg3[%c2_72, %c12_73] : memref<4x16xf32, #tpu.memory_space<smem>>
    %c2_74 = arith.constant 2 : index
    %c13_75 = arith.constant 13 : index
    %45 = memref.load %arg3[%c2_74, %c13_75] : memref<4x16xf32, #tpu.memory_space<smem>>
    %c2_76 = arith.constant 2 : index
    %c14_77 = arith.constant 14 : index
    %46 = memref.load %arg3[%c2_76, %c14_77] : memref<4x16xf32, #tpu.memory_space<smem>>
    %c2_78 = arith.constant 2 : index
    %c15_79 = arith.constant 15 : index
    %47 = memref.load %arg3[%c2_78, %c15_79] : memref<4x16xf32, #tpu.memory_space<smem>>
    %c3_80 = arith.constant 3 : index
    %c0_81 = arith.constant 0 : index
    %48 = memref.load %arg3[%c3_80, %c0_81] : memref<4x16xf32, #tpu.memory_space<smem>>
    %c3_82 = arith.constant 3 : index
    %c1_83 = arith.constant 1 : index
    %49 = memref.load %arg3[%c3_82, %c1_83] : memref<4x16xf32, #tpu.memory_space<smem>>
    %c3_84 = arith.constant 3 : index
    %c2_85 = arith.constant 2 : index
    %50 = memref.load %arg3[%c3_84, %c2_85] : memref<4x16xf32, #tpu.memory_space<smem>>
    %c3_86 = arith.constant 3 : index
    %c3_87 = arith.constant 3 : index
    %51 = memref.load %arg3[%c3_86, %c3_87] : memref<4x16xf32, #tpu.memory_space<smem>>
    %c3_88 = arith.constant 3 : index
    %c4_89 = arith.constant 4 : index
    %52 = memref.load %arg3[%c3_88, %c4_89] : memref<4x16xf32, #tpu.memory_space<smem>>
    %c3_90 = arith.constant 3 : index
    %c5_91 = arith.constant 5 : index
    %53 = memref.load %arg3[%c3_90, %c5_91] : memref<4x16xf32, #tpu.memory_space<smem>>
    %c3_92 = arith.constant 3 : index
    %c6_93 = arith.constant 6 : index
    %54 = memref.load %arg3[%c3_92, %c6_93] : memref<4x16xf32, #tpu.memory_space<smem>>
    %c3_94 = arith.constant 3 : index
    %c7_95 = arith.constant 7 : index
    %55 = memref.load %arg3[%c3_94, %c7_95] : memref<4x16xf32, #tpu.memory_space<smem>>
    %c3_96 = arith.constant 3 : index
    %c8_97 = arith.constant 8 : index
    %56 = memref.load %arg3[%c3_96, %c8_97] : memref<4x16xf32, #tpu.memory_space<smem>>
    %c3_98 = arith.constant 3 : index
    %c9_99 = arith.constant 9 : index
    %57 = memref.load %arg3[%c3_98, %c9_99] : memref<4x16xf32, #tpu.memory_space<smem>>
    %c3_100 = arith.constant 3 : index
    %c10_101 = arith.constant 10 : index
    %58 = memref.load %arg3[%c3_100, %c10_101] : memref<4x16xf32, #tpu.memory_space<smem>>
    %c3_102 = arith.constant 3 : index
    %c11_103 = arith.constant 11 : index
    %59 = memref.load %arg3[%c3_102, %c11_103] : memref<4x16xf32, #tpu.memory_space<smem>>
    %c3_104 = arith.constant 3 : index
    %c12_105 = arith.constant 12 : index
    %60 = memref.load %arg3[%c3_104, %c12_105] : memref<4x16xf32, #tpu.memory_space<smem>>
    %c3_106 = arith.constant 3 : index
    %c13_107 = arith.constant 13 : index
    %61 = memref.load %arg3[%c3_106, %c13_107] : memref<4x16xf32, #tpu.memory_space<smem>>
    %c3_108 = arith.constant 3 : index
    %c14_109 = arith.constant 14 : index
    %62 = memref.load %arg3[%c3_108, %c14_109] : memref<4x16xf32, #tpu.memory_space<smem>>
    %c3_110 = arith.constant 3 : index
    %c15_111 = arith.constant 15 : index
    %63 = memref.load %arg3[%c3_110, %c15_111] : memref<4x16xf32, #tpu.memory_space<smem>>
    %c0_112 = arith.constant 0 : index
    %64 = memref.load %arg4[%c0_112] : memref<16xf32, #tpu.memory_space<smem>>
    %c1_113 = arith.constant 1 : index
    %65 = memref.load %arg4[%c1_113] : memref<16xf32, #tpu.memory_space<smem>>
    %c2_114 = arith.constant 2 : index
    %66 = memref.load %arg4[%c2_114] : memref<16xf32, #tpu.memory_space<smem>>
    %c3_115 = arith.constant 3 : index
    %67 = memref.load %arg4[%c3_115] : memref<16xf32, #tpu.memory_space<smem>>
    %c4_116 = arith.constant 4 : index
    %68 = memref.load %arg4[%c4_116] : memref<16xf32, #tpu.memory_space<smem>>
    %c5_117 = arith.constant 5 : index
    %69 = memref.load %arg4[%c5_117] : memref<16xf32, #tpu.memory_space<smem>>
    %c6_118 = arith.constant 6 : index
    %70 = memref.load %arg4[%c6_118] : memref<16xf32, #tpu.memory_space<smem>>
    %c7_119 = arith.constant 7 : index
    %71 = memref.load %arg4[%c7_119] : memref<16xf32, #tpu.memory_space<smem>>
    %c8_120 = arith.constant 8 : index
    %72 = memref.load %arg4[%c8_120] : memref<16xf32, #tpu.memory_space<smem>>
    %c9_121 = arith.constant 9 : index
    %73 = memref.load %arg4[%c9_121] : memref<16xf32, #tpu.memory_space<smem>>
    %c10_122 = arith.constant 10 : index
    %74 = memref.load %arg4[%c10_122] : memref<16xf32, #tpu.memory_space<smem>>
    %c11_123 = arith.constant 11 : index
    %75 = memref.load %arg4[%c11_123] : memref<16xf32, #tpu.memory_space<smem>>
    %c12_124 = arith.constant 12 : index
    %76 = memref.load %arg4[%c12_124] : memref<16xf32, #tpu.memory_space<smem>>
    %c13_125 = arith.constant 13 : index
    %77 = memref.load %arg4[%c13_125] : memref<16xf32, #tpu.memory_space<smem>>
    %c14_126 = arith.constant 14 : index
    %78 = memref.load %arg4[%c14_126] : memref<16xf32, #tpu.memory_space<smem>>
    %c15_127 = arith.constant 15 : index
    %79 = memref.load %arg4[%c15_127] : memref<16xf32, #tpu.memory_space<smem>>
    %c0_128 = arith.constant 0 : index
    %c0_129 = arith.constant 0 : index
    %80 = memref.load %arg5[%c0_128, %c0_129] : memref<16x8xf32, #tpu.memory_space<smem>>
    %c0_130 = arith.constant 0 : index
    %c1_131 = arith.constant 1 : index
    %81 = memref.load %arg5[%c0_130, %c1_131] : memref<16x8xf32, #tpu.memory_space<smem>>
    %c0_132 = arith.constant 0 : index
    %c2_133 = arith.constant 2 : index
    %82 = memref.load %arg5[%c0_132, %c2_133] : memref<16x8xf32, #tpu.memory_space<smem>>
    %c0_134 = arith.constant 0 : index
    %c3_135 = arith.constant 3 : index
    %83 = memref.load %arg5[%c0_134, %c3_135] : memref<16x8xf32, #tpu.memory_space<smem>>
    %c0_136 = arith.constant 0 : index
    %c4_137 = arith.constant 4 : index
    %84 = memref.load %arg5[%c0_136, %c4_137] : memref<16x8xf32, #tpu.memory_space<smem>>
    %c0_138 = arith.constant 0 : index
    %c5_139 = arith.constant 5 : index
    %85 = memref.load %arg5[%c0_138, %c5_139] : memref<16x8xf32, #tpu.memory_space<smem>>
    %c0_140 = arith.constant 0 : index
    %c6_141 = arith.constant 6 : index
    %86 = memref.load %arg5[%c0_140, %c6_141] : memref<16x8xf32, #tpu.memory_space<smem>>
    %c0_142 = arith.constant 0 : index
    %c7_143 = arith.constant 7 : index
    %87 = memref.load %arg5[%c0_142, %c7_143] : memref<16x8xf32, #tpu.memory_space<smem>>
    %c1_144 = arith.constant 1 : index
    %c0_145 = arith.constant 0 : index
    %88 = memref.load %arg5[%c1_144, %c0_145] : memref<16x8xf32, #tpu.memory_space<smem>>
    %c1_146 = arith.constant 1 : index
    %c1_147 = arith.constant 1 : index
    %89 = memref.load %arg5[%c1_146, %c1_147] : memref<16x8xf32, #tpu.memory_space<smem>>
    %c1_148 = arith.constant 1 : index
    %c2_149 = arith.constant 2 : index
    %90 = memref.load %arg5[%c1_148, %c2_149] : memref<16x8xf32, #tpu.memory_space<smem>>
    %c1_150 = arith.constant 1 : index
    %c3_151 = arith.constant 3 : index
    %91 = memref.load %arg5[%c1_150, %c3_151] : memref<16x8xf32, #tpu.memory_space<smem>>
    %c1_152 = arith.constant 1 : index
    %c4_153 = arith.constant 4 : index
    %92 = memref.load %arg5[%c1_152, %c4_153] : memref<16x8xf32, #tpu.memory_space<smem>>
    %c1_154 = arith.constant 1 : index
    %c5_155 = arith.constant 5 : index
    %93 = memref.load %arg5[%c1_154, %c5_155] : memref<16x8xf32, #tpu.memory_space<smem>>
    %c1_156 = arith.constant 1 : index
    %c6_157 = arith.constant 6 : index
    %94 = memref.load %arg5[%c1_156, %c6_157] : memref<16x8xf32, #tpu.memory_space<smem>>
    %c1_158 = arith.constant 1 : index
    %c7_159 = arith.constant 7 : index
    %95 = memref.load %arg5[%c1_158, %c7_159] : memref<16x8xf32, #tpu.memory_space<smem>>
    %c2_160 = arith.constant 2 : index
    %c0_161 = arith.constant 0 : index
    %96 = memref.load %arg5[%c2_160, %c0_161] : memref<16x8xf32, #tpu.memory_space<smem>>
    %c2_162 = arith.constant 2 : index
    %c1_163 = arith.constant 1 : index
    %97 = memref.load %arg5[%c2_162, %c1_163] : memref<16x8xf32, #tpu.memory_space<smem>>
    %c2_164 = arith.constant 2 : index
    %c2_165 = arith.constant 2 : index
    %98 = memref.load %arg5[%c2_164, %c2_165] : memref<16x8xf32, #tpu.memory_space<smem>>
    %c2_166 = arith.constant 2 : index
    %c3_167 = arith.constant 3 : index
    %99 = memref.load %arg5[%c2_166, %c3_167] : memref<16x8xf32, #tpu.memory_space<smem>>
    %c2_168 = arith.constant 2 : index
    %c4_169 = arith.constant 4 : index
    %100 = memref.load %arg5[%c2_168, %c4_169] : memref<16x8xf32, #tpu.memory_space<smem>>
    %c2_170 = arith.constant 2 : index
    %c5_171 = arith.constant 5 : index
    %101 = memref.load %arg5[%c2_170, %c5_171] : memref<16x8xf32, #tpu.memory_space<smem>>
    %c2_172 = arith.constant 2 : index
    %c6_173 = arith.constant 6 : index
    %102 = memref.load %arg5[%c2_172, %c6_173] : memref<16x8xf32, #tpu.memory_space<smem>>
    %c2_174 = arith.constant 2 : index
    %c7_175 = arith.constant 7 : index
    %103 = memref.load %arg5[%c2_174, %c7_175] : memref<16x8xf32, #tpu.memory_space<smem>>
    %c3_176 = arith.constant 3 : index
    %c0_177 = arith.constant 0 : index
    %104 = memref.load %arg5[%c3_176, %c0_177] : memref<16x8xf32, #tpu.memory_space<smem>>
    %c3_178 = arith.constant 3 : index
    %c1_179 = arith.constant 1 : index
    %105 = memref.load %arg5[%c3_178, %c1_179] : memref<16x8xf32, #tpu.memory_space<smem>>
    %c3_180 = arith.constant 3 : index
    %c2_181 = arith.constant 2 : index
    %106 = memref.load %arg5[%c3_180, %c2_181] : memref<16x8xf32, #tpu.memory_space<smem>>
    %c3_182 = arith.constant 3 : index
    %c3_183 = arith.constant 3 : index
    %107 = memref.load %arg5[%c3_182, %c3_183] : memref<16x8xf32, #tpu.memory_space<smem>>
    %c3_184 = arith.constant 3 : index
    %c4_185 = arith.constant 4 : index
    %108 = memref.load %arg5[%c3_184, %c4_185] : memref<16x8xf32, #tpu.memory_space<smem>>
    %c3_186 = arith.constant 3 : index
    %c5_187 = arith.constant 5 : index
    %109 = memref.load %arg5[%c3_186, %c5_187] : memref<16x8xf32, #tpu.memory_space<smem>>
    %c3_188 = arith.constant 3 : index
    %c6_189 = arith.constant 6 : index
    %110 = memref.load %arg5[%c3_188, %c6_189] : memref<16x8xf32, #tpu.memory_space<smem>>
    %c3_190 = arith.constant 3 : index
    %c7_191 = arith.constant 7 : index
    %111 = memref.load %arg5[%c3_190, %c7_191] : memref<16x8xf32, #tpu.memory_space<smem>>
    %c4_192 = arith.constant 4 : index
    %c0_193 = arith.constant 0 : index
    %112 = memref.load %arg5[%c4_192, %c0_193] : memref<16x8xf32, #tpu.memory_space<smem>>
    %c4_194 = arith.constant 4 : index
    %c1_195 = arith.constant 1 : index
    %113 = memref.load %arg5[%c4_194, %c1_195] : memref<16x8xf32, #tpu.memory_space<smem>>
    %c4_196 = arith.constant 4 : index
    %c2_197 = arith.constant 2 : index
    %114 = memref.load %arg5[%c4_196, %c2_197] : memref<16x8xf32, #tpu.memory_space<smem>>
    %c4_198 = arith.constant 4 : index
    %c3_199 = arith.constant 3 : index
    %115 = memref.load %arg5[%c4_198, %c3_199] : memref<16x8xf32, #tpu.memory_space<smem>>
    %c4_200 = arith.constant 4 : index
    %c4_201 = arith.constant 4 : index
    %116 = memref.load %arg5[%c4_200, %c4_201] : memref<16x8xf32, #tpu.memory_space<smem>>
    %c4_202 = arith.constant 4 : index
    %c5_203 = arith.constant 5 : index
    %117 = memref.load %arg5[%c4_202, %c5_203] : memref<16x8xf32, #tpu.memory_space<smem>>
    %c4_204 = arith.constant 4 : index
    %c6_205 = arith.constant 6 : index
    %118 = memref.load %arg5[%c4_204, %c6_205] : memref<16x8xf32, #tpu.memory_space<smem>>
    %c4_206 = arith.constant 4 : index
    %c7_207 = arith.constant 7 : index
    %119 = memref.load %arg5[%c4_206, %c7_207] : memref<16x8xf32, #tpu.memory_space<smem>>
    %c5_208 = arith.constant 5 : index
    %c0_209 = arith.constant 0 : index
    %120 = memref.load %arg5[%c5_208, %c0_209] : memref<16x8xf32, #tpu.memory_space<smem>>
    %c5_210 = arith.constant 5 : index
    %c1_211 = arith.constant 1 : index
    %121 = memref.load %arg5[%c5_210, %c1_211] : memref<16x8xf32, #tpu.memory_space<smem>>
    %c5_212 = arith.constant 5 : index
    %c2_213 = arith.constant 2 : index
    %122 = memref.load %arg5[%c5_212, %c2_213] : memref<16x8xf32, #tpu.memory_space<smem>>
    %c5_214 = arith.constant 5 : index
    %c3_215 = arith.constant 3 : index
    %123 = memref.load %arg5[%c5_214, %c3_215] : memref<16x8xf32, #tpu.memory_space<smem>>
    %c5_216 = arith.constant 5 : index
    %c4_217 = arith.constant 4 : index
    %124 = memref.load %arg5[%c5_216, %c4_217] : memref<16x8xf32, #tpu.memory_space<smem>>
    %c5_218 = arith.constant 5 : index
    %c5_219 = arith.constant 5 : index
    %125 = memref.load %arg5[%c5_218, %c5_219] : memref<16x8xf32, #tpu.memory_space<smem>>
    %c5_220 = arith.constant 5 : index
    %c6_221 = arith.constant 6 : index
    %126 = memref.load %arg5[%c5_220, %c6_221] : memref<16x8xf32, #tpu.memory_space<smem>>
    %c5_222 = arith.constant 5 : index
    %c7_223 = arith.constant 7 : index
    %127 = memref.load %arg5[%c5_222, %c7_223] : memref<16x8xf32, #tpu.memory_space<smem>>
    %c6_224 = arith.constant 6 : index
    %c0_225 = arith.constant 0 : index
    %128 = memref.load %arg5[%c6_224, %c0_225] : memref<16x8xf32, #tpu.memory_space<smem>>
    %c6_226 = arith.constant 6 : index
    %c1_227 = arith.constant 1 : index
    %129 = memref.load %arg5[%c6_226, %c1_227] : memref<16x8xf32, #tpu.memory_space<smem>>
    %c6_228 = arith.constant 6 : index
    %c2_229 = arith.constant 2 : index
    %130 = memref.load %arg5[%c6_228, %c2_229] : memref<16x8xf32, #tpu.memory_space<smem>>
    %c6_230 = arith.constant 6 : index
    %c3_231 = arith.constant 3 : index
    %131 = memref.load %arg5[%c6_230, %c3_231] : memref<16x8xf32, #tpu.memory_space<smem>>
    %c6_232 = arith.constant 6 : index
    %c4_233 = arith.constant 4 : index
    %132 = memref.load %arg5[%c6_232, %c4_233] : memref<16x8xf32, #tpu.memory_space<smem>>
    %c6_234 = arith.constant 6 : index
    %c5_235 = arith.constant 5 : index
    %133 = memref.load %arg5[%c6_234, %c5_235] : memref<16x8xf32, #tpu.memory_space<smem>>
    %c6_236 = arith.constant 6 : index
    %c6_237 = arith.constant 6 : index
    %134 = memref.load %arg5[%c6_236, %c6_237] : memref<16x8xf32, #tpu.memory_space<smem>>
    %c6_238 = arith.constant 6 : index
    %c7_239 = arith.constant 7 : index
    %135 = memref.load %arg5[%c6_238, %c7_239] : memref<16x8xf32, #tpu.memory_space<smem>>
    %c7_240 = arith.constant 7 : index
    %c0_241 = arith.constant 0 : index
    %136 = memref.load %arg5[%c7_240, %c0_241] : memref<16x8xf32, #tpu.memory_space<smem>>
    %c7_242 = arith.constant 7 : index
    %c1_243 = arith.constant 1 : index
    %137 = memref.load %arg5[%c7_242, %c1_243] : memref<16x8xf32, #tpu.memory_space<smem>>
    %c7_244 = arith.constant 7 : index
    %c2_245 = arith.constant 2 : index
    %138 = memref.load %arg5[%c7_244, %c2_245] : memref<16x8xf32, #tpu.memory_space<smem>>
    %c7_246 = arith.constant 7 : index
    %c3_247 = arith.constant 3 : index
    %139 = memref.load %arg5[%c7_246, %c3_247] : memref<16x8xf32, #tpu.memory_space<smem>>
    %c7_248 = arith.constant 7 : index
    %c4_249 = arith.constant 4 : index
    %140 = memref.load %arg5[%c7_248, %c4_249] : memref<16x8xf32, #tpu.memory_space<smem>>
    %c7_250 = arith.constant 7 : index
    %c5_251 = arith.constant 5 : index
    %141 = memref.load %arg5[%c7_250, %c5_251] : memref<16x8xf32, #tpu.memory_space<smem>>
    %c7_252 = arith.constant 7 : index
    %c6_253 = arith.constant 6 : index
    %142 = memref.load %arg5[%c7_252, %c6_253] : memref<16x8xf32, #tpu.memory_space<smem>>
    %c7_254 = arith.constant 7 : index
    %c7_255 = arith.constant 7 : index
    %143 = memref.load %arg5[%c7_254, %c7_255] : memref<16x8xf32, #tpu.memory_space<smem>>
    %c8_256 = arith.constant 8 : index
    %c0_257 = arith.constant 0 : index
    %144 = memref.load %arg5[%c8_256, %c0_257] : memref<16x8xf32, #tpu.memory_space<smem>>
    %c8_258 = arith.constant 8 : index
    %c1_259 = arith.constant 1 : index
    %145 = memref.load %arg5[%c8_258, %c1_259] : memref<16x8xf32, #tpu.memory_space<smem>>
    %c8_260 = arith.constant 8 : index
    %c2_261 = arith.constant 2 : index
    %146 = memref.load %arg5[%c8_260, %c2_261] : memref<16x8xf32, #tpu.memory_space<smem>>
    %c8_262 = arith.constant 8 : index
    %c3_263 = arith.constant 3 : index
    %147 = memref.load %arg5[%c8_262, %c3_263] : memref<16x8xf32, #tpu.memory_space<smem>>
    %c8_264 = arith.constant 8 : index
    %c4_265 = arith.constant 4 : index
    %148 = memref.load %arg5[%c8_264, %c4_265] : memref<16x8xf32, #tpu.memory_space<smem>>
    %c8_266 = arith.constant 8 : index
    %c5_267 = arith.constant 5 : index
    %149 = memref.load %arg5[%c8_266, %c5_267] : memref<16x8xf32, #tpu.memory_space<smem>>
    %c8_268 = arith.constant 8 : index
    %c6_269 = arith.constant 6 : index
    %150 = memref.load %arg5[%c8_268, %c6_269] : memref<16x8xf32, #tpu.memory_space<smem>>
    %c8_270 = arith.constant 8 : index
    %c7_271 = arith.constant 7 : index
    %151 = memref.load %arg5[%c8_270, %c7_271] : memref<16x8xf32, #tpu.memory_space<smem>>
    %c9_272 = arith.constant 9 : index
    %c0_273 = arith.constant 0 : index
    %152 = memref.load %arg5[%c9_272, %c0_273] : memref<16x8xf32, #tpu.memory_space<smem>>
    %c9_274 = arith.constant 9 : index
    %c1_275 = arith.constant 1 : index
    %153 = memref.load %arg5[%c9_274, %c1_275] : memref<16x8xf32, #tpu.memory_space<smem>>
    %c9_276 = arith.constant 9 : index
    %c2_277 = arith.constant 2 : index
    %154 = memref.load %arg5[%c9_276, %c2_277] : memref<16x8xf32, #tpu.memory_space<smem>>
    %c9_278 = arith.constant 9 : index
    %c3_279 = arith.constant 3 : index
    %155 = memref.load %arg5[%c9_278, %c3_279] : memref<16x8xf32, #tpu.memory_space<smem>>
    %c9_280 = arith.constant 9 : index
    %c4_281 = arith.constant 4 : index
    %156 = memref.load %arg5[%c9_280, %c4_281] : memref<16x8xf32, #tpu.memory_space<smem>>
    %c9_282 = arith.constant 9 : index
    %c5_283 = arith.constant 5 : index
    %157 = memref.load %arg5[%c9_282, %c5_283] : memref<16x8xf32, #tpu.memory_space<smem>>
    %c9_284 = arith.constant 9 : index
    %c6_285 = arith.constant 6 : index
    %158 = memref.load %arg5[%c9_284, %c6_285] : memref<16x8xf32, #tpu.memory_space<smem>>
    %c9_286 = arith.constant 9 : index
    %c7_287 = arith.constant 7 : index
    %159 = memref.load %arg5[%c9_286, %c7_287] : memref<16x8xf32, #tpu.memory_space<smem>>
    %c10_288 = arith.constant 10 : index
    %c0_289 = arith.constant 0 : index
    %160 = memref.load %arg5[%c10_288, %c0_289] : memref<16x8xf32, #tpu.memory_space<smem>>
    %c10_290 = arith.constant 10 : index
    %c1_291 = arith.constant 1 : index
    %161 = memref.load %arg5[%c10_290, %c1_291] : memref<16x8xf32, #tpu.memory_space<smem>>
    %c10_292 = arith.constant 10 : index
    %c2_293 = arith.constant 2 : index
    %162 = memref.load %arg5[%c10_292, %c2_293] : memref<16x8xf32, #tpu.memory_space<smem>>
    %c10_294 = arith.constant 10 : index
    %c3_295 = arith.constant 3 : index
    %163 = memref.load %arg5[%c10_294, %c3_295] : memref<16x8xf32, #tpu.memory_space<smem>>
    %c10_296 = arith.constant 10 : index
    %c4_297 = arith.constant 4 : index
    %164 = memref.load %arg5[%c10_296, %c4_297] : memref<16x8xf32, #tpu.memory_space<smem>>
    %c10_298 = arith.constant 10 : index
    %c5_299 = arith.constant 5 : index
    %165 = memref.load %arg5[%c10_298, %c5_299] : memref<16x8xf32, #tpu.memory_space<smem>>
    %c10_300 = arith.constant 10 : index
    %c6_301 = arith.constant 6 : index
    %166 = memref.load %arg5[%c10_300, %c6_301] : memref<16x8xf32, #tpu.memory_space<smem>>
    %c10_302 = arith.constant 10 : index
    %c7_303 = arith.constant 7 : index
    %167 = memref.load %arg5[%c10_302, %c7_303] : memref<16x8xf32, #tpu.memory_space<smem>>
    %c11_304 = arith.constant 11 : index
    %c0_305 = arith.constant 0 : index
    %168 = memref.load %arg5[%c11_304, %c0_305] : memref<16x8xf32, #tpu.memory_space<smem>>
    %c11_306 = arith.constant 11 : index
    %c1_307 = arith.constant 1 : index
    %169 = memref.load %arg5[%c11_306, %c1_307] : memref<16x8xf32, #tpu.memory_space<smem>>
    %c11_308 = arith.constant 11 : index
    %c2_309 = arith.constant 2 : index
    %170 = memref.load %arg5[%c11_308, %c2_309] : memref<16x8xf32, #tpu.memory_space<smem>>
    %c11_310 = arith.constant 11 : index
    %c3_311 = arith.constant 3 : index
    %171 = memref.load %arg5[%c11_310, %c3_311] : memref<16x8xf32, #tpu.memory_space<smem>>
    %c11_312 = arith.constant 11 : index
    %c4_313 = arith.constant 4 : index
    %172 = memref.load %arg5[%c11_312, %c4_313] : memref<16x8xf32, #tpu.memory_space<smem>>
    %c11_314 = arith.constant 11 : index
    %c5_315 = arith.constant 5 : index
    %173 = memref.load %arg5[%c11_314, %c5_315] : memref<16x8xf32, #tpu.memory_space<smem>>
    %c11_316 = arith.constant 11 : index
    %c6_317 = arith.constant 6 : index
    %174 = memref.load %arg5[%c11_316, %c6_317] : memref<16x8xf32, #tpu.memory_space<smem>>
    %c11_318 = arith.constant 11 : index
    %c7_319 = arith.constant 7 : index
    %175 = memref.load %arg5[%c11_318, %c7_319] : memref<16x8xf32, #tpu.memory_space<smem>>
    %c12_320 = arith.constant 12 : index
    %c0_321 = arith.constant 0 : index
    %176 = memref.load %arg5[%c12_320, %c0_321] : memref<16x8xf32, #tpu.memory_space<smem>>
    %c12_322 = arith.constant 12 : index
    %c1_323 = arith.constant 1 : index
    %177 = memref.load %arg5[%c12_322, %c1_323] : memref<16x8xf32, #tpu.memory_space<smem>>
    %c12_324 = arith.constant 12 : index
    %c2_325 = arith.constant 2 : index
    %178 = memref.load %arg5[%c12_324, %c2_325] : memref<16x8xf32, #tpu.memory_space<smem>>
    %c12_326 = arith.constant 12 : index
    %c3_327 = arith.constant 3 : index
    %179 = memref.load %arg5[%c12_326, %c3_327] : memref<16x8xf32, #tpu.memory_space<smem>>
    %c12_328 = arith.constant 12 : index
    %c4_329 = arith.constant 4 : index
    %180 = memref.load %arg5[%c12_328, %c4_329] : memref<16x8xf32, #tpu.memory_space<smem>>
    %c12_330 = arith.constant 12 : index
    %c5_331 = arith.constant 5 : index
    %181 = memref.load %arg5[%c12_330, %c5_331] : memref<16x8xf32, #tpu.memory_space<smem>>
    %c12_332 = arith.constant 12 : index
    %c6_333 = arith.constant 6 : index
    %182 = memref.load %arg5[%c12_332, %c6_333] : memref<16x8xf32, #tpu.memory_space<smem>>
    %c12_334 = arith.constant 12 : index
    %c7_335 = arith.constant 7 : index
    %183 = memref.load %arg5[%c12_334, %c7_335] : memref<16x8xf32, #tpu.memory_space<smem>>
    %c13_336 = arith.constant 13 : index
    %c0_337 = arith.constant 0 : index
    %184 = memref.load %arg5[%c13_336, %c0_337] : memref<16x8xf32, #tpu.memory_space<smem>>
    %c13_338 = arith.constant 13 : index
    %c1_339 = arith.constant 1 : index
    %185 = memref.load %arg5[%c13_338, %c1_339] : memref<16x8xf32, #tpu.memory_space<smem>>
    %c13_340 = arith.constant 13 : index
    %c2_341 = arith.constant 2 : index
    %186 = memref.load %arg5[%c13_340, %c2_341] : memref<16x8xf32, #tpu.memory_space<smem>>
    %c13_342 = arith.constant 13 : index
    %c3_343 = arith.constant 3 : index
    %187 = memref.load %arg5[%c13_342, %c3_343] : memref<16x8xf32, #tpu.memory_space<smem>>
    %c13_344 = arith.constant 13 : index
    %c4_345 = arith.constant 4 : index
    %188 = memref.load %arg5[%c13_344, %c4_345] : memref<16x8xf32, #tpu.memory_space<smem>>
    %c13_346 = arith.constant 13 : index
    %c5_347 = arith.constant 5 : index
    %189 = memref.load %arg5[%c13_346, %c5_347] : memref<16x8xf32, #tpu.memory_space<smem>>
    %c13_348 = arith.constant 13 : index
    %c6_349 = arith.constant 6 : index
    %190 = memref.load %arg5[%c13_348, %c6_349] : memref<16x8xf32, #tpu.memory_space<smem>>
    %c13_350 = arith.constant 13 : index
    %c7_351 = arith.constant 7 : index
    %191 = memref.load %arg5[%c13_350, %c7_351] : memref<16x8xf32, #tpu.memory_space<smem>>
    %c14_352 = arith.constant 14 : index
    %c0_353 = arith.constant 0 : index
    %192 = memref.load %arg5[%c14_352, %c0_353] : memref<16x8xf32, #tpu.memory_space<smem>>
    %c14_354 = arith.constant 14 : index
    %c1_355 = arith.constant 1 : index
    %193 = memref.load %arg5[%c14_354, %c1_355] : memref<16x8xf32, #tpu.memory_space<smem>>
    %c14_356 = arith.constant 14 : index
    %c2_357 = arith.constant 2 : index
    %194 = memref.load %arg5[%c14_356, %c2_357] : memref<16x8xf32, #tpu.memory_space<smem>>
    %c14_358 = arith.constant 14 : index
    %c3_359 = arith.constant 3 : index
    %195 = memref.load %arg5[%c14_358, %c3_359] : memref<16x8xf32, #tpu.memory_space<smem>>
    %c14_360 = arith.constant 14 : index
    %c4_361 = arith.constant 4 : index
    %196 = memref.load %arg5[%c14_360, %c4_361] : memref<16x8xf32, #tpu.memory_space<smem>>
    %c14_362 = arith.constant 14 : index
    %c5_363 = arith.constant 5 : index
    %197 = memref.load %arg5[%c14_362, %c5_363] : memref<16x8xf32, #tpu.memory_space<smem>>
    %c14_364 = arith.constant 14 : index
    %c6_365 = arith.constant 6 : index
    %198 = memref.load %arg5[%c14_364, %c6_365] : memref<16x8xf32, #tpu.memory_space<smem>>
    %c14_366 = arith.constant 14 : index
    %c7_367 = arith.constant 7 : index
    %199 = memref.load %arg5[%c14_366, %c7_367] : memref<16x8xf32, #tpu.memory_space<smem>>
    %c15_368 = arith.constant 15 : index
    %c0_369 = arith.constant 0 : index
    %200 = memref.load %arg5[%c15_368, %c0_369] : memref<16x8xf32, #tpu.memory_space<smem>>
    %c15_370 = arith.constant 15 : index
    %c1_371 = arith.constant 1 : index
    %201 = memref.load %arg5[%c15_370, %c1_371] : memref<16x8xf32, #tpu.memory_space<smem>>
    %c15_372 = arith.constant 15 : index
    %c2_373 = arith.constant 2 : index
    %202 = memref.load %arg5[%c15_372, %c2_373] : memref<16x8xf32, #tpu.memory_space<smem>>
    %c15_374 = arith.constant 15 : index
    %c3_375 = arith.constant 3 : index
    %203 = memref.load %arg5[%c15_374, %c3_375] : memref<16x8xf32, #tpu.memory_space<smem>>
    %c15_376 = arith.constant 15 : index
    %c4_377 = arith.constant 4 : index
    %204 = memref.load %arg5[%c15_376, %c4_377] : memref<16x8xf32, #tpu.memory_space<smem>>
    %c15_378 = arith.constant 15 : index
    %c5_379 = arith.constant 5 : index
    %205 = memref.load %arg5[%c15_378, %c5_379] : memref<16x8xf32, #tpu.memory_space<smem>>
    %c15_380 = arith.constant 15 : index
    %c6_381 = arith.constant 6 : index
    %206 = memref.load %arg5[%c15_380, %c6_381] : memref<16x8xf32, #tpu.memory_space<smem>>
    %c15_382 = arith.constant 15 : index
    %c7_383 = arith.constant 7 : index
    %207 = memref.load %arg5[%c15_382, %c7_383] : memref<16x8xf32, #tpu.memory_space<smem>>
    %c0_384 = arith.constant 0 : index
    %208 = memref.load %arg6[%c0_384] : memref<8xf32, #tpu.memory_space<smem>>
    %c1_385 = arith.constant 1 : index
    %209 = memref.load %arg6[%c1_385] : memref<8xf32, #tpu.memory_space<smem>>
    %c2_386 = arith.constant 2 : index
    %210 = memref.load %arg6[%c2_386] : memref<8xf32, #tpu.memory_space<smem>>
    %c3_387 = arith.constant 3 : index
    %211 = memref.load %arg6[%c3_387] : memref<8xf32, #tpu.memory_space<smem>>
    %c4_388 = arith.constant 4 : index
    %212 = memref.load %arg6[%c4_388] : memref<8xf32, #tpu.memory_space<smem>>
    %c5_389 = arith.constant 5 : index
    %213 = memref.load %arg6[%c5_389] : memref<8xf32, #tpu.memory_space<smem>>
    %c6_390 = arith.constant 6 : index
    %214 = memref.load %arg6[%c6_390] : memref<8xf32, #tpu.memory_space<smem>>
    %c7_391 = arith.constant 7 : index
    %215 = memref.load %arg6[%c7_391] : memref<8xf32, #tpu.memory_space<smem>>
    %c0_392 = arith.constant 0 : index
    %216 = memref.load %arg7[%c0_392] : memref<9xf32, #tpu.memory_space<smem>>
    %c1_393 = arith.constant 1 : index
    %217 = memref.load %arg7[%c1_393] : memref<9xf32, #tpu.memory_space<smem>>
    %c2_394 = arith.constant 2 : index
    %218 = memref.load %arg7[%c2_394] : memref<9xf32, #tpu.memory_space<smem>>
    %c3_395 = arith.constant 3 : index
    %219 = memref.load %arg7[%c3_395] : memref<9xf32, #tpu.memory_space<smem>>
    %c4_396 = arith.constant 4 : index
    %220 = memref.load %arg7[%c4_396] : memref<9xf32, #tpu.memory_space<smem>>
    %c5_397 = arith.constant 5 : index
    %221 = memref.load %arg7[%c5_397] : memref<9xf32, #tpu.memory_space<smem>>
    %c6_398 = arith.constant 6 : index
    %222 = memref.load %arg7[%c6_398] : memref<9xf32, #tpu.memory_space<smem>>
    %c7_399 = arith.constant 7 : index
    %223 = memref.load %arg7[%c7_399] : memref<9xf32, #tpu.memory_space<smem>>
    %c8_400 = arith.constant 8 : index
    %224 = memref.load %arg7[%c8_400] : memref<9xf32, #tpu.memory_space<smem>>
    %c0_i32 = arith.constant 0 : i32
    %c8_i32 = arith.constant 8 : i32
    %225 = arith.muli %c0_i32, %c8_i32 : i32
    %226 = tpu.assume_multiple %225, 8 : i32
    %c0_401 = arith.constant 0 : index
    %c0_402 = arith.constant 0 : index
    %227 = arith.index_cast %226 : i32 to index
    %c0_403 = arith.constant 0 : index
    %228 = vector.load %arg2[%c0_401, %c0_402, %227, %c0_403] : memref<1x4x16x128xf32, #tpu.memory_space<vmem>>, vector<1x4x8x128xf32>
    %229 = vector.shape_cast %228 : vector<1x4x8x128xf32> to vector<4x8x128xf32>
    %230 = vector.extract_strided_slice %229 {offsets = [0, 0, 0], sizes = [1, 8, 128], strides = [1, 1, 1]} : vector<4x8x128xf32> to vector<1x8x128xf32>
    %231 = vector.shape_cast %230 : vector<1x8x128xf32> to vector<8x128xf32>
    %232 = vector.broadcast %0 : f32 to vector<8x128xf32>
    %233 = arith.mulf %232, %231 : vector<8x128xf32>
    %234 = vector.extract_strided_slice %229 {offsets = [1, 0, 0], sizes = [1, 8, 128], strides = [1, 1, 1]} : vector<4x8x128xf32> to vector<1x8x128xf32>
    %235 = vector.shape_cast %234 : vector<1x8x128xf32> to vector<8x128xf32>
    %236 = vector.broadcast %16 : f32 to vector<8x128xf32>
    %237 = arith.mulf %236, %235 : vector<8x128xf32>
    %238 = arith.addf %233, %237 : vector<8x128xf32>
    %239 = vector.extract_strided_slice %229 {offsets = [2, 0, 0], sizes = [1, 8, 128], strides = [1, 1, 1]} : vector<4x8x128xf32> to vector<1x8x128xf32>
    %240 = vector.shape_cast %239 : vector<1x8x128xf32> to vector<8x128xf32>
    %241 = vector.broadcast %32 : f32 to vector<8x128xf32>
    %242 = arith.mulf %241, %240 : vector<8x128xf32>
    %243 = arith.addf %238, %242 : vector<8x128xf32>
    %244 = vector.extract_strided_slice %229 {offsets = [3, 0, 0], sizes = [1, 8, 128], strides = [1, 1, 1]} : vector<4x8x128xf32> to vector<1x8x128xf32>
    %245 = vector.shape_cast %244 : vector<1x8x128xf32> to vector<8x128xf32>
    %246 = vector.broadcast %48 : f32 to vector<8x128xf32>
    %247 = arith.mulf %246, %245 : vector<8x128xf32>
    %248 = arith.addf %243, %247 : vector<8x128xf32>
    %249 = vector.broadcast %64 : f32 to vector<8x128xf32>
    %250 = arith.addf %248, %249 : vector<8x128xf32>
    %cst = arith.constant 0.000000e+00 : f32
    %251 = vector.broadcast %cst : f32 to vector<8x128xf32>
    %252 = arith.maximumf %250, %251 : vector<8x128xf32>
    %253 = vector.extract_strided_slice %229 {offsets = [0, 0, 0], sizes = [1, 8, 128], strides = [1, 1, 1]} : vector<4x8x128xf32> to vector<1x8x128xf32>
    %254 = vector.shape_cast %253 : vector<1x8x128xf32> to vector<8x128xf32>
    %255 = vector.broadcast %1 : f32 to vector<8x128xf32>
    %256 = arith.mulf %255, %254 : vector<8x128xf32>
    %257 = vector.extract_strided_slice %229 {offsets = [1, 0, 0], sizes = [1, 8, 128], strides = [1, 1, 1]} : vector<4x8x128xf32> to vector<1x8x128xf32>
    %258 = vector.shape_cast %257 : vector<1x8x128xf32> to vector<8x128xf32>
    %259 = vector.broadcast %17 : f32 to vector<8x128xf32>
    %260 = arith.mulf %259, %258 : vector<8x128xf32>
    %261 = arith.addf %256, %260 : vector<8x128xf32>
    %262 = vector.extract_strided_slice %229 {offsets = [2, 0, 0], sizes = [1, 8, 128], strides = [1, 1, 1]} : vector<4x8x128xf32> to vector<1x8x128xf32>
    %263 = vector.shape_cast %262 : vector<1x8x128xf32> to vector<8x128xf32>
    %264 = vector.broadcast %33 : f32 to vector<8x128xf32>
    %265 = arith.mulf %264, %263 : vector<8x128xf32>
    %266 = arith.addf %261, %265 : vector<8x128xf32>
    %267 = vector.extract_strided_slice %229 {offsets = [3, 0, 0], sizes = [1, 8, 128], strides = [1, 1, 1]} : vector<4x8x128xf32> to vector<1x8x128xf32>
    %268 = vector.shape_cast %267 : vector<1x8x128xf32> to vector<8x128xf32>
    %269 = vector.broadcast %49 : f32 to vector<8x128xf32>
    %270 = arith.mulf %269, %268 : vector<8x128xf32>
    %271 = arith.addf %266, %270 : vector<8x128xf32>
    %272 = vector.broadcast %65 : f32 to vector<8x128xf32>
    %273 = arith.addf %271, %272 : vector<8x128xf32>
    %cst_404 = arith.constant 0.000000e+00 : f32
    %274 = vector.broadcast %cst_404 : f32 to vector<8x128xf32>
    %275 = arith.maximumf %273, %274 : vector<8x128xf32>
    %276 = vector.extract_strided_slice %229 {offsets = [0, 0, 0], sizes = [1, 8, 128], strides = [1, 1, 1]} : vector<4x8x128xf32> to vector<1x8x128xf32>
    %277 = vector.shape_cast %276 : vector<1x8x128xf32> to vector<8x128xf32>
    %278 = vector.broadcast %2 : f32 to vector<8x128xf32>
    %279 = arith.mulf %278, %277 : vector<8x128xf32>
    %280 = vector.extract_strided_slice %229 {offsets = [1, 0, 0], sizes = [1, 8, 128], strides = [1, 1, 1]} : vector<4x8x128xf32> to vector<1x8x128xf32>
    %281 = vector.shape_cast %280 : vector<1x8x128xf32> to vector<8x128xf32>
    %282 = vector.broadcast %18 : f32 to vector<8x128xf32>
    %283 = arith.mulf %282, %281 : vector<8x128xf32>
    %284 = arith.addf %279, %283 : vector<8x128xf32>
    %285 = vector.extract_strided_slice %229 {offsets = [2, 0, 0], sizes = [1, 8, 128], strides = [1, 1, 1]} : vector<4x8x128xf32> to vector<1x8x128xf32>
    %286 = vector.shape_cast %285 : vector<1x8x128xf32> to vector<8x128xf32>
    %287 = vector.broadcast %34 : f32 to vector<8x128xf32>
    %288 = arith.mulf %287, %286 : vector<8x128xf32>
    %289 = arith.addf %284, %288 : vector<8x128xf32>
    %290 = vector.extract_strided_slice %229 {offsets = [3, 0, 0], sizes = [1, 8, 128], strides = [1, 1, 1]} : vector<4x8x128xf32> to vector<1x8x128xf32>
    %291 = vector.shape_cast %290 : vector<1x8x128xf32> to vector<8x128xf32>
    %292 = vector.broadcast %50 : f32 to vector<8x128xf32>
    %293 = arith.mulf %292, %291 : vector<8x128xf32>
    %294 = arith.addf %289, %293 : vector<8x128xf32>
    %295 = vector.broadcast %66 : f32 to vector<8x128xf32>
    %296 = arith.addf %294, %295 : vector<8x128xf32>
    %cst_405 = arith.constant 0.000000e+00 : f32
    %297 = vector.broadcast %cst_405 : f32 to vector<8x128xf32>
    %298 = arith.maximumf %296, %297 : vector<8x128xf32>
    %299 = vector.extract_strided_slice %229 {offsets = [0, 0, 0], sizes = [1, 8, 128], strides = [1, 1, 1]} : vector<4x8x128xf32> to vector<1x8x128xf32>
    %300 = vector.shape_cast %299 : vector<1x8x128xf32> to vector<8x128xf32>
    %301 = vector.broadcast %3 : f32 to vector<8x128xf32>
    %302 = arith.mulf %301, %300 : vector<8x128xf32>
    %303 = vector.extract_strided_slice %229 {offsets = [1, 0, 0], sizes = [1, 8, 128], strides = [1, 1, 1]} : vector<4x8x128xf32> to vector<1x8x128xf32>
    %304 = vector.shape_cast %303 : vector<1x8x128xf32> to vector<8x128xf32>
    %305 = vector.broadcast %19 : f32 to vector<8x128xf32>
    %306 = arith.mulf %305, %304 : vector<8x128xf32>
    %307 = arith.addf %302, %306 : vector<8x128xf32>
    %308 = vector.extract_strided_slice %229 {offsets = [2, 0, 0], sizes = [1, 8, 128], strides = [1, 1, 1]} : vector<4x8x128xf32> to vector<1x8x128xf32>
    %309 = vector.shape_cast %308 : vector<1x8x128xf32> to vector<8x128xf32>
    %310 = vector.broadcast %35 : f32 to vector<8x128xf32>
    %311 = arith.mulf %310, %309 : vector<8x128xf32>
    %312 = arith.addf %307, %311 : vector<8x128xf32>
    %313 = vector.extract_strided_slice %229 {offsets = [3, 0, 0], sizes = [1, 8, 128], strides = [1, 1, 1]} : vector<4x8x128xf32> to vector<1x8x128xf32>
    %314 = vector.shape_cast %313 : vector<1x8x128xf32> to vector<8x128xf32>
    %315 = vector.broadcast %51 : f32 to vector<8x128xf32>
    %316 = arith.mulf %315, %314 : vector<8x128xf32>
    %317 = arith.addf %312, %316 : vector<8x128xf32>
    %318 = vector.broadcast %67 : f32 to vector<8x128xf32>
    %319 = arith.addf %317, %318 : vector<8x128xf32>
    %cst_406 = arith.constant 0.000000e+00 : f32
    %320 = vector.broadcast %cst_406 : f32 to vector<8x128xf32>
    %321 = arith.maximumf %319, %320 : vector<8x128xf32>
    %322 = vector.extract_strided_slice %229 {offsets = [0, 0, 0], sizes = [1, 8, 128], strides = [1, 1, 1]} : vector<4x8x128xf32> to vector<1x8x128xf32>
    %323 = vector.shape_cast %322 : vector<1x8x128xf32> to vector<8x128xf32>
    %324 = vector.broadcast %4 : f32 to vector<8x128xf32>
    %325 = arith.mulf %324, %323 : vector<8x128xf32>
    %326 = vector.extract_strided_slice %229 {offsets = [1, 0, 0], sizes = [1, 8, 128], strides = [1, 1, 1]} : vector<4x8x128xf32> to vector<1x8x128xf32>
    %327 = vector.shape_cast %326 : vector<1x8x128xf32> to vector<8x128xf32>
    %328 = vector.broadcast %20 : f32 to vector<8x128xf32>
    %329 = arith.mulf %328, %327 : vector<8x128xf32>
    %330 = arith.addf %325, %329 : vector<8x128xf32>
    %331 = vector.extract_strided_slice %229 {offsets = [2, 0, 0], sizes = [1, 8, 128], strides = [1, 1, 1]} : vector<4x8x128xf32> to vector<1x8x128xf32>
    %332 = vector.shape_cast %331 : vector<1x8x128xf32> to vector<8x128xf32>
    %333 = vector.broadcast %36 : f32 to vector<8x128xf32>
    %334 = arith.mulf %333, %332 : vector<8x128xf32>
    %335 = arith.addf %330, %334 : vector<8x128xf32>
    %336 = vector.extract_strided_slice %229 {offsets = [3, 0, 0], sizes = [1, 8, 128], strides = [1, 1, 1]} : vector<4x8x128xf32> to vector<1x8x128xf32>
    %337 = vector.shape_cast %336 : vector<1x8x128xf32> to vector<8x128xf32>
    %338 = vector.broadcast %52 : f32 to vector<8x128xf32>
    %339 = arith.mulf %338, %337 : vector<8x128xf32>
    %340 = arith.addf %335, %339 : vector<8x128xf32>
    %341 = vector.broadcast %68 : f32 to vector<8x128xf32>
    %342 = arith.addf %340, %341 : vector<8x128xf32>
    %cst_407 = arith.constant 0.000000e+00 : f32
    %343 = vector.broadcast %cst_407 : f32 to vector<8x128xf32>
    %344 = arith.maximumf %342, %343 : vector<8x128xf32>
    %345 = vector.extract_strided_slice %229 {offsets = [0, 0, 0], sizes = [1, 8, 128], strides = [1, 1, 1]} : vector<4x8x128xf32> to vector<1x8x128xf32>
    %346 = vector.shape_cast %345 : vector<1x8x128xf32> to vector<8x128xf32>
    %347 = vector.broadcast %5 : f32 to vector<8x128xf32>
    %348 = arith.mulf %347, %346 : vector<8x128xf32>
    %349 = vector.extract_strided_slice %229 {offsets = [1, 0, 0], sizes = [1, 8, 128], strides = [1, 1, 1]} : vector<4x8x128xf32> to vector<1x8x128xf32>
    %350 = vector.shape_cast %349 : vector<1x8x128xf32> to vector<8x128xf32>
    %351 = vector.broadcast %21 : f32 to vector<8x128xf32>
    %352 = arith.mulf %351, %350 : vector<8x128xf32>
    %353 = arith.addf %348, %352 : vector<8x128xf32>
    %354 = vector.extract_strided_slice %229 {offsets = [2, 0, 0], sizes = [1, 8, 128], strides = [1, 1, 1]} : vector<4x8x128xf32> to vector<1x8x128xf32>
    %355 = vector.shape_cast %354 : vector<1x8x128xf32> to vector<8x128xf32>
    %356 = vector.broadcast %37 : f32 to vector<8x128xf32>
    %357 = arith.mulf %356, %355 : vector<8x128xf32>
    %358 = arith.addf %353, %357 : vector<8x128xf32>
    %359 = vector.extract_strided_slice %229 {offsets = [3, 0, 0], sizes = [1, 8, 128], strides = [1, 1, 1]} : vector<4x8x128xf32> to vector<1x8x128xf32>
    %360 = vector.shape_cast %359 : vector<1x8x128xf32> to vector<8x128xf32>
    %361 = vector.broadcast %53 : f32 to vector<8x128xf32>
    %362 = arith.mulf %361, %360 : vector<8x128xf32>
    %363 = arith.addf %358, %362 : vector<8x128xf32>
    %364 = vector.broadcast %69 : f32 to vector<8x128xf32>
    %365 = arith.addf %363, %364 : vector<8x128xf32>
    %cst_408 = arith.constant 0.000000e+00 : f32
    %366 = vector.broadcast %cst_408 : f32 to vector<8x128xf32>
    %367 = arith.maximumf %365, %366 : vector<8x128xf32>
    %368 = vector.extract_strided_slice %229 {offsets = [0, 0, 0], sizes = [1, 8, 128], strides = [1, 1, 1]} : vector<4x8x128xf32> to vector<1x8x128xf32>
    %369 = vector.shape_cast %368 : vector<1x8x128xf32> to vector<8x128xf32>
    %370 = vector.broadcast %6 : f32 to vector<8x128xf32>
    %371 = arith.mulf %370, %369 : vector<8x128xf32>
    %372 = vector.extract_strided_slice %229 {offsets = [1, 0, 0], sizes = [1, 8, 128], strides = [1, 1, 1]} : vector<4x8x128xf32> to vector<1x8x128xf32>
    %373 = vector.shape_cast %372 : vector<1x8x128xf32> to vector<8x128xf32>
    %374 = vector.broadcast %22 : f32 to vector<8x128xf32>
    %375 = arith.mulf %374, %373 : vector<8x128xf32>
    %376 = arith.addf %371, %375 : vector<8x128xf32>
    %377 = vector.extract_strided_slice %229 {offsets = [2, 0, 0], sizes = [1, 8, 128], strides = [1, 1, 1]} : vector<4x8x128xf32> to vector<1x8x128xf32>
    %378 = vector.shape_cast %377 : vector<1x8x128xf32> to vector<8x128xf32>
    %379 = vector.broadcast %38 : f32 to vector<8x128xf32>
    %380 = arith.mulf %379, %378 : vector<8x128xf32>
    %381 = arith.addf %376, %380 : vector<8x128xf32>
    %382 = vector.extract_strided_slice %229 {offsets = [3, 0, 0], sizes = [1, 8, 128], strides = [1, 1, 1]} : vector<4x8x128xf32> to vector<1x8x128xf32>
    %383 = vector.shape_cast %382 : vector<1x8x128xf32> to vector<8x128xf32>
    %384 = vector.broadcast %54 : f32 to vector<8x128xf32>
    %385 = arith.mulf %384, %383 : vector<8x128xf32>
    %386 = arith.addf %381, %385 : vector<8x128xf32>
    %387 = vector.broadcast %70 : f32 to vector<8x128xf32>
    %388 = arith.addf %386, %387 : vector<8x128xf32>
    %cst_409 = arith.constant 0.000000e+00 : f32
    %389 = vector.broadcast %cst_409 : f32 to vector<8x128xf32>
    %390 = arith.maximumf %388, %389 : vector<8x128xf32>
    %391 = vector.extract_strided_slice %229 {offsets = [0, 0, 0], sizes = [1, 8, 128], strides = [1, 1, 1]} : vector<4x8x128xf32> to vector<1x8x128xf32>
    %392 = vector.shape_cast %391 : vector<1x8x128xf32> to vector<8x128xf32>
    %393 = vector.broadcast %7 : f32 to vector<8x128xf32>
    %394 = arith.mulf %393, %392 : vector<8x128xf32>
    %395 = vector.extract_strided_slice %229 {offsets = [1, 0, 0], sizes = [1, 8, 128], strides = [1, 1, 1]} : vector<4x8x128xf32> to vector<1x8x128xf32>
    %396 = vector.shape_cast %395 : vector<1x8x128xf32> to vector<8x128xf32>
    %397 = vector.broadcast %23 : f32 to vector<8x128xf32>
    %398 = arith.mulf %397, %396 : vector<8x128xf32>
    %399 = arith.addf %394, %398 : vector<8x128xf32>
    %400 = vector.extract_strided_slice %229 {offsets = [2, 0, 0], sizes = [1, 8, 128], strides = [1, 1, 1]} : vector<4x8x128xf32> to vector<1x8x128xf32>
    %401 = vector.shape_cast %400 : vector<1x8x128xf32> to vector<8x128xf32>
    %402 = vector.broadcast %39 : f32 to vector<8x128xf32>
    %403 = arith.mulf %402, %401 : vector<8x128xf32>
    %404 = arith.addf %399, %403 : vector<8x128xf32>
    %405 = vector.extract_strided_slice %229 {offsets = [3, 0, 0], sizes = [1, 8, 128], strides = [1, 1, 1]} : vector<4x8x128xf32> to vector<1x8x128xf32>
    %406 = vector.shape_cast %405 : vector<1x8x128xf32> to vector<8x128xf32>
    %407 = vector.broadcast %55 : f32 to vector<8x128xf32>
    %408 = arith.mulf %407, %406 : vector<8x128xf32>
    %409 = arith.addf %404, %408 : vector<8x128xf32>
    %410 = vector.broadcast %71 : f32 to vector<8x128xf32>
    %411 = arith.addf %409, %410 : vector<8x128xf32>
    %cst_410 = arith.constant 0.000000e+00 : f32
    %412 = vector.broadcast %cst_410 : f32 to vector<8x128xf32>
    %413 = arith.maximumf %411, %412 : vector<8x128xf32>
    %414 = vector.extract_strided_slice %229 {offsets = [0, 0, 0], sizes = [1, 8, 128], strides = [1, 1, 1]} : vector<4x8x128xf32> to vector<1x8x128xf32>
    %415 = vector.shape_cast %414 : vector<1x8x128xf32> to vector<8x128xf32>
    %416 = vector.broadcast %8 : f32 to vector<8x128xf32>
    %417 = arith.mulf %416, %415 : vector<8x128xf32>
    %418 = vector.extract_strided_slice %229 {offsets = [1, 0, 0], sizes = [1, 8, 128], strides = [1, 1, 1]} : vector<4x8x128xf32> to vector<1x8x128xf32>
    %419 = vector.shape_cast %418 : vector<1x8x128xf32> to vector<8x128xf32>
    %420 = vector.broadcast %24 : f32 to vector<8x128xf32>
    %421 = arith.mulf %420, %419 : vector<8x128xf32>
    %422 = arith.addf %417, %421 : vector<8x128xf32>
    %423 = vector.extract_strided_slice %229 {offsets = [2, 0, 0], sizes = [1, 8, 128], strides = [1, 1, 1]} : vector<4x8x128xf32> to vector<1x8x128xf32>
    %424 = vector.shape_cast %423 : vector<1x8x128xf32> to vector<8x128xf32>
    %425 = vector.broadcast %40 : f32 to vector<8x128xf32>
    %426 = arith.mulf %425, %424 : vector<8x128xf32>
    %427 = arith.addf %422, %426 : vector<8x128xf32>
    %428 = vector.extract_strided_slice %229 {offsets = [3, 0, 0], sizes = [1, 8, 128], strides = [1, 1, 1]} : vector<4x8x128xf32> to vector<1x8x128xf32>
    %429 = vector.shape_cast %428 : vector<1x8x128xf32> to vector<8x128xf32>
    %430 = vector.broadcast %56 : f32 to vector<8x128xf32>
    %431 = arith.mulf %430, %429 : vector<8x128xf32>
    %432 = arith.addf %427, %431 : vector<8x128xf32>
    %433 = vector.broadcast %72 : f32 to vector<8x128xf32>
    %434 = arith.addf %432, %433 : vector<8x128xf32>
    %cst_411 = arith.constant 0.000000e+00 : f32
    %435 = vector.broadcast %cst_411 : f32 to vector<8x128xf32>
    %436 = arith.maximumf %434, %435 : vector<8x128xf32>
    %437 = vector.extract_strided_slice %229 {offsets = [0, 0, 0], sizes = [1, 8, 128], strides = [1, 1, 1]} : vector<4x8x128xf32> to vector<1x8x128xf32>
    %438 = vector.shape_cast %437 : vector<1x8x128xf32> to vector<8x128xf32>
    %439 = vector.broadcast %9 : f32 to vector<8x128xf32>
    %440 = arith.mulf %439, %438 : vector<8x128xf32>
    %441 = vector.extract_strided_slice %229 {offsets = [1, 0, 0], sizes = [1, 8, 128], strides = [1, 1, 1]} : vector<4x8x128xf32> to vector<1x8x128xf32>
    %442 = vector.shape_cast %441 : vector<1x8x128xf32> to vector<8x128xf32>
    %443 = vector.broadcast %25 : f32 to vector<8x128xf32>
    %444 = arith.mulf %443, %442 : vector<8x128xf32>
    %445 = arith.addf %440, %444 : vector<8x128xf32>
    %446 = vector.extract_strided_slice %229 {offsets = [2, 0, 0], sizes = [1, 8, 128], strides = [1, 1, 1]} : vector<4x8x128xf32> to vector<1x8x128xf32>
    %447 = vector.shape_cast %446 : vector<1x8x128xf32> to vector<8x128xf32>
    %448 = vector.broadcast %41 : f32 to vector<8x128xf32>
    %449 = arith.mulf %448, %447 : vector<8x128xf32>
    %450 = arith.addf %445, %449 : vector<8x128xf32>
    %451 = vector.extract_strided_slice %229 {offsets = [3, 0, 0], sizes = [1, 8, 128], strides = [1, 1, 1]} : vector<4x8x128xf32> to vector<1x8x128xf32>
    %452 = vector.shape_cast %451 : vector<1x8x128xf32> to vector<8x128xf32>
    %453 = vector.broadcast %57 : f32 to vector<8x128xf32>
    %454 = arith.mulf %453, %452 : vector<8x128xf32>
    %455 = arith.addf %450, %454 : vector<8x128xf32>
    %456 = vector.broadcast %73 : f32 to vector<8x128xf32>
    %457 = arith.addf %455, %456 : vector<8x128xf32>
    %cst_412 = arith.constant 0.000000e+00 : f32
    %458 = vector.broadcast %cst_412 : f32 to vector<8x128xf32>
    %459 = arith.maximumf %457, %458 : vector<8x128xf32>
    %460 = vector.extract_strided_slice %229 {offsets = [0, 0, 0], sizes = [1, 8, 128], strides = [1, 1, 1]} : vector<4x8x128xf32> to vector<1x8x128xf32>
    %461 = vector.shape_cast %460 : vector<1x8x128xf32> to vector<8x128xf32>
    %462 = vector.broadcast %10 : f32 to vector<8x128xf32>
    %463 = arith.mulf %462, %461 : vector<8x128xf32>
    %464 = vector.extract_strided_slice %229 {offsets = [1, 0, 0], sizes = [1, 8, 128], strides = [1, 1, 1]} : vector<4x8x128xf32> to vector<1x8x128xf32>
    %465 = vector.shape_cast %464 : vector<1x8x128xf32> to vector<8x128xf32>
    %466 = vector.broadcast %26 : f32 to vector<8x128xf32>
    %467 = arith.mulf %466, %465 : vector<8x128xf32>
    %468 = arith.addf %463, %467 : vector<8x128xf32>
    %469 = vector.extract_strided_slice %229 {offsets = [2, 0, 0], sizes = [1, 8, 128], strides = [1, 1, 1]} : vector<4x8x128xf32> to vector<1x8x128xf32>
    %470 = vector.shape_cast %469 : vector<1x8x128xf32> to vector<8x128xf32>
    %471 = vector.broadcast %42 : f32 to vector<8x128xf32>
    %472 = arith.mulf %471, %470 : vector<8x128xf32>
    %473 = arith.addf %468, %472 : vector<8x128xf32>
    %474 = vector.extract_strided_slice %229 {offsets = [3, 0, 0], sizes = [1, 8, 128], strides = [1, 1, 1]} : vector<4x8x128xf32> to vector<1x8x128xf32>
    %475 = vector.shape_cast %474 : vector<1x8x128xf32> to vector<8x128xf32>
    %476 = vector.broadcast %58 : f32 to vector<8x128xf32>
    %477 = arith.mulf %476, %475 : vector<8x128xf32>
    %478 = arith.addf %473, %477 : vector<8x128xf32>
    %479 = vector.broadcast %74 : f32 to vector<8x128xf32>
    %480 = arith.addf %478, %479 : vector<8x128xf32>
    %cst_413 = arith.constant 0.000000e+00 : f32
    %481 = vector.broadcast %cst_413 : f32 to vector<8x128xf32>
    %482 = arith.maximumf %480, %481 : vector<8x128xf32>
    %483 = vector.extract_strided_slice %229 {offsets = [0, 0, 0], sizes = [1, 8, 128], strides = [1, 1, 1]} : vector<4x8x128xf32> to vector<1x8x128xf32>
    %484 = vector.shape_cast %483 : vector<1x8x128xf32> to vector<8x128xf32>
    %485 = vector.broadcast %11 : f32 to vector<8x128xf32>
    %486 = arith.mulf %485, %484 : vector<8x128xf32>
    %487 = vector.extract_strided_slice %229 {offsets = [1, 0, 0], sizes = [1, 8, 128], strides = [1, 1, 1]} : vector<4x8x128xf32> to vector<1x8x128xf32>
    %488 = vector.shape_cast %487 : vector<1x8x128xf32> to vector<8x128xf32>
    %489 = vector.broadcast %27 : f32 to vector<8x128xf32>
    %490 = arith.mulf %489, %488 : vector<8x128xf32>
    %491 = arith.addf %486, %490 : vector<8x128xf32>
    %492 = vector.extract_strided_slice %229 {offsets = [2, 0, 0], sizes = [1, 8, 128], strides = [1, 1, 1]} : vector<4x8x128xf32> to vector<1x8x128xf32>
    %493 = vector.shape_cast %492 : vector<1x8x128xf32> to vector<8x128xf32>
    %494 = vector.broadcast %43 : f32 to vector<8x128xf32>
    %495 = arith.mulf %494, %493 : vector<8x128xf32>
    %496 = arith.addf %491, %495 : vector<8x128xf32>
    %497 = vector.extract_strided_slice %229 {offsets = [3, 0, 0], sizes = [1, 8, 128], strides = [1, 1, 1]} : vector<4x8x128xf32> to vector<1x8x128xf32>
    %498 = vector.shape_cast %497 : vector<1x8x128xf32> to vector<8x128xf32>
    %499 = vector.broadcast %59 : f32 to vector<8x128xf32>
    %500 = arith.mulf %499, %498 : vector<8x128xf32>
    %501 = arith.addf %496, %500 : vector<8x128xf32>
    %502 = vector.broadcast %75 : f32 to vector<8x128xf32>
    %503 = arith.addf %501, %502 : vector<8x128xf32>
    %cst_414 = arith.constant 0.000000e+00 : f32
    %504 = vector.broadcast %cst_414 : f32 to vector<8x128xf32>
    %505 = arith.maximumf %503, %504 : vector<8x128xf32>
    %506 = vector.extract_strided_slice %229 {offsets = [0, 0, 0], sizes = [1, 8, 128], strides = [1, 1, 1]} : vector<4x8x128xf32> to vector<1x8x128xf32>
    %507 = vector.shape_cast %506 : vector<1x8x128xf32> to vector<8x128xf32>
    %508 = vector.broadcast %12 : f32 to vector<8x128xf32>
    %509 = arith.mulf %508, %507 : vector<8x128xf32>
    %510 = vector.extract_strided_slice %229 {offsets = [1, 0, 0], sizes = [1, 8, 128], strides = [1, 1, 1]} : vector<4x8x128xf32> to vector<1x8x128xf32>
    %511 = vector.shape_cast %510 : vector<1x8x128xf32> to vector<8x128xf32>
    %512 = vector.broadcast %28 : f32 to vector<8x128xf32>
    %513 = arith.mulf %512, %511 : vector<8x128xf32>
    %514 = arith.addf %509, %513 : vector<8x128xf32>
    %515 = vector.extract_strided_slice %229 {offsets = [2, 0, 0], sizes = [1, 8, 128], strides = [1, 1, 1]} : vector<4x8x128xf32> to vector<1x8x128xf32>
    %516 = vector.shape_cast %515 : vector<1x8x128xf32> to vector<8x128xf32>
    %517 = vector.broadcast %44 : f32 to vector<8x128xf32>
    %518 = arith.mulf %517, %516 : vector<8x128xf32>
    %519 = arith.addf %514, %518 : vector<8x128xf32>
    %520 = vector.extract_strided_slice %229 {offsets = [3, 0, 0], sizes = [1, 8, 128], strides = [1, 1, 1]} : vector<4x8x128xf32> to vector<1x8x128xf32>
    %521 = vector.shape_cast %520 : vector<1x8x128xf32> to vector<8x128xf32>
    %522 = vector.broadcast %60 : f32 to vector<8x128xf32>
    %523 = arith.mulf %522, %521 : vector<8x128xf32>
    %524 = arith.addf %519, %523 : vector<8x128xf32>
    %525 = vector.broadcast %76 : f32 to vector<8x128xf32>
    %526 = arith.addf %524, %525 : vector<8x128xf32>
    %cst_415 = arith.constant 0.000000e+00 : f32
    %527 = vector.broadcast %cst_415 : f32 to vector<8x128xf32>
    %528 = arith.maximumf %526, %527 : vector<8x128xf32>
    %529 = vector.extract_strided_slice %229 {offsets = [0, 0, 0], sizes = [1, 8, 128], strides = [1, 1, 1]} : vector<4x8x128xf32> to vector<1x8x128xf32>
    %530 = vector.shape_cast %529 : vector<1x8x128xf32> to vector<8x128xf32>
    %531 = vector.broadcast %13 : f32 to vector<8x128xf32>
    %532 = arith.mulf %531, %530 : vector<8x128xf32>
    %533 = vector.extract_strided_slice %229 {offsets = [1, 0, 0], sizes = [1, 8, 128], strides = [1, 1, 1]} : vector<4x8x128xf32> to vector<1x8x128xf32>
    %534 = vector.shape_cast %533 : vector<1x8x128xf32> to vector<8x128xf32>
    %535 = vector.broadcast %29 : f32 to vector<8x128xf32>
    %536 = arith.mulf %535, %534 : vector<8x128xf32>
    %537 = arith.addf %532, %536 : vector<8x128xf32>
    %538 = vector.extract_strided_slice %229 {offsets = [2, 0, 0], sizes = [1, 8, 128], strides = [1, 1, 1]} : vector<4x8x128xf32> to vector<1x8x128xf32>
    %539 = vector.shape_cast %538 : vector<1x8x128xf32> to vector<8x128xf32>
    %540 = vector.broadcast %45 : f32 to vector<8x128xf32>
    %541 = arith.mulf %540, %539 : vector<8x128xf32>
    %542 = arith.addf %537, %541 : vector<8x128xf32>
    %543 = vector.extract_strided_slice %229 {offsets = [3, 0, 0], sizes = [1, 8, 128], strides = [1, 1, 1]} : vector<4x8x128xf32> to vector<1x8x128xf32>
    %544 = vector.shape_cast %543 : vector<1x8x128xf32> to vector<8x128xf32>
    %545 = vector.broadcast %61 : f32 to vector<8x128xf32>
    %546 = arith.mulf %545, %544 : vector<8x128xf32>
    %547 = arith.addf %542, %546 : vector<8x128xf32>
    %548 = vector.broadcast %77 : f32 to vector<8x128xf32>
    %549 = arith.addf %547, %548 : vector<8x128xf32>
    %cst_416 = arith.constant 0.000000e+00 : f32
    %550 = vector.broadcast %cst_416 : f32 to vector<8x128xf32>
    %551 = arith.maximumf %549, %550 : vector<8x128xf32>
    %552 = vector.extract_strided_slice %229 {offsets = [0, 0, 0], sizes = [1, 8, 128], strides = [1, 1, 1]} : vector<4x8x128xf32> to vector<1x8x128xf32>
    %553 = vector.shape_cast %552 : vector<1x8x128xf32> to vector<8x128xf32>
    %554 = vector.broadcast %14 : f32 to vector<8x128xf32>
    %555 = arith.mulf %554, %553 : vector<8x128xf32>
    %556 = vector.extract_strided_slice %229 {offsets = [1, 0, 0], sizes = [1, 8, 128], strides = [1, 1, 1]} : vector<4x8x128xf32> to vector<1x8x128xf32>
    %557 = vector.shape_cast %556 : vector<1x8x128xf32> to vector<8x128xf32>
    %558 = vector.broadcast %30 : f32 to vector<8x128xf32>
    %559 = arith.mulf %558, %557 : vector<8x128xf32>
    %560 = arith.addf %555, %559 : vector<8x128xf32>
    %561 = vector.extract_strided_slice %229 {offsets = [2, 0, 0], sizes = [1, 8, 128], strides = [1, 1, 1]} : vector<4x8x128xf32> to vector<1x8x128xf32>
    %562 = vector.shape_cast %561 : vector<1x8x128xf32> to vector<8x128xf32>
    %563 = vector.broadcast %46 : f32 to vector<8x128xf32>
    %564 = arith.mulf %563, %562 : vector<8x128xf32>
    %565 = arith.addf %560, %564 : vector<8x128xf32>
    %566 = vector.extract_strided_slice %229 {offsets = [3, 0, 0], sizes = [1, 8, 128], strides = [1, 1, 1]} : vector<4x8x128xf32> to vector<1x8x128xf32>
    %567 = vector.shape_cast %566 : vector<1x8x128xf32> to vector<8x128xf32>
    %568 = vector.broadcast %62 : f32 to vector<8x128xf32>
    %569 = arith.mulf %568, %567 : vector<8x128xf32>
    %570 = arith.addf %565, %569 : vector<8x128xf32>
    %571 = vector.broadcast %78 : f32 to vector<8x128xf32>
    %572 = arith.addf %570, %571 : vector<8x128xf32>
    %cst_417 = arith.constant 0.000000e+00 : f32
    %573 = vector.broadcast %cst_417 : f32 to vector<8x128xf32>
    %574 = arith.maximumf %572, %573 : vector<8x128xf32>
    %575 = vector.extract_strided_slice %229 {offsets = [0, 0, 0], sizes = [1, 8, 128], strides = [1, 1, 1]} : vector<4x8x128xf32> to vector<1x8x128xf32>
    %576 = vector.shape_cast %575 : vector<1x8x128xf32> to vector<8x128xf32>
    %577 = vector.broadcast %15 : f32 to vector<8x128xf32>
    %578 = arith.mulf %577, %576 : vector<8x128xf32>
    %579 = vector.extract_strided_slice %229 {offsets = [1, 0, 0], sizes = [1, 8, 128], strides = [1, 1, 1]} : vector<4x8x128xf32> to vector<1x8x128xf32>
    %580 = vector.shape_cast %579 : vector<1x8x128xf32> to vector<8x128xf32>
    %581 = vector.broadcast %31 : f32 to vector<8x128xf32>
    %582 = arith.mulf %581, %580 : vector<8x128xf32>
    %583 = arith.addf %578, %582 : vector<8x128xf32>
    %584 = vector.extract_strided_slice %229 {offsets = [2, 0, 0], sizes = [1, 8, 128], strides = [1, 1, 1]} : vector<4x8x128xf32> to vector<1x8x128xf32>
    %585 = vector.shape_cast %584 : vector<1x8x128xf32> to vector<8x128xf32>
    %586 = vector.broadcast %47 : f32 to vector<8x128xf32>
    %587 = arith.mulf %586, %585 : vector<8x128xf32>
    %588 = arith.addf %583, %587 : vector<8x128xf32>
    %589 = vector.extract_strided_slice %229 {offsets = [3, 0, 0], sizes = [1, 8, 128], strides = [1, 1, 1]} : vector<4x8x128xf32> to vector<1x8x128xf32>
    %590 = vector.shape_cast %589 : vector<1x8x128xf32> to vector<8x128xf32>
    %591 = vector.broadcast %63 : f32 to vector<8x128xf32>
    %592 = arith.mulf %591, %590 : vector<8x128xf32>
    %593 = arith.addf %588, %592 : vector<8x128xf32>
    %594 = vector.broadcast %79 : f32 to vector<8x128xf32>
    %595 = arith.addf %593, %594 : vector<8x128xf32>
    %cst_418 = arith.constant 0.000000e+00 : f32
    %596 = vector.broadcast %cst_418 : f32 to vector<8x128xf32>
    %597 = arith.maximumf %595, %596 : vector<8x128xf32>
    %598 = vector.broadcast %80 : f32 to vector<8x128xf32>
    %599 = arith.mulf %598, %252 : vector<8x128xf32>
    %600 = vector.broadcast %88 : f32 to vector<8x128xf32>
    %601 = arith.mulf %600, %275 : vector<8x128xf32>
    %602 = arith.addf %599, %601 : vector<8x128xf32>
    %603 = vector.broadcast %96 : f32 to vector<8x128xf32>
    %604 = arith.mulf %603, %298 : vector<8x128xf32>
    %605 = arith.addf %602, %604 : vector<8x128xf32>
    %606 = vector.broadcast %104 : f32 to vector<8x128xf32>
    %607 = arith.mulf %606, %321 : vector<8x128xf32>
    %608 = arith.addf %605, %607 : vector<8x128xf32>
    %609 = vector.broadcast %112 : f32 to vector<8x128xf32>
    %610 = arith.mulf %609, %344 : vector<8x128xf32>
    %611 = arith.addf %608, %610 : vector<8x128xf32>
    %612 = vector.broadcast %120 : f32 to vector<8x128xf32>
    %613 = arith.mulf %612, %367 : vector<8x128xf32>
    %614 = arith.addf %611, %613 : vector<8x128xf32>
    %615 = vector.broadcast %128 : f32 to vector<8x128xf32>
    %616 = arith.mulf %615, %390 : vector<8x128xf32>
    %617 = arith.addf %614, %616 : vector<8x128xf32>
    %618 = vector.broadcast %136 : f32 to vector<8x128xf32>
    %619 = arith.mulf %618, %413 : vector<8x128xf32>
    %620 = arith.addf %617, %619 : vector<8x128xf32>
    %621 = vector.broadcast %144 : f32 to vector<8x128xf32>
    %622 = arith.mulf %621, %436 : vector<8x128xf32>
    %623 = arith.addf %620, %622 : vector<8x128xf32>
    %624 = vector.broadcast %152 : f32 to vector<8x128xf32>
    %625 = arith.mulf %624, %459 : vector<8x128xf32>
    %626 = arith.addf %623, %625 : vector<8x128xf32>
    %627 = vector.broadcast %160 : f32 to vector<8x128xf32>
    %628 = arith.mulf %627, %482 : vector<8x128xf32>
    %629 = arith.addf %626, %628 : vector<8x128xf32>
    %630 = vector.broadcast %168 : f32 to vector<8x128xf32>
    %631 = arith.mulf %630, %505 : vector<8x128xf32>
    %632 = arith.addf %629, %631 : vector<8x128xf32>
    %633 = vector.broadcast %176 : f32 to vector<8x128xf32>
    %634 = arith.mulf %633, %528 : vector<8x128xf32>
    %635 = arith.addf %632, %634 : vector<8x128xf32>
    %636 = vector.broadcast %184 : f32 to vector<8x128xf32>
    %637 = arith.mulf %636, %551 : vector<8x128xf32>
    %638 = arith.addf %635, %637 : vector<8x128xf32>
    %639 = vector.broadcast %192 : f32 to vector<8x128xf32>
    %640 = arith.mulf %639, %574 : vector<8x128xf32>
    %641 = arith.addf %638, %640 : vector<8x128xf32>
    %642 = vector.broadcast %200 : f32 to vector<8x128xf32>
    %643 = arith.mulf %642, %597 : vector<8x128xf32>
    %644 = arith.addf %641, %643 : vector<8x128xf32>
    %645 = vector.broadcast %208 : f32 to vector<8x128xf32>
    %646 = arith.addf %644, %645 : vector<8x128xf32>
    %cst_419 = arith.constant 0.000000e+00 : f32
    %647 = vector.broadcast %cst_419 : f32 to vector<8x128xf32>
    %648 = arith.maximumf %646, %647 : vector<8x128xf32>
    %649 = vector.broadcast %81 : f32 to vector<8x128xf32>
    %650 = arith.mulf %649, %252 : vector<8x128xf32>
    %651 = vector.broadcast %89 : f32 to vector<8x128xf32>
    %652 = arith.mulf %651, %275 : vector<8x128xf32>
    %653 = arith.addf %650, %652 : vector<8x128xf32>
    %654 = vector.broadcast %97 : f32 to vector<8x128xf32>
    %655 = arith.mulf %654, %298 : vector<8x128xf32>
    %656 = arith.addf %653, %655 : vector<8x128xf32>
    %657 = vector.broadcast %105 : f32 to vector<8x128xf32>
    %658 = arith.mulf %657, %321 : vector<8x128xf32>
    %659 = arith.addf %656, %658 : vector<8x128xf32>
    %660 = vector.broadcast %113 : f32 to vector<8x128xf32>
    %661 = arith.mulf %660, %344 : vector<8x128xf32>
    %662 = arith.addf %659, %661 : vector<8x128xf32>
    %663 = vector.broadcast %121 : f32 to vector<8x128xf32>
    %664 = arith.mulf %663, %367 : vector<8x128xf32>
    %665 = arith.addf %662, %664 : vector<8x128xf32>
    %666 = vector.broadcast %129 : f32 to vector<8x128xf32>
    %667 = arith.mulf %666, %390 : vector<8x128xf32>
    %668 = arith.addf %665, %667 : vector<8x128xf32>
    %669 = vector.broadcast %137 : f32 to vector<8x128xf32>
    %670 = arith.mulf %669, %413 : vector<8x128xf32>
    %671 = arith.addf %668, %670 : vector<8x128xf32>
    %672 = vector.broadcast %145 : f32 to vector<8x128xf32>
    %673 = arith.mulf %672, %436 : vector<8x128xf32>
    %674 = arith.addf %671, %673 : vector<8x128xf32>
    %675 = vector.broadcast %153 : f32 to vector<8x128xf32>
    %676 = arith.mulf %675, %459 : vector<8x128xf32>
    %677 = arith.addf %674, %676 : vector<8x128xf32>
    %678 = vector.broadcast %161 : f32 to vector<8x128xf32>
    %679 = arith.mulf %678, %482 : vector<8x128xf32>
    %680 = arith.addf %677, %679 : vector<8x128xf32>
    %681 = vector.broadcast %169 : f32 to vector<8x128xf32>
    %682 = arith.mulf %681, %505 : vector<8x128xf32>
    %683 = arith.addf %680, %682 : vector<8x128xf32>
    %684 = vector.broadcast %177 : f32 to vector<8x128xf32>
    %685 = arith.mulf %684, %528 : vector<8x128xf32>
    %686 = arith.addf %683, %685 : vector<8x128xf32>
    %687 = vector.broadcast %185 : f32 to vector<8x128xf32>
    %688 = arith.mulf %687, %551 : vector<8x128xf32>
    %689 = arith.addf %686, %688 : vector<8x128xf32>
    %690 = vector.broadcast %193 : f32 to vector<8x128xf32>
    %691 = arith.mulf %690, %574 : vector<8x128xf32>
    %692 = arith.addf %689, %691 : vector<8x128xf32>
    %693 = vector.broadcast %201 : f32 to vector<8x128xf32>
    %694 = arith.mulf %693, %597 : vector<8x128xf32>
    %695 = arith.addf %692, %694 : vector<8x128xf32>
    %696 = vector.broadcast %209 : f32 to vector<8x128xf32>
    %697 = arith.addf %695, %696 : vector<8x128xf32>
    %cst_420 = arith.constant 0.000000e+00 : f32
    %698 = vector.broadcast %cst_420 : f32 to vector<8x128xf32>
    %699 = arith.maximumf %697, %698 : vector<8x128xf32>
    %700 = vector.broadcast %82 : f32 to vector<8x128xf32>
    %701 = arith.mulf %700, %252 : vector<8x128xf32>
    %702 = vector.broadcast %90 : f32 to vector<8x128xf32>
    %703 = arith.mulf %702, %275 : vector<8x128xf32>
    %704 = arith.addf %701, %703 : vector<8x128xf32>
    %705 = vector.broadcast %98 : f32 to vector<8x128xf32>
    %706 = arith.mulf %705, %298 : vector<8x128xf32>
    %707 = arith.addf %704, %706 : vector<8x128xf32>
    %708 = vector.broadcast %106 : f32 to vector<8x128xf32>
    %709 = arith.mulf %708, %321 : vector<8x128xf32>
    %710 = arith.addf %707, %709 : vector<8x128xf32>
    %711 = vector.broadcast %114 : f32 to vector<8x128xf32>
    %712 = arith.mulf %711, %344 : vector<8x128xf32>
    %713 = arith.addf %710, %712 : vector<8x128xf32>
    %714 = vector.broadcast %122 : f32 to vector<8x128xf32>
    %715 = arith.mulf %714, %367 : vector<8x128xf32>
    %716 = arith.addf %713, %715 : vector<8x128xf32>
    %717 = vector.broadcast %130 : f32 to vector<8x128xf32>
    %718 = arith.mulf %717, %390 : vector<8x128xf32>
    %719 = arith.addf %716, %718 : vector<8x128xf32>
    %720 = vector.broadcast %138 : f32 to vector<8x128xf32>
    %721 = arith.mulf %720, %413 : vector<8x128xf32>
    %722 = arith.addf %719, %721 : vector<8x128xf32>
    %723 = vector.broadcast %146 : f32 to vector<8x128xf32>
    %724 = arith.mulf %723, %436 : vector<8x128xf32>
    %725 = arith.addf %722, %724 : vector<8x128xf32>
    %726 = vector.broadcast %154 : f32 to vector<8x128xf32>
    %727 = arith.mulf %726, %459 : vector<8x128xf32>
    %728 = arith.addf %725, %727 : vector<8x128xf32>
    %729 = vector.broadcast %162 : f32 to vector<8x128xf32>
    %730 = arith.mulf %729, %482 : vector<8x128xf32>
    %731 = arith.addf %728, %730 : vector<8x128xf32>
    %732 = vector.broadcast %170 : f32 to vector<8x128xf32>
    %733 = arith.mulf %732, %505 : vector<8x128xf32>
    %734 = arith.addf %731, %733 : vector<8x128xf32>
    %735 = vector.broadcast %178 : f32 to vector<8x128xf32>
    %736 = arith.mulf %735, %528 : vector<8x128xf32>
    %737 = arith.addf %734, %736 : vector<8x128xf32>
    %738 = vector.broadcast %186 : f32 to vector<8x128xf32>
    %739 = arith.mulf %738, %551 : vector<8x128xf32>
    %740 = arith.addf %737, %739 : vector<8x128xf32>
    %741 = vector.broadcast %194 : f32 to vector<8x128xf32>
    %742 = arith.mulf %741, %574 : vector<8x128xf32>
    %743 = arith.addf %740, %742 : vector<8x128xf32>
    %744 = vector.broadcast %202 : f32 to vector<8x128xf32>
    %745 = arith.mulf %744, %597 : vector<8x128xf32>
    %746 = arith.addf %743, %745 : vector<8x128xf32>
    %747 = vector.broadcast %210 : f32 to vector<8x128xf32>
    %748 = arith.addf %746, %747 : vector<8x128xf32>
    %cst_421 = arith.constant 0.000000e+00 : f32
    %749 = vector.broadcast %cst_421 : f32 to vector<8x128xf32>
    %750 = arith.maximumf %748, %749 : vector<8x128xf32>
    %751 = vector.broadcast %83 : f32 to vector<8x128xf32>
    %752 = arith.mulf %751, %252 : vector<8x128xf32>
    %753 = vector.broadcast %91 : f32 to vector<8x128xf32>
    %754 = arith.mulf %753, %275 : vector<8x128xf32>
    %755 = arith.addf %752, %754 : vector<8x128xf32>
    %756 = vector.broadcast %99 : f32 to vector<8x128xf32>
    %757 = arith.mulf %756, %298 : vector<8x128xf32>
    %758 = arith.addf %755, %757 : vector<8x128xf32>
    %759 = vector.broadcast %107 : f32 to vector<8x128xf32>
    %760 = arith.mulf %759, %321 : vector<8x128xf32>
    %761 = arith.addf %758, %760 : vector<8x128xf32>
    %762 = vector.broadcast %115 : f32 to vector<8x128xf32>
    %763 = arith.mulf %762, %344 : vector<8x128xf32>
    %764 = arith.addf %761, %763 : vector<8x128xf32>
    %765 = vector.broadcast %123 : f32 to vector<8x128xf32>
    %766 = arith.mulf %765, %367 : vector<8x128xf32>
    %767 = arith.addf %764, %766 : vector<8x128xf32>
    %768 = vector.broadcast %131 : f32 to vector<8x128xf32>
    %769 = arith.mulf %768, %390 : vector<8x128xf32>
    %770 = arith.addf %767, %769 : vector<8x128xf32>
    %771 = vector.broadcast %139 : f32 to vector<8x128xf32>
    %772 = arith.mulf %771, %413 : vector<8x128xf32>
    %773 = arith.addf %770, %772 : vector<8x128xf32>
    %774 = vector.broadcast %147 : f32 to vector<8x128xf32>
    %775 = arith.mulf %774, %436 : vector<8x128xf32>
    %776 = arith.addf %773, %775 : vector<8x128xf32>
    %777 = vector.broadcast %155 : f32 to vector<8x128xf32>
    %778 = arith.mulf %777, %459 : vector<8x128xf32>
    %779 = arith.addf %776, %778 : vector<8x128xf32>
    %780 = vector.broadcast %163 : f32 to vector<8x128xf32>
    %781 = arith.mulf %780, %482 : vector<8x128xf32>
    %782 = arith.addf %779, %781 : vector<8x128xf32>
    %783 = vector.broadcast %171 : f32 to vector<8x128xf32>
    %784 = arith.mulf %783, %505 : vector<8x128xf32>
    %785 = arith.addf %782, %784 : vector<8x128xf32>
    %786 = vector.broadcast %179 : f32 to vector<8x128xf32>
    %787 = arith.mulf %786, %528 : vector<8x128xf32>
    %788 = arith.addf %785, %787 : vector<8x128xf32>
    %789 = vector.broadcast %187 : f32 to vector<8x128xf32>
    %790 = arith.mulf %789, %551 : vector<8x128xf32>
    %791 = arith.addf %788, %790 : vector<8x128xf32>
    %792 = vector.broadcast %195 : f32 to vector<8x128xf32>
    %793 = arith.mulf %792, %574 : vector<8x128xf32>
    %794 = arith.addf %791, %793 : vector<8x128xf32>
    %795 = vector.broadcast %203 : f32 to vector<8x128xf32>
    %796 = arith.mulf %795, %597 : vector<8x128xf32>
    %797 = arith.addf %794, %796 : vector<8x128xf32>
    %798 = vector.broadcast %211 : f32 to vector<8x128xf32>
    %799 = arith.addf %797, %798 : vector<8x128xf32>
    %cst_422 = arith.constant 0.000000e+00 : f32
    %800 = vector.broadcast %cst_422 : f32 to vector<8x128xf32>
    %801 = arith.maximumf %799, %800 : vector<8x128xf32>
    %802 = vector.broadcast %84 : f32 to vector<8x128xf32>
    %803 = arith.mulf %802, %252 : vector<8x128xf32>
    %804 = vector.broadcast %92 : f32 to vector<8x128xf32>
    %805 = arith.mulf %804, %275 : vector<8x128xf32>
    %806 = arith.addf %803, %805 : vector<8x128xf32>
    %807 = vector.broadcast %100 : f32 to vector<8x128xf32>
    %808 = arith.mulf %807, %298 : vector<8x128xf32>
    %809 = arith.addf %806, %808 : vector<8x128xf32>
    %810 = vector.broadcast %108 : f32 to vector<8x128xf32>
    %811 = arith.mulf %810, %321 : vector<8x128xf32>
    %812 = arith.addf %809, %811 : vector<8x128xf32>
    %813 = vector.broadcast %116 : f32 to vector<8x128xf32>
    %814 = arith.mulf %813, %344 : vector<8x128xf32>
    %815 = arith.addf %812, %814 : vector<8x128xf32>
    %816 = vector.broadcast %124 : f32 to vector<8x128xf32>
    %817 = arith.mulf %816, %367 : vector<8x128xf32>
    %818 = arith.addf %815, %817 : vector<8x128xf32>
    %819 = vector.broadcast %132 : f32 to vector<8x128xf32>
    %820 = arith.mulf %819, %390 : vector<8x128xf32>
    %821 = arith.addf %818, %820 : vector<8x128xf32>
    %822 = vector.broadcast %140 : f32 to vector<8x128xf32>
    %823 = arith.mulf %822, %413 : vector<8x128xf32>
    %824 = arith.addf %821, %823 : vector<8x128xf32>
    %825 = vector.broadcast %148 : f32 to vector<8x128xf32>
    %826 = arith.mulf %825, %436 : vector<8x128xf32>
    %827 = arith.addf %824, %826 : vector<8x128xf32>
    %828 = vector.broadcast %156 : f32 to vector<8x128xf32>
    %829 = arith.mulf %828, %459 : vector<8x128xf32>
    %830 = arith.addf %827, %829 : vector<8x128xf32>
    %831 = vector.broadcast %164 : f32 to vector<8x128xf32>
    %832 = arith.mulf %831, %482 : vector<8x128xf32>
    %833 = arith.addf %830, %832 : vector<8x128xf32>
    %834 = vector.broadcast %172 : f32 to vector<8x128xf32>
    %835 = arith.mulf %834, %505 : vector<8x128xf32>
    %836 = arith.addf %833, %835 : vector<8x128xf32>
    %837 = vector.broadcast %180 : f32 to vector<8x128xf32>
    %838 = arith.mulf %837, %528 : vector<8x128xf32>
    %839 = arith.addf %836, %838 : vector<8x128xf32>
    %840 = vector.broadcast %188 : f32 to vector<8x128xf32>
    %841 = arith.mulf %840, %551 : vector<8x128xf32>
    %842 = arith.addf %839, %841 : vector<8x128xf32>
    %843 = vector.broadcast %196 : f32 to vector<8x128xf32>
    %844 = arith.mulf %843, %574 : vector<8x128xf32>
    %845 = arith.addf %842, %844 : vector<8x128xf32>
    %846 = vector.broadcast %204 : f32 to vector<8x128xf32>
    %847 = arith.mulf %846, %597 : vector<8x128xf32>
    %848 = arith.addf %845, %847 : vector<8x128xf32>
    %849 = vector.broadcast %212 : f32 to vector<8x128xf32>
    %850 = arith.addf %848, %849 : vector<8x128xf32>
    %cst_423 = arith.constant 0.000000e+00 : f32
    %851 = vector.broadcast %cst_423 : f32 to vector<8x128xf32>
    %852 = arith.maximumf %850, %851 : vector<8x128xf32>
    %853 = vector.broadcast %85 : f32 to vector<8x128xf32>
    %854 = arith.mulf %853, %252 : vector<8x128xf32>
    %855 = vector.broadcast %93 : f32 to vector<8x128xf32>
    %856 = arith.mulf %855, %275 : vector<8x128xf32>
    %857 = arith.addf %854, %856 : vector<8x128xf32>
    %858 = vector.broadcast %101 : f32 to vector<8x128xf32>
    %859 = arith.mulf %858, %298 : vector<8x128xf32>
    %860 = arith.addf %857, %859 : vector<8x128xf32>
    %861 = vector.broadcast %109 : f32 to vector<8x128xf32>
    %862 = arith.mulf %861, %321 : vector<8x128xf32>
    %863 = arith.addf %860, %862 : vector<8x128xf32>
    %864 = vector.broadcast %117 : f32 to vector<8x128xf32>
    %865 = arith.mulf %864, %344 : vector<8x128xf32>
    %866 = arith.addf %863, %865 : vector<8x128xf32>
    %867 = vector.broadcast %125 : f32 to vector<8x128xf32>
    %868 = arith.mulf %867, %367 : vector<8x128xf32>
    %869 = arith.addf %866, %868 : vector<8x128xf32>
    %870 = vector.broadcast %133 : f32 to vector<8x128xf32>
    %871 = arith.mulf %870, %390 : vector<8x128xf32>
    %872 = arith.addf %869, %871 : vector<8x128xf32>
    %873 = vector.broadcast %141 : f32 to vector<8x128xf32>
    %874 = arith.mulf %873, %413 : vector<8x128xf32>
    %875 = arith.addf %872, %874 : vector<8x128xf32>
    %876 = vector.broadcast %149 : f32 to vector<8x128xf32>
    %877 = arith.mulf %876, %436 : vector<8x128xf32>
    %878 = arith.addf %875, %877 : vector<8x128xf32>
    %879 = vector.broadcast %157 : f32 to vector<8x128xf32>
    %880 = arith.mulf %879, %459 : vector<8x128xf32>
    %881 = arith.addf %878, %880 : vector<8x128xf32>
    %882 = vector.broadcast %165 : f32 to vector<8x128xf32>
    %883 = arith.mulf %882, %482 : vector<8x128xf32>
    %884 = arith.addf %881, %883 : vector<8x128xf32>
    %885 = vector.broadcast %173 : f32 to vector<8x128xf32>
    %886 = arith.mulf %885, %505 : vector<8x128xf32>
    %887 = arith.addf %884, %886 : vector<8x128xf32>
    %888 = vector.broadcast %181 : f32 to vector<8x128xf32>
    %889 = arith.mulf %888, %528 : vector<8x128xf32>
    %890 = arith.addf %887, %889 : vector<8x128xf32>
    %891 = vector.broadcast %189 : f32 to vector<8x128xf32>
    %892 = arith.mulf %891, %551 : vector<8x128xf32>
    %893 = arith.addf %890, %892 : vector<8x128xf32>
    %894 = vector.broadcast %197 : f32 to vector<8x128xf32>
    %895 = arith.mulf %894, %574 : vector<8x128xf32>
    %896 = arith.addf %893, %895 : vector<8x128xf32>
    %897 = vector.broadcast %205 : f32 to vector<8x128xf32>
    %898 = arith.mulf %897, %597 : vector<8x128xf32>
    %899 = arith.addf %896, %898 : vector<8x128xf32>
    %900 = vector.broadcast %213 : f32 to vector<8x128xf32>
    %901 = arith.addf %899, %900 : vector<8x128xf32>
    %cst_424 = arith.constant 0.000000e+00 : f32
    %902 = vector.broadcast %cst_424 : f32 to vector<8x128xf32>
    %903 = arith.maximumf %901, %902 : vector<8x128xf32>
    %904 = vector.broadcast %86 : f32 to vector<8x128xf32>
    %905 = arith.mulf %904, %252 : vector<8x128xf32>
    %906 = vector.broadcast %94 : f32 to vector<8x128xf32>
    %907 = arith.mulf %906, %275 : vector<8x128xf32>
    %908 = arith.addf %905, %907 : vector<8x128xf32>
    %909 = vector.broadcast %102 : f32 to vector<8x128xf32>
    %910 = arith.mulf %909, %298 : vector<8x128xf32>
    %911 = arith.addf %908, %910 : vector<8x128xf32>
    %912 = vector.broadcast %110 : f32 to vector<8x128xf32>
    %913 = arith.mulf %912, %321 : vector<8x128xf32>
    %914 = arith.addf %911, %913 : vector<8x128xf32>
    %915 = vector.broadcast %118 : f32 to vector<8x128xf32>
    %916 = arith.mulf %915, %344 : vector<8x128xf32>
    %917 = arith.addf %914, %916 : vector<8x128xf32>
    %918 = vector.broadcast %126 : f32 to vector<8x128xf32>
    %919 = arith.mulf %918, %367 : vector<8x128xf32>
    %920 = arith.addf %917, %919 : vector<8x128xf32>
    %921 = vector.broadcast %134 : f32 to vector<8x128xf32>
    %922 = arith.mulf %921, %390 : vector<8x128xf32>
    %923 = arith.addf %920, %922 : vector<8x128xf32>
    %924 = vector.broadcast %142 : f32 to vector<8x128xf32>
    %925 = arith.mulf %924, %413 : vector<8x128xf32>
    %926 = arith.addf %923, %925 : vector<8x128xf32>
    %927 = vector.broadcast %150 : f32 to vector<8x128xf32>
    %928 = arith.mulf %927, %436 : vector<8x128xf32>
    %929 = arith.addf %926, %928 : vector<8x128xf32>
    %930 = vector.broadcast %158 : f32 to vector<8x128xf32>
    %931 = arith.mulf %930, %459 : vector<8x128xf32>
    %932 = arith.addf %929, %931 : vector<8x128xf32>
    %933 = vector.broadcast %166 : f32 to vector<8x128xf32>
    %934 = arith.mulf %933, %482 : vector<8x128xf32>
    %935 = arith.addf %932, %934 : vector<8x128xf32>
    %936 = vector.broadcast %174 : f32 to vector<8x128xf32>
    %937 = arith.mulf %936, %505 : vector<8x128xf32>
    %938 = arith.addf %935, %937 : vector<8x128xf32>
    %939 = vector.broadcast %182 : f32 to vector<8x128xf32>
    %940 = arith.mulf %939, %528 : vector<8x128xf32>
    %941 = arith.addf %938, %940 : vector<8x128xf32>
    %942 = vector.broadcast %190 : f32 to vector<8x128xf32>
    %943 = arith.mulf %942, %551 : vector<8x128xf32>
    %944 = arith.addf %941, %943 : vector<8x128xf32>
    %945 = vector.broadcast %198 : f32 to vector<8x128xf32>
    %946 = arith.mulf %945, %574 : vector<8x128xf32>
    %947 = arith.addf %944, %946 : vector<8x128xf32>
    %948 = vector.broadcast %206 : f32 to vector<8x128xf32>
    %949 = arith.mulf %948, %597 : vector<8x128xf32>
    %950 = arith.addf %947, %949 : vector<8x128xf32>
    %951 = vector.broadcast %214 : f32 to vector<8x128xf32>
    %952 = arith.addf %950, %951 : vector<8x128xf32>
    %cst_425 = arith.constant 0.000000e+00 : f32
    %953 = vector.broadcast %cst_425 : f32 to vector<8x128xf32>
    %954 = arith.maximumf %952, %953 : vector<8x128xf32>
    %955 = vector.broadcast %87 : f32 to vector<8x128xf32>
    %956 = arith.mulf %955, %252 : vector<8x128xf32>
    %957 = vector.broadcast %95 : f32 to vector<8x128xf32>
    %958 = arith.mulf %957, %275 : vector<8x128xf32>
    %959 = arith.addf %956, %958 : vector<8x128xf32>
    %960 = vector.broadcast %103 : f32 to vector<8x128xf32>
    %961 = arith.mulf %960, %298 : vector<8x128xf32>
    %962 = arith.addf %959, %961 : vector<8x128xf32>
    %963 = vector.broadcast %111 : f32 to vector<8x128xf32>
    %964 = arith.mulf %963, %321 : vector<8x128xf32>
    %965 = arith.addf %962, %964 : vector<8x128xf32>
    %966 = vector.broadcast %119 : f32 to vector<8x128xf32>
    %967 = arith.mulf %966, %344 : vector<8x128xf32>
    %968 = arith.addf %965, %967 : vector<8x128xf32>
    %969 = vector.broadcast %127 : f32 to vector<8x128xf32>
    %970 = arith.mulf %969, %367 : vector<8x128xf32>
    %971 = arith.addf %968, %970 : vector<8x128xf32>
    %972 = vector.broadcast %135 : f32 to vector<8x128xf32>
    %973 = arith.mulf %972, %390 : vector<8x128xf32>
    %974 = arith.addf %971, %973 : vector<8x128xf32>
    %975 = vector.broadcast %143 : f32 to vector<8x128xf32>
    %976 = arith.mulf %975, %413 : vector<8x128xf32>
    %977 = arith.addf %974, %976 : vector<8x128xf32>
    %978 = vector.broadcast %151 : f32 to vector<8x128xf32>
    %979 = arith.mulf %978, %436 : vector<8x128xf32>
    %980 = arith.addf %977, %979 : vector<8x128xf32>
    %981 = vector.broadcast %159 : f32 to vector<8x128xf32>
    %982 = arith.mulf %981, %459 : vector<8x128xf32>
    %983 = arith.addf %980, %982 : vector<8x128xf32>
    %984 = vector.broadcast %167 : f32 to vector<8x128xf32>
    %985 = arith.mulf %984, %482 : vector<8x128xf32>
    %986 = arith.addf %983, %985 : vector<8x128xf32>
    %987 = vector.broadcast %175 : f32 to vector<8x128xf32>
    %988 = arith.mulf %987, %505 : vector<8x128xf32>
    %989 = arith.addf %986, %988 : vector<8x128xf32>
    %990 = vector.broadcast %183 : f32 to vector<8x128xf32>
    %991 = arith.mulf %990, %528 : vector<8x128xf32>
    %992 = arith.addf %989, %991 : vector<8x128xf32>
    %993 = vector.broadcast %191 : f32 to vector<8x128xf32>
    %994 = arith.mulf %993, %551 : vector<8x128xf32>
    %995 = arith.addf %992, %994 : vector<8x128xf32>
    %996 = vector.broadcast %199 : f32 to vector<8x128xf32>
    %997 = arith.mulf %996, %574 : vector<8x128xf32>
    %998 = arith.addf %995, %997 : vector<8x128xf32>
    %999 = vector.broadcast %207 : f32 to vector<8x128xf32>
    %1000 = arith.mulf %999, %597 : vector<8x128xf32>
    %1001 = arith.addf %998, %1000 : vector<8x128xf32>
    %1002 = vector.broadcast %215 : f32 to vector<8x128xf32>
    %1003 = arith.addf %1001, %1002 : vector<8x128xf32>
    %cst_426 = arith.constant 0.000000e+00 : f32
    %1004 = vector.broadcast %cst_426 : f32 to vector<8x128xf32>
    %1005 = arith.maximumf %1003, %1004 : vector<8x128xf32>
    %1006 = vector.broadcast %216 : f32 to vector<8x128xf32>
    %1007 = arith.mulf %1006, %648 : vector<8x128xf32>
    %1008 = vector.broadcast %217 : f32 to vector<8x128xf32>
    %1009 = arith.mulf %1008, %699 : vector<8x128xf32>
    %1010 = arith.addf %1007, %1009 : vector<8x128xf32>
    %1011 = vector.broadcast %218 : f32 to vector<8x128xf32>
    %1012 = arith.mulf %1011, %750 : vector<8x128xf32>
    %1013 = arith.addf %1010, %1012 : vector<8x128xf32>
    %1014 = vector.broadcast %219 : f32 to vector<8x128xf32>
    %1015 = arith.mulf %1014, %801 : vector<8x128xf32>
    %1016 = arith.addf %1013, %1015 : vector<8x128xf32>
    %1017 = vector.broadcast %220 : f32 to vector<8x128xf32>
    %1018 = arith.mulf %1017, %852 : vector<8x128xf32>
    %1019 = arith.addf %1016, %1018 : vector<8x128xf32>
    %1020 = vector.broadcast %221 : f32 to vector<8x128xf32>
    %1021 = arith.mulf %1020, %903 : vector<8x128xf32>
    %1022 = arith.addf %1019, %1021 : vector<8x128xf32>
    %1023 = vector.broadcast %222 : f32 to vector<8x128xf32>
    %1024 = arith.mulf %1023, %954 : vector<8x128xf32>
    %1025 = arith.addf %1022, %1024 : vector<8x128xf32>
    %1026 = vector.broadcast %223 : f32 to vector<8x128xf32>
    %1027 = arith.mulf %1026, %1005 : vector<8x128xf32>
    %1028 = arith.addf %1025, %1027 : vector<8x128xf32>
    %1029 = vector.broadcast %224 : f32 to vector<8x128xf32>
    %1030 = arith.addf %1028, %1029 : vector<8x128xf32>
    %c0_427 = arith.constant 0 : index
    %1031 = arith.index_cast %226 : i32 to index
    %c0_428 = arith.constant 0 : index
    %1032 = vector.load %arg8[%c0_427, %1031, %c0_428] : memref<1x16x128xf32, #tpu.memory_space<vmem>>, vector<1x8x128xf32>
    %1033 = vector.shape_cast %1032 : vector<1x8x128xf32> to vector<8x128xf32>
    %1034 = vector.shape_cast %1030 : vector<8x128xf32> to vector<1x8x128xf32>
    tpu.vector_store %arg8[%c0_427, %1031, %c0_428], %1034 {strides = array<i32>} : memref<1x16x128xf32, #tpu.memory_space<vmem>>, vector<1x8x128xf32>,
    %c1_i32 = arith.constant 1 : i32
    %c8_i32_429 = arith.constant 8 : i32
    %1035 = arith.muli %c1_i32, %c8_i32_429 : i32
    %1036 = tpu.assume_multiple %1035, 8 : i32
    %c0_430 = arith.constant 0 : index
    %c0_431 = arith.constant 0 : index
    %1037 = arith.index_cast %1036 : i32 to index
    %c0_432 = arith.constant 0 : index
    %1038 = vector.load %arg2[%c0_430, %c0_431, %1037, %c0_432] : memref<1x4x16x128xf32, #tpu.memory_space<vmem>>, vector<1x4x8x128xf32>
    %1039 = vector.shape_cast %1038 : vector<1x4x8x128xf32> to vector<4x8x128xf32>
    %1040 = vector.extract_strided_slice %1039 {offsets = [0, 0, 0], sizes = [1, 8, 128], strides = [1, 1, 1]} : vector<4x8x128xf32> to vector<1x8x128xf32>
    %1041 = vector.shape_cast %1040 : vector<1x8x128xf32> to vector<8x128xf32>
    %1042 = vector.broadcast %0 : f32 to vector<8x128xf32>
    %1043 = arith.mulf %1042, %1041 : vector<8x128xf32>
    %1044 = vector.extract_strided_slice %1039 {offsets = [1, 0, 0], sizes = [1, 8, 128], strides = [1, 1, 1]} : vector<4x8x128xf32> to vector<1x8x128xf32>
    %1045 = vector.shape_cast %1044 : vector<1x8x128xf32> to vector<8x128xf32>
    %1046 = vector.broadcast %16 : f32 to vector<8x128xf32>
    %1047 = arith.mulf %1046, %1045 : vector<8x128xf32>
    %1048 = arith.addf %1043, %1047 : vector<8x128xf32>
    %1049 = vector.extract_strided_slice %1039 {offsets = [2, 0, 0], sizes = [1, 8, 128], strides = [1, 1, 1]} : vector<4x8x128xf32> to vector<1x8x128xf32>
    %1050 = vector.shape_cast %1049 : vector<1x8x128xf32> to vector<8x128xf32>
    %1051 = vector.broadcast %32 : f32 to vector<8x128xf32>
    %1052 = arith.mulf %1051, %1050 : vector<8x128xf32>
    %1053 = arith.addf %1048, %1052 : vector<8x128xf32>
    %1054 = vector.extract_strided_slice %1039 {offsets = [3, 0, 0], sizes = [1, 8, 128], strides = [1, 1, 1]} : vector<4x8x128xf32> to vector<1x8x128xf32>
    %1055 = vector.shape_cast %1054 : vector<1x8x128xf32> to vector<8x128xf32>
    %1056 = vector.broadcast %48 : f32 to vector<8x128xf32>
    %1057 = arith.mulf %1056, %1055 : vector<8x128xf32>
    %1058 = arith.addf %1053, %1057 : vector<8x128xf32>
    %1059 = vector.broadcast %64 : f32 to vector<8x128xf32>
    %1060 = arith.addf %1058, %1059 : vector<8x128xf32>
    %cst_433 = arith.constant 0.000000e+00 : f32
    %1061 = vector.broadcast %cst_433 : f32 to vector<8x128xf32>
    %1062 = arith.maximumf %1060, %1061 : vector<8x128xf32>
    %1063 = vector.extract_strided_slice %1039 {offsets = [0, 0, 0], sizes = [1, 8, 128], strides = [1, 1, 1]} : vector<4x8x128xf32> to vector<1x8x128xf32>
    %1064 = vector.shape_cast %1063 : vector<1x8x128xf32> to vector<8x128xf32>
    %1065 = vector.broadcast %1 : f32 to vector<8x128xf32>
    %1066 = arith.mulf %1065, %1064 : vector<8x128xf32>
    %1067 = vector.extract_strided_slice %1039 {offsets = [1, 0, 0], sizes = [1, 8, 128], strides = [1, 1, 1]} : vector<4x8x128xf32> to vector<1x8x128xf32>
    %1068 = vector.shape_cast %1067 : vector<1x8x128xf32> to vector<8x128xf32>
    %1069 = vector.broadcast %17 : f32 to vector<8x128xf32>
    %1070 = arith.mulf %1069, %1068 : vector<8x128xf32>
    %1071 = arith.addf %1066, %1070 : vector<8x128xf32>
    %1072 = vector.extract_strided_slice %1039 {offsets = [2, 0, 0], sizes = [1, 8, 128], strides = [1, 1, 1]} : vector<4x8x128xf32> to vector<1x8x128xf32>
    %1073 = vector.shape_cast %1072 : vector<1x8x128xf32> to vector<8x128xf32>
    %1074 = vector.broadcast %33 : f32 to vector<8x128xf32>
    %1075 = arith.mulf %1074, %1073 : vector<8x128xf32>
    %1076 = arith.addf %1071, %1075 : vector<8x128xf32>
    %1077 = vector.extract_strided_slice %1039 {offsets = [3, 0, 0], sizes = [1, 8, 128], strides = [1, 1, 1]} : vector<4x8x128xf32> to vector<1x8x128xf32>
    %1078 = vector.shape_cast %1077 : vector<1x8x128xf32> to vector<8x128xf32>
    %1079 = vector.broadcast %49 : f32 to vector<8x128xf32>
    %1080 = arith.mulf %1079, %1078 : vector<8x128xf32>
    %1081 = arith.addf %1076, %1080 : vector<8x128xf32>
    %1082 = vector.broadcast %65 : f32 to vector<8x128xf32>
    %1083 = arith.addf %1081, %1082 : vector<8x128xf32>
    %cst_434 = arith.constant 0.000000e+00 : f32
    %1084 = vector.broadcast %cst_434 : f32 to vector<8x128xf32>
    %1085 = arith.maximumf %1083, %1084 : vector<8x128xf32>
    %1086 = vector.extract_strided_slice %1039 {offsets = [0, 0, 0], sizes = [1, 8, 128], strides = [1, 1, 1]} : vector<4x8x128xf32> to vector<1x8x128xf32>
    %1087 = vector.shape_cast %1086 : vector<1x8x128xf32> to vector<8x128xf32>
    %1088 = vector.broadcast %2 : f32 to vector<8x128xf32>
    %1089 = arith.mulf %1088, %1087 : vector<8x128xf32>
    %1090 = vector.extract_strided_slice %1039 {offsets = [1, 0, 0], sizes = [1, 8, 128], strides = [1, 1, 1]} : vector<4x8x128xf32> to vector<1x8x128xf32>
    %1091 = vector.shape_cast %1090 : vector<1x8x128xf32> to vector<8x128xf32>
    %1092 = vector.broadcast %18 : f32 to vector<8x128xf32>
    %1093 = arith.mulf %1092, %1091 : vector<8x128xf32>
    %1094 = arith.addf %1089, %1093 : vector<8x128xf32>
    %1095 = vector.extract_strided_slice %1039 {offsets = [2, 0, 0], sizes = [1, 8, 128], strides = [1, 1, 1]} : vector<4x8x128xf32> to vector<1x8x128xf32>
    %1096 = vector.shape_cast %1095 : vector<1x8x128xf32> to vector<8x128xf32>
    %1097 = vector.broadcast %34 : f32 to vector<8x128xf32>
    %1098 = arith.mulf %1097, %1096 : vector<8x128xf32>
    %1099 = arith.addf %1094, %1098 : vector<8x128xf32>
    %1100 = vector.extract_strided_slice %1039 {offsets = [3, 0, 0], sizes = [1, 8, 128], strides = [1, 1, 1]} : vector<4x8x128xf32> to vector<1x8x128xf32>
    %1101 = vector.shape_cast %1100 : vector<1x8x128xf32> to vector<8x128xf32>
    %1102 = vector.broadcast %50 : f32 to vector<8x128xf32>
    %1103 = arith.mulf %1102, %1101 : vector<8x128xf32>
    %1104 = arith.addf %1099, %1103 : vector<8x128xf32>
    %1105 = vector.broadcast %66 : f32 to vector<8x128xf32>
    %1106 = arith.addf %1104, %1105 : vector<8x128xf32>
    %cst_435 = arith.constant 0.000000e+00 : f32
    %1107 = vector.broadcast %cst_435 : f32 to vector<8x128xf32>
    %1108 = arith.maximumf %1106, %1107 : vector<8x128xf32>
    %1109 = vector.extract_strided_slice %1039 {offsets = [0, 0, 0], sizes = [1, 8, 128], strides = [1, 1, 1]} : vector<4x8x128xf32> to vector<1x8x128xf32>
    %1110 = vector.shape_cast %1109 : vector<1x8x128xf32> to vector<8x128xf32>
    %1111 = vector.broadcast %3 : f32 to vector<8x128xf32>
    %1112 = arith.mulf %1111, %1110 : vector<8x128xf32>
    %1113 = vector.extract_strided_slice %1039 {offsets = [1, 0, 0], sizes = [1, 8, 128], strides = [1, 1, 1]} : vector<4x8x128xf32> to vector<1x8x128xf32>
    %1114 = vector.shape_cast %1113 : vector<1x8x128xf32> to vector<8x128xf32>
    %1115 = vector.broadcast %19 : f32 to vector<8x128xf32>
    %1116 = arith.mulf %1115, %1114 : vector<8x128xf32>
    %1117 = arith.addf %1112, %1116 : vector<8x128xf32>
    %1118 = vector.extract_strided_slice %1039 {offsets = [2, 0, 0], sizes = [1, 8, 128], strides = [1, 1, 1]} : vector<4x8x128xf32> to vector<1x8x128xf32>
    %1119 = vector.shape_cast %1118 : vector<1x8x128xf32> to vector<8x128xf32>
    %1120 = vector.broadcast %35 : f32 to vector<8x128xf32>
    %1121 = arith.mulf %1120, %1119 : vector<8x128xf32>
    %1122 = arith.addf %1117, %1121 : vector<8x128xf32>
    %1123 = vector.extract_strided_slice %1039 {offsets = [3, 0, 0], sizes = [1, 8, 128], strides = [1, 1, 1]} : vector<4x8x128xf32> to vector<1x8x128xf32>
    %1124 = vector.shape_cast %1123 : vector<1x8x128xf32> to vector<8x128xf32>
    %1125 = vector.broadcast %51 : f32 to vector<8x128xf32>
    %1126 = arith.mulf %1125, %1124 : vector<8x128xf32>
    %1127 = arith.addf %1122, %1126 : vector<8x128xf32>
    %1128 = vector.broadcast %67 : f32 to vector<8x128xf32>
    %1129 = arith.addf %1127, %1128 : vector<8x128xf32>
    %cst_436 = arith.constant 0.000000e+00 : f32
    %1130 = vector.broadcast %cst_436 : f32 to vector<8x128xf32>
    %1131 = arith.maximumf %1129, %1130 : vector<8x128xf32>
    %1132 = vector.extract_strided_slice %1039 {offsets = [0, 0, 0], sizes = [1, 8, 128], strides = [1, 1, 1]} : vector<4x8x128xf32> to vector<1x8x128xf32>
    %1133 = vector.shape_cast %1132 : vector<1x8x128xf32> to vector<8x128xf32>
    %1134 = vector.broadcast %4 : f32 to vector<8x128xf32>
    %1135 = arith.mulf %1134, %1133 : vector<8x128xf32>
    %1136 = vector.extract_strided_slice %1039 {offsets = [1, 0, 0], sizes = [1, 8, 128], strides = [1, 1, 1]} : vector<4x8x128xf32> to vector<1x8x128xf32>
    %1137 = vector.shape_cast %1136 : vector<1x8x128xf32> to vector<8x128xf32>
    %1138 = vector.broadcast %20 : f32 to vector<8x128xf32>
    %1139 = arith.mulf %1138, %1137 : vector<8x128xf32>
    %1140 = arith.addf %1135, %1139 : vector<8x128xf32>
    %1141 = vector.extract_strided_slice %1039 {offsets = [2, 0, 0], sizes = [1, 8, 128], strides = [1, 1, 1]} : vector<4x8x128xf32> to vector<1x8x128xf32>
    %1142 = vector.shape_cast %1141 : vector<1x8x128xf32> to vector<8x128xf32>
    %1143 = vector.broadcast %36 : f32 to vector<8x128xf32>
    %1144 = arith.mulf %1143, %1142 : vector<8x128xf32>
    %1145 = arith.addf %1140, %1144 : vector<8x128xf32>
    %1146 = vector.extract_strided_slice %1039 {offsets = [3, 0, 0], sizes = [1, 8, 128], strides = [1, 1, 1]} : vector<4x8x128xf32> to vector<1x8x128xf32>
    %1147 = vector.shape_cast %1146 : vector<1x8x128xf32> to vector<8x128xf32>
    %1148 = vector.broadcast %52 : f32 to vector<8x128xf32>
    %1149 = arith.mulf %1148, %1147 : vector<8x128xf32>
    %1150 = arith.addf %1145, %1149 : vector<8x128xf32>
    %1151 = vector.broadcast %68 : f32 to vector<8x128xf32>
    %1152 = arith.addf %1150, %1151 : vector<8x128xf32>
    %cst_437 = arith.constant 0.000000e+00 : f32
    %1153 = vector.broadcast %cst_437 : f32 to vector<8x128xf32>
    %1154 = arith.maximumf %1152, %1153 : vector<8x128xf32>
    %1155 = vector.extract_strided_slice %1039 {offsets = [0, 0, 0], sizes = [1, 8, 128], strides = [1, 1, 1]} : vector<4x8x128xf32> to vector<1x8x128xf32>
    %1156 = vector.shape_cast %1155 : vector<1x8x128xf32> to vector<8x128xf32>
    %1157 = vector.broadcast %5 : f32 to vector<8x128xf32>
    %1158 = arith.mulf %1157, %1156 : vector<8x128xf32>
    %1159 = vector.extract_strided_slice %1039 {offsets = [1, 0, 0], sizes = [1, 8, 128], strides = [1, 1, 1]} : vector<4x8x128xf32> to vector<1x8x128xf32>
    %1160 = vector.shape_cast %1159 : vector<1x8x128xf32> to vector<8x128xf32>
    %1161 = vector.broadcast %21 : f32 to vector<8x128xf32>
    %1162 = arith.mulf %1161, %1160 : vector<8x128xf32>
    %1163 = arith.addf %1158, %1162 : vector<8x128xf32>
    %1164 = vector.extract_strided_slice %1039 {offsets = [2, 0, 0], sizes = [1, 8, 128], strides = [1, 1, 1]} : vector<4x8x128xf32> to vector<1x8x128xf32>
    %1165 = vector.shape_cast %1164 : vector<1x8x128xf32> to vector<8x128xf32>
    %1166 = vector.broadcast %37 : f32 to vector<8x128xf32>
    %1167 = arith.mulf %1166, %1165 : vector<8x128xf32>
    %1168 = arith.addf %1163, %1167 : vector<8x128xf32>
    %1169 = vector.extract_strided_slice %1039 {offsets = [3, 0, 0], sizes = [1, 8, 128], strides = [1, 1, 1]} : vector<4x8x128xf32> to vector<1x8x128xf32>
    %1170 = vector.shape_cast %1169 : vector<1x8x128xf32> to vector<8x128xf32>
    %1171 = vector.broadcast %53 : f32 to vector<8x128xf32>
    %1172 = arith.mulf %1171, %1170 : vector<8x128xf32>
    %1173 = arith.addf %1168, %1172 : vector<8x128xf32>
    %1174 = vector.broadcast %69 : f32 to vector<8x128xf32>
    %1175 = arith.addf %1173, %1174 : vector<8x128xf32>
    %cst_438 = arith.constant 0.000000e+00 : f32
    %1176 = vector.broadcast %cst_438 : f32 to vector<8x128xf32>
    %1177 = arith.maximumf %1175, %1176 : vector<8x128xf32>
    %1178 = vector.extract_strided_slice %1039 {offsets = [0, 0, 0], sizes = [1, 8, 128], strides = [1, 1, 1]} : vector<4x8x128xf32> to vector<1x8x128xf32>
    %1179 = vector.shape_cast %1178 : vector<1x8x128xf32> to vector<8x128xf32>
    %1180 = vector.broadcast %6 : f32 to vector<8x128xf32>
    %1181 = arith.mulf %1180, %1179 : vector<8x128xf32>
    %1182 = vector.extract_strided_slice %1039 {offsets = [1, 0, 0], sizes = [1, 8, 128], strides = [1, 1, 1]} : vector<4x8x128xf32> to vector<1x8x128xf32>
    %1183 = vector.shape_cast %1182 : vector<1x8x128xf32> to vector<8x128xf32>
    %1184 = vector.broadcast %22 : f32 to vector<8x128xf32>
    %1185 = arith.mulf %1184, %1183 : vector<8x128xf32>
    %1186 = arith.addf %1181, %1185 : vector<8x128xf32>
    %1187 = vector.extract_strided_slice %1039 {offsets = [2, 0, 0], sizes = [1, 8, 128], strides = [1, 1, 1]} : vector<4x8x128xf32> to vector<1x8x128xf32>
    %1188 = vector.shape_cast %1187 : vector<1x8x128xf32> to vector<8x128xf32>
    %1189 = vector.broadcast %38 : f32 to vector<8x128xf32>
    %1190 = arith.mulf %1189, %1188 : vector<8x128xf32>
    %1191 = arith.addf %1186, %1190 : vector<8x128xf32>
    %1192 = vector.extract_strided_slice %1039 {offsets = [3, 0, 0], sizes = [1, 8, 128], strides = [1, 1, 1]} : vector<4x8x128xf32> to vector<1x8x128xf32>
    %1193 = vector.shape_cast %1192 : vector<1x8x128xf32> to vector<8x128xf32>
    %1194 = vector.broadcast %54 : f32 to vector<8x128xf32>
    %1195 = arith.mulf %1194, %1193 : vector<8x128xf32>
    %1196 = arith.addf %1191, %1195 : vector<8x128xf32>
    %1197 = vector.broadcast %70 : f32 to vector<8x128xf32>
    %1198 = arith.addf %1196, %1197 : vector<8x128xf32>
    %cst_439 = arith.constant 0.000000e+00 : f32
    %1199 = vector.broadcast %cst_439 : f32 to vector<8x128xf32>
    %1200 = arith.maximumf %1198, %1199 : vector<8x128xf32>
    %1201 = vector.extract_strided_slice %1039 {offsets = [0, 0, 0], sizes = [1, 8, 128], strides = [1, 1, 1]} : vector<4x8x128xf32> to vector<1x8x128xf32>
    %1202 = vector.shape_cast %1201 : vector<1x8x128xf32> to vector<8x128xf32>
    %1203 = vector.broadcast %7 : f32 to vector<8x128xf32>
    %1204 = arith.mulf %1203, %1202 : vector<8x128xf32>
    %1205 = vector.extract_strided_slice %1039 {offsets = [1, 0, 0], sizes = [1, 8, 128], strides = [1, 1, 1]} : vector<4x8x128xf32> to vector<1x8x128xf32>
    %1206 = vector.shape_cast %1205 : vector<1x8x128xf32> to vector<8x128xf32>
    %1207 = vector.broadcast %23 : f32 to vector<8x128xf32>
    %1208 = arith.mulf %1207, %1206 : vector<8x128xf32>
    %1209 = arith.addf %1204, %1208 : vector<8x128xf32>
    %1210 = vector.extract_strided_slice %1039 {offsets = [2, 0, 0], sizes = [1, 8, 128], strides = [1, 1, 1]} : vector<4x8x128xf32> to vector<1x8x128xf32>
    %1211 = vector.shape_cast %1210 : vector<1x8x128xf32> to vector<8x128xf32>
    %1212 = vector.broadcast %39 : f32 to vector<8x128xf32>
    %1213 = arith.mulf %1212, %1211 : vector<8x128xf32>
    %1214 = arith.addf %1209, %1213 : vector<8x128xf32>
    %1215 = vector.extract_strided_slice %1039 {offsets = [3, 0, 0], sizes = [1, 8, 128], strides = [1, 1, 1]} : vector<4x8x128xf32> to vector<1x8x128xf32>
    %1216 = vector.shape_cast %1215 : vector<1x8x128xf32> to vector<8x128xf32>
    %1217 = vector.broadcast %55 : f32 to vector<8x128xf32>
    %1218 = arith.mulf %1217, %1216 : vector<8x128xf32>
    %1219 = arith.addf %1214, %1218 : vector<8x128xf32>
    %1220 = vector.broadcast %71 : f32 to vector<8x128xf32>
    %1221 = arith.addf %1219, %1220 : vector<8x128xf32>
    %cst_440 = arith.constant 0.000000e+00 : f32
    %1222 = vector.broadcast %cst_440 : f32 to vector<8x128xf32>
    %1223 = arith.maximumf %1221, %1222 : vector<8x128xf32>
    %1224 = vector.extract_strided_slice %1039 {offsets = [0, 0, 0], sizes = [1, 8, 128], strides = [1, 1, 1]} : vector<4x8x128xf32> to vector<1x8x128xf32>
    %1225 = vector.shape_cast %1224 : vector<1x8x128xf32> to vector<8x128xf32>
    %1226 = vector.broadcast %8 : f32 to vector<8x128xf32>
    %1227 = arith.mulf %1226, %1225 : vector<8x128xf32>
    %1228 = vector.extract_strided_slice %1039 {offsets = [1, 0, 0], sizes = [1, 8, 128], strides = [1, 1, 1]} : vector<4x8x128xf32> to vector<1x8x128xf32>
    %1229 = vector.shape_cast %1228 : vector<1x8x128xf32> to vector<8x128xf32>
    %1230 = vector.broadcast %24 : f32 to vector<8x128xf32>
    %1231 = arith.mulf %1230, %1229 : vector<8x128xf32>
    %1232 = arith.addf %1227, %1231 : vector<8x128xf32>
    %1233 = vector.extract_strided_slice %1039 {offsets = [2, 0, 0], sizes = [1, 8, 128], strides = [1, 1, 1]} : vector<4x8x128xf32> to vector<1x8x128xf32>
    %1234 = vector.shape_cast %1233 : vector<1x8x128xf32> to vector<8x128xf32>
    %1235 = vector.broadcast %40 : f32 to vector<8x128xf32>
    %1236 = arith.mulf %1235, %1234 : vector<8x128xf32>
    %1237 = arith.addf %1232, %1236 : vector<8x128xf32>
    %1238 = vector.extract_strided_slice %1039 {offsets = [3, 0, 0], sizes = [1, 8, 128], strides = [1, 1, 1]} : vector<4x8x128xf32> to vector<1x8x128xf32>
    %1239 = vector.shape_cast %1238 : vector<1x8x128xf32> to vector<8x128xf32>
    %1240 = vector.broadcast %56 : f32 to vector<8x128xf32>
    %1241 = arith.mulf %1240, %1239 : vector<8x128xf32>
    %1242 = arith.addf %1237, %1241 : vector<8x128xf32>
    %1243 = vector.broadcast %72 : f32 to vector<8x128xf32>
    %1244 = arith.addf %1242, %1243 : vector<8x128xf32>
    %cst_441 = arith.constant 0.000000e+00 : f32
    %1245 = vector.broadcast %cst_441 : f32 to vector<8x128xf32>
    %1246 = arith.maximumf %1244, %1245 : vector<8x128xf32>
    %1247 = vector.extract_strided_slice %1039 {offsets = [0, 0, 0], sizes = [1, 8, 128], strides = [1, 1, 1]} : vector<4x8x128xf32> to vector<1x8x128xf32>
    %1248 = vector.shape_cast %1247 : vector<1x8x128xf32> to vector<8x128xf32>
    %1249 = vector.broadcast %9 : f32 to vector<8x128xf32>
    %1250 = arith.mulf %1249, %1248 : vector<8x128xf32>
    %1251 = vector.extract_strided_slice %1039 {offsets = [1, 0, 0], sizes = [1, 8, 128], strides = [1, 1, 1]} : vector<4x8x128xf32> to vector<1x8x128xf32>
    %1252 = vector.shape_cast %1251 : vector<1x8x128xf32> to vector<8x128xf32>
    %1253 = vector.broadcast %25 : f32 to vector<8x128xf32>
    %1254 = arith.mulf %1253, %1252 : vector<8x128xf32>
    %1255 = arith.addf %1250, %1254 : vector<8x128xf32>
    %1256 = vector.extract_strided_slice %1039 {offsets = [2, 0, 0], sizes = [1, 8, 128], strides = [1, 1, 1]} : vector<4x8x128xf32> to vector<1x8x128xf32>
    %1257 = vector.shape_cast %1256 : vector<1x8x128xf32> to vector<8x128xf32>
    %1258 = vector.broadcast %41 : f32 to vector<8x128xf32>
    %1259 = arith.mulf %1258, %1257 : vector<8x128xf32>
    %1260 = arith.addf %1255, %1259 : vector<8x128xf32>
    %1261 = vector.extract_strided_slice %1039 {offsets = [3, 0, 0], sizes = [1, 8, 128], strides = [1, 1, 1]} : vector<4x8x128xf32> to vector<1x8x128xf32>
    %1262 = vector.shape_cast %1261 : vector<1x8x128xf32> to vector<8x128xf32>
    %1263 = vector.broadcast %57 : f32 to vector<8x128xf32>
    %1264 = arith.mulf %1263, %1262 : vector<8x128xf32>
    %1265 = arith.addf %1260, %1264 : vector<8x128xf32>
    %1266 = vector.broadcast %73 : f32 to vector<8x128xf32>
    %1267 = arith.addf %1265, %1266 : vector<8x128xf32>
    %cst_442 = arith.constant 0.000000e+00 : f32
    %1268 = vector.broadcast %cst_442 : f32 to vector<8x128xf32>
    %1269 = arith.maximumf %1267, %1268 : vector<8x128xf32>
    %1270 = vector.extract_strided_slice %1039 {offsets = [0, 0, 0], sizes = [1, 8, 128], strides = [1, 1, 1]} : vector<4x8x128xf32> to vector<1x8x128xf32>
    %1271 = vector.shape_cast %1270 : vector<1x8x128xf32> to vector<8x128xf32>
    %1272 = vector.broadcast %10 : f32 to vector<8x128xf32>
    %1273 = arith.mulf %1272, %1271 : vector<8x128xf32>
    %1274 = vector.extract_strided_slice %1039 {offsets = [1, 0, 0], sizes = [1, 8, 128], strides = [1, 1, 1]} : vector<4x8x128xf32> to vector<1x8x128xf32>
    %1275 = vector.shape_cast %1274 : vector<1x8x128xf32> to vector<8x128xf32>
    %1276 = vector.broadcast %26 : f32 to vector<8x128xf32>
    %1277 = arith.mulf %1276, %1275 : vector<8x128xf32>
    %1278 = arith.addf %1273, %1277 : vector<8x128xf32>
    %1279 = vector.extract_strided_slice %1039 {offsets = [2, 0, 0], sizes = [1, 8, 128], strides = [1, 1, 1]} : vector<4x8x128xf32> to vector<1x8x128xf32>
    %1280 = vector.shape_cast %1279 : vector<1x8x128xf32> to vector<8x128xf32>
    %1281 = vector.broadcast %42 : f32 to vector<8x128xf32>
    %1282 = arith.mulf %1281, %1280 : vector<8x128xf32>
    %1283 = arith.addf %1278, %1282 : vector<8x128xf32>
    %1284 = vector.extract_strided_slice %1039 {offsets = [3, 0, 0], sizes = [1, 8, 128], strides = [1, 1, 1]} : vector<4x8x128xf32> to vector<1x8x128xf32>
    %1285 = vector.shape_cast %1284 : vector<1x8x128xf32> to vector<8x128xf32>
    %1286 = vector.broadcast %58 : f32 to vector<8x128xf32>
    %1287 = arith.mulf %1286, %1285 : vector<8x128xf32>
    %1288 = arith.addf %1283, %1287 : vector<8x128xf32>
    %1289 = vector.broadcast %74 : f32 to vector<8x128xf32>
    %1290 = arith.addf %1288, %1289 : vector<8x128xf32>
    %cst_443 = arith.constant 0.000000e+00 : f32
    %1291 = vector.broadcast %cst_443 : f32 to vector<8x128xf32>
    %1292 = arith.maximumf %1290, %1291 : vector<8x128xf32>
    %1293 = vector.extract_strided_slice %1039 {offsets = [0, 0, 0], sizes = [1, 8, 128], strides = [1, 1, 1]} : vector<4x8x128xf32> to vector<1x8x128xf32>
    %1294 = vector.shape_cast %1293 : vector<1x8x128xf32> to vector<8x128xf32>
    %1295 = vector.broadcast %11 : f32 to vector<8x128xf32>
    %1296 = arith.mulf %1295, %1294 : vector<8x128xf32>
    %1297 = vector.extract_strided_slice %1039 {offsets = [1, 0, 0], sizes = [1, 8, 128], strides = [1, 1, 1]} : vector<4x8x128xf32> to vector<1x8x128xf32>
    %1298 = vector.shape_cast %1297 : vector<1x8x128xf32> to vector<8x128xf32>
    %1299 = vector.broadcast %27 : f32 to vector<8x128xf32>
    %1300 = arith.mulf %1299, %1298 : vector<8x128xf32>
    %1301 = arith.addf %1296, %1300 : vector<8x128xf32>
    %1302 = vector.extract_strided_slice %1039 {offsets = [2, 0, 0], sizes = [1, 8, 128], strides = [1, 1, 1]} : vector<4x8x128xf32> to vector<1x8x128xf32>
    %1303 = vector.shape_cast %1302 : vector<1x8x128xf32> to vector<8x128xf32>
    %1304 = vector.broadcast %43 : f32 to vector<8x128xf32>
    %1305 = arith.mulf %1304, %1303 : vector<8x128xf32>
    %1306 = arith.addf %1301, %1305 : vector<8x128xf32>
    %1307 = vector.extract_strided_slice %1039 {offsets = [3, 0, 0], sizes = [1, 8, 128], strides = [1, 1, 1]} : vector<4x8x128xf32> to vector<1x8x128xf32>
    %1308 = vector.shape_cast %1307 : vector<1x8x128xf32> to vector<8x128xf32>
    %1309 = vector.broadcast %59 : f32 to vector<8x128xf32>
    %1310 = arith.mulf %1309, %1308 : vector<8x128xf32>
    %1311 = arith.addf %1306, %1310 : vector<8x128xf32>
    %1312 = vector.broadcast %75 : f32 to vector<8x128xf32>
    %1313 = arith.addf %1311, %1312 : vector<8x128xf32>
    %cst_444 = arith.constant 0.000000e+00 : f32
    %1314 = vector.broadcast %cst_444 : f32 to vector<8x128xf32>
    %1315 = arith.maximumf %1313, %1314 : vector<8x128xf32>
    %1316 = vector.extract_strided_slice %1039 {offsets = [0, 0, 0], sizes = [1, 8, 128], strides = [1, 1, 1]} : vector<4x8x128xf32> to vector<1x8x128xf32>
    %1317 = vector.shape_cast %1316 : vector<1x8x128xf32> to vector<8x128xf32>
    %1318 = vector.broadcast %12 : f32 to vector<8x128xf32>
    %1319 = arith.mulf %1318, %1317 : vector<8x128xf32>
    %1320 = vector.extract_strided_slice %1039 {offsets = [1, 0, 0], sizes = [1, 8, 128], strides = [1, 1, 1]} : vector<4x8x128xf32> to vector<1x8x128xf32>
    %1321 = vector.shape_cast %1320 : vector<1x8x128xf32> to vector<8x128xf32>
    %1322 = vector.broadcast %28 : f32 to vector<8x128xf32>
    %1323 = arith.mulf %1322, %1321 : vector<8x128xf32>
    %1324 = arith.addf %1319, %1323 : vector<8x128xf32>
    %1325 = vector.extract_strided_slice %1039 {offsets = [2, 0, 0], sizes = [1, 8, 128], strides = [1, 1, 1]} : vector<4x8x128xf32> to vector<1x8x128xf32>
    %1326 = vector.shape_cast %1325 : vector<1x8x128xf32> to vector<8x128xf32>
    %1327 = vector.broadcast %44 : f32 to vector<8x128xf32>
    %1328 = arith.mulf %1327, %1326 : vector<8x128xf32>
    %1329 = arith.addf %1324, %1328 : vector<8x128xf32>
    %1330 = vector.extract_strided_slice %1039 {offsets = [3, 0, 0], sizes = [1, 8, 128], strides = [1, 1, 1]} : vector<4x8x128xf32> to vector<1x8x128xf32>
    %1331 = vector.shape_cast %1330 : vector<1x8x128xf32> to vector<8x128xf32>
    %1332 = vector.broadcast %60 : f32 to vector<8x128xf32>
    %1333 = arith.mulf %1332, %1331 : vector<8x128xf32>
    %1334 = arith.addf %1329, %1333 : vector<8x128xf32>
    %1335 = vector.broadcast %76 : f32 to vector<8x128xf32>
    %1336 = arith.addf %1334, %1335 : vector<8x128xf32>
    %cst_445 = arith.constant 0.000000e+00 : f32
    %1337 = vector.broadcast %cst_445 : f32 to vector<8x128xf32>
    %1338 = arith.maximumf %1336, %1337 : vector<8x128xf32>
    %1339 = vector.extract_strided_slice %1039 {offsets = [0, 0, 0], sizes = [1, 8, 128], strides = [1, 1, 1]} : vector<4x8x128xf32> to vector<1x8x128xf32>
    %1340 = vector.shape_cast %1339 : vector<1x8x128xf32> to vector<8x128xf32>
    %1341 = vector.broadcast %13 : f32 to vector<8x128xf32>
    %1342 = arith.mulf %1341, %1340 : vector<8x128xf32>
    %1343 = vector.extract_strided_slice %1039 {offsets = [1, 0, 0], sizes = [1, 8, 128], strides = [1, 1, 1]} : vector<4x8x128xf32> to vector<1x8x128xf32>
    %1344 = vector.shape_cast %1343 : vector<1x8x128xf32> to vector<8x128xf32>
    %1345 = vector.broadcast %29 : f32 to vector<8x128xf32>
    %1346 = arith.mulf %1345, %1344 : vector<8x128xf32>
    %1347 = arith.addf %1342, %1346 : vector<8x128xf32>
    %1348 = vector.extract_strided_slice %1039 {offsets = [2, 0, 0], sizes = [1, 8, 128], strides = [1, 1, 1]} : vector<4x8x128xf32> to vector<1x8x128xf32>
    %1349 = vector.shape_cast %1348 : vector<1x8x128xf32> to vector<8x128xf32>
    %1350 = vector.broadcast %45 : f32 to vector<8x128xf32>
    %1351 = arith.mulf %1350, %1349 : vector<8x128xf32>
    %1352 = arith.addf %1347, %1351 : vector<8x128xf32>
    %1353 = vector.extract_strided_slice %1039 {offsets = [3, 0, 0], sizes = [1, 8, 128], strides = [1, 1, 1]} : vector<4x8x128xf32> to vector<1x8x128xf32>
    %1354 = vector.shape_cast %1353 : vector<1x8x128xf32> to vector<8x128xf32>
    %1355 = vector.broadcast %61 : f32 to vector<8x128xf32>
    %1356 = arith.mulf %1355, %1354 : vector<8x128xf32>
    %1357 = arith.addf %1352, %1356 : vector<8x128xf32>
    %1358 = vector.broadcast %77 : f32 to vector<8x128xf32>
    %1359 = arith.addf %1357, %1358 : vector<8x128xf32>
    %cst_446 = arith.constant 0.000000e+00 : f32
    %1360 = vector.broadcast %cst_446 : f32 to vector<8x128xf32>
    %1361 = arith.maximumf %1359, %1360 : vector<8x128xf32>
    %1362 = vector.extract_strided_slice %1039 {offsets = [0, 0, 0], sizes = [1, 8, 128], strides = [1, 1, 1]} : vector<4x8x128xf32> to vector<1x8x128xf32>
    %1363 = vector.shape_cast %1362 : vector<1x8x128xf32> to vector<8x128xf32>
    %1364 = vector.broadcast %14 : f32 to vector<8x128xf32>
    %1365 = arith.mulf %1364, %1363 : vector<8x128xf32>
    %1366 = vector.extract_strided_slice %1039 {offsets = [1, 0, 0], sizes = [1, 8, 128], strides = [1, 1, 1]} : vector<4x8x128xf32> to vector<1x8x128xf32>
    %1367 = vector.shape_cast %1366 : vector<1x8x128xf32> to vector<8x128xf32>
    %1368 = vector.broadcast %30 : f32 to vector<8x128xf32>
    %1369 = arith.mulf %1368, %1367 : vector<8x128xf32>
    %1370 = arith.addf %1365, %1369 : vector<8x128xf32>
    %1371 = vector.extract_strided_slice %1039 {offsets = [2, 0, 0], sizes = [1, 8, 128], strides = [1, 1, 1]} : vector<4x8x128xf32> to vector<1x8x128xf32>
    %1372 = vector.shape_cast %1371 : vector<1x8x128xf32> to vector<8x128xf32>
    %1373 = vector.broadcast %46 : f32 to vector<8x128xf32>
    %1374 = arith.mulf %1373, %1372 : vector<8x128xf32>
    %1375 = arith.addf %1370, %1374 : vector<8x128xf32>
    %1376 = vector.extract_strided_slice %1039 {offsets = [3, 0, 0], sizes = [1, 8, 128], strides = [1, 1, 1]} : vector<4x8x128xf32> to vector<1x8x128xf32>
    %1377 = vector.shape_cast %1376 : vector<1x8x128xf32> to vector<8x128xf32>
    %1378 = vector.broadcast %62 : f32 to vector<8x128xf32>
    %1379 = arith.mulf %1378, %1377 : vector<8x128xf32>
    %1380 = arith.addf %1375, %1379 : vector<8x128xf32>
    %1381 = vector.broadcast %78 : f32 to vector<8x128xf32>
    %1382 = arith.addf %1380, %1381 : vector<8x128xf32>
    %cst_447 = arith.constant 0.000000e+00 : f32
    %1383 = vector.broadcast %cst_447 : f32 to vector<8x128xf32>
    %1384 = arith.maximumf %1382, %1383 : vector<8x128xf32>
    %1385 = vector.extract_strided_slice %1039 {offsets = [0, 0, 0], sizes = [1, 8, 128], strides = [1, 1, 1]} : vector<4x8x128xf32> to vector<1x8x128xf32>
    %1386 = vector.shape_cast %1385 : vector<1x8x128xf32> to vector<8x128xf32>
    %1387 = vector.broadcast %15 : f32 to vector<8x128xf32>
    %1388 = arith.mulf %1387, %1386 : vector<8x128xf32>
    %1389 = vector.extract_strided_slice %1039 {offsets = [1, 0, 0], sizes = [1, 8, 128], strides = [1, 1, 1]} : vector<4x8x128xf32> to vector<1x8x128xf32>
    %1390 = vector.shape_cast %1389 : vector<1x8x128xf32> to vector<8x128xf32>
    %1391 = vector.broadcast %31 : f32 to vector<8x128xf32>
    %1392 = arith.mulf %1391, %1390 : vector<8x128xf32>
    %1393 = arith.addf %1388, %1392 : vector<8x128xf32>
    %1394 = vector.extract_strided_slice %1039 {offsets = [2, 0, 0], sizes = [1, 8, 128], strides = [1, 1, 1]} : vector<4x8x128xf32> to vector<1x8x128xf32>
    %1395 = vector.shape_cast %1394 : vector<1x8x128xf32> to vector<8x128xf32>
    %1396 = vector.broadcast %47 : f32 to vector<8x128xf32>
    %1397 = arith.mulf %1396, %1395 : vector<8x128xf32>
    %1398 = arith.addf %1393, %1397 : vector<8x128xf32>
    %1399 = vector.extract_strided_slice %1039 {offsets = [3, 0, 0], sizes = [1, 8, 128], strides = [1, 1, 1]} : vector<4x8x128xf32> to vector<1x8x128xf32>
    %1400 = vector.shape_cast %1399 : vector<1x8x128xf32> to vector<8x128xf32>
    %1401 = vector.broadcast %63 : f32 to vector<8x128xf32>
    %1402 = arith.mulf %1401, %1400 : vector<8x128xf32>
    %1403 = arith.addf %1398, %1402 : vector<8x128xf32>
    %1404 = vector.broadcast %79 : f32 to vector<8x128xf32>
    %1405 = arith.addf %1403, %1404 : vector<8x128xf32>
    %cst_448 = arith.constant 0.000000e+00 : f32
    %1406 = vector.broadcast %cst_448 : f32 to vector<8x128xf32>
    %1407 = arith.maximumf %1405, %1406 : vector<8x128xf32>
    %1408 = vector.broadcast %80 : f32 to vector<8x128xf32>
    %1409 = arith.mulf %1408, %1062 : vector<8x128xf32>
    %1410 = vector.broadcast %88 : f32 to vector<8x128xf32>
    %1411 = arith.mulf %1410, %1085 : vector<8x128xf32>
    %1412 = arith.addf %1409, %1411 : vector<8x128xf32>
    %1413 = vector.broadcast %96 : f32 to vector<8x128xf32>
    %1414 = arith.mulf %1413, %1108 : vector<8x128xf32>
    %1415 = arith.addf %1412, %1414 : vector<8x128xf32>
    %1416 = vector.broadcast %104 : f32 to vector<8x128xf32>
    %1417 = arith.mulf %1416, %1131 : vector<8x128xf32>
    %1418 = arith.addf %1415, %1417 : vector<8x128xf32>
    %1419 = vector.broadcast %112 : f32 to vector<8x128xf32>
    %1420 = arith.mulf %1419, %1154 : vector<8x128xf32>
    %1421 = arith.addf %1418, %1420 : vector<8x128xf32>
    %1422 = vector.broadcast %120 : f32 to vector<8x128xf32>
    %1423 = arith.mulf %1422, %1177 : vector<8x128xf32>
    %1424 = arith.addf %1421, %1423 : vector<8x128xf32>
    %1425 = vector.broadcast %128 : f32 to vector<8x128xf32>
    %1426 = arith.mulf %1425, %1200 : vector<8x128xf32>
    %1427 = arith.addf %1424, %1426 : vector<8x128xf32>
    %1428 = vector.broadcast %136 : f32 to vector<8x128xf32>
    %1429 = arith.mulf %1428, %1223 : vector<8x128xf32>
    %1430 = arith.addf %1427, %1429 : vector<8x128xf32>
    %1431 = vector.broadcast %144 : f32 to vector<8x128xf32>
    %1432 = arith.mulf %1431, %1246 : vector<8x128xf32>
    %1433 = arith.addf %1430, %1432 : vector<8x128xf32>
    %1434 = vector.broadcast %152 : f32 to vector<8x128xf32>
    %1435 = arith.mulf %1434, %1269 : vector<8x128xf32>
    %1436 = arith.addf %1433, %1435 : vector<8x128xf32>
    %1437 = vector.broadcast %160 : f32 to vector<8x128xf32>
    %1438 = arith.mulf %1437, %1292 : vector<8x128xf32>
    %1439 = arith.addf %1436, %1438 : vector<8x128xf32>
    %1440 = vector.broadcast %168 : f32 to vector<8x128xf32>
    %1441 = arith.mulf %1440, %1315 : vector<8x128xf32>
    %1442 = arith.addf %1439, %1441 : vector<8x128xf32>
    %1443 = vector.broadcast %176 : f32 to vector<8x128xf32>
    %1444 = arith.mulf %1443, %1338 : vector<8x128xf32>
    %1445 = arith.addf %1442, %1444 : vector<8x128xf32>
    %1446 = vector.broadcast %184 : f32 to vector<8x128xf32>
    %1447 = arith.mulf %1446, %1361 : vector<8x128xf32>
    %1448 = arith.addf %1445, %1447 : vector<8x128xf32>
    %1449 = vector.broadcast %192 : f32 to vector<8x128xf32>
    %1450 = arith.mulf %1449, %1384 : vector<8x128xf32>
    %1451 = arith.addf %1448, %1450 : vector<8x128xf32>
    %1452 = vector.broadcast %200 : f32 to vector<8x128xf32>
    %1453 = arith.mulf %1452, %1407 : vector<8x128xf32>
    %1454 = arith.addf %1451, %1453 : vector<8x128xf32>
    %1455 = vector.broadcast %208 : f32 to vector<8x128xf32>
    %1456 = arith.addf %1454, %1455 : vector<8x128xf32>
    %cst_449 = arith.constant 0.000000e+00 : f32
    %1457 = vector.broadcast %cst_449 : f32 to vector<8x128xf32>
    %1458 = arith.maximumf %1456, %1457 : vector<8x128xf32>
    %1459 = vector.broadcast %81 : f32 to vector<8x128xf32>
    %1460 = arith.mulf %1459, %1062 : vector<8x128xf32>
    %1461 = vector.broadcast %89 : f32 to vector<8x128xf32>
    %1462 = arith.mulf %1461, %1085 : vector<8x128xf32>
    %1463 = arith.addf %1460, %1462 : vector<8x128xf32>
    %1464 = vector.broadcast %97 : f32 to vector<8x128xf32>
    %1465 = arith.mulf %1464, %1108 : vector<8x128xf32>
    %1466 = arith.addf %1463, %1465 : vector<8x128xf32>
    %1467 = vector.broadcast %105 : f32 to vector<8x128xf32>
    %1468 = arith.mulf %1467, %1131 : vector<8x128xf32>
    %1469 = arith.addf %1466, %1468 : vector<8x128xf32>
    %1470 = vector.broadcast %113 : f32 to vector<8x128xf32>
    %1471 = arith.mulf %1470, %1154 : vector<8x128xf32>
    %1472 = arith.addf %1469, %1471 : vector<8x128xf32>
    %1473 = vector.broadcast %121 : f32 to vector<8x128xf32>
    %1474 = arith.mulf %1473, %1177 : vector<8x128xf32>
    %1475 = arith.addf %1472, %1474 : vector<8x128xf32>
    %1476 = vector.broadcast %129 : f32 to vector<8x128xf32>
    %1477 = arith.mulf %1476, %1200 : vector<8x128xf32>
    %1478 = arith.addf %1475, %1477 : vector<8x128xf32>
    %1479 = vector.broadcast %137 : f32 to vector<8x128xf32>
    %1480 = arith.mulf %1479, %1223 : vector<8x128xf32>
    %1481 = arith.addf %1478, %1480 : vector<8x128xf32>
    %1482 = vector.broadcast %145 : f32 to vector<8x128xf32>
    %1483 = arith.mulf %1482, %1246 : vector<8x128xf32>
    %1484 = arith.addf %1481, %1483 : vector<8x128xf32>
    %1485 = vector.broadcast %153 : f32 to vector<8x128xf32>
    %1486 = arith.mulf %1485, %1269 : vector<8x128xf32>
    %1487 = arith.addf %1484, %1486 : vector<8x128xf32>
    %1488 = vector.broadcast %161 : f32 to vector<8x128xf32>
    %1489 = arith.mulf %1488, %1292 : vector<8x128xf32>
    %1490 = arith.addf %1487, %1489 : vector<8x128xf32>
    %1491 = vector.broadcast %169 : f32 to vector<8x128xf32>
    %1492 = arith.mulf %1491, %1315 : vector<8x128xf32>
    %1493 = arith.addf %1490, %1492 : vector<8x128xf32>
    %1494 = vector.broadcast %177 : f32 to vector<8x128xf32>
    %1495 = arith.mulf %1494, %1338 : vector<8x128xf32>
    %1496 = arith.addf %1493, %1495 : vector<8x128xf32>
    %1497 = vector.broadcast %185 : f32 to vector<8x128xf32>
    %1498 = arith.mulf %1497, %1361 : vector<8x128xf32>
    %1499 = arith.addf %1496, %1498 : vector<8x128xf32>
    %1500 = vector.broadcast %193 : f32 to vector<8x128xf32>
    %1501 = arith.mulf %1500, %1384 : vector<8x128xf32>
    %1502 = arith.addf %1499, %1501 : vector<8x128xf32>
    %1503 = vector.broadcast %201 : f32 to vector<8x128xf32>
    %1504 = arith.mulf %1503, %1407 : vector<8x128xf32>
    %1505 = arith.addf %1502, %1504 : vector<8x128xf32>
    %1506 = vector.broadcast %209 : f32 to vector<8x128xf32>
    %1507 = arith.addf %1505, %1506 : vector<8x128xf32>
    %cst_450 = arith.constant 0.000000e+00 : f32
    %1508 = vector.broadcast %cst_450 : f32 to vector<8x128xf32>
    %1509 = arith.maximumf %1507, %1508 : vector<8x128xf32>
    %1510 = vector.broadcast %82 : f32 to vector<8x128xf32>
    %1511 = arith.mulf %1510, %1062 : vector<8x128xf32>
    %1512 = vector.broadcast %90 : f32 to vector<8x128xf32>
    %1513 = arith.mulf %1512, %1085 : vector<8x128xf32>
    %1514 = arith.addf %1511, %1513 : vector<8x128xf32>
    %1515 = vector.broadcast %98 : f32 to vector<8x128xf32>
    %1516 = arith.mulf %1515, %1108 : vector<8x128xf32>
    %1517 = arith.addf %1514, %1516 : vector<8x128xf32>
    %1518 = vector.broadcast %106 : f32 to vector<8x128xf32>
    %1519 = arith.mulf %1518, %1131 : vector<8x128xf32>
    %1520 = arith.addf %1517, %1519 : vector<8x128xf32>
    %1521 = vector.broadcast %114 : f32 to vector<8x128xf32>
    %1522 = arith.mulf %1521, %1154 : vector<8x128xf32>
    %1523 = arith.addf %1520, %1522 : vector<8x128xf32>
    %1524 = vector.broadcast %122 : f32 to vector<8x128xf32>
    %1525 = arith.mulf %1524, %1177 : vector<8x128xf32>
    %1526 = arith.addf %1523, %1525 : vector<8x128xf32>
    %1527 = vector.broadcast %130 : f32 to vector<8x128xf32>
    %1528 = arith.mulf %1527, %1200 : vector<8x128xf32>
    %1529 = arith.addf %1526, %1528 : vector<8x128xf32>
    %1530 = vector.broadcast %138 : f32 to vector<8x128xf32>
    %1531 = arith.mulf %1530, %1223 : vector<8x128xf32>
    %1532 = arith.addf %1529, %1531 : vector<8x128xf32>
    %1533 = vector.broadcast %146 : f32 to vector<8x128xf32>
    %1534 = arith.mulf %1533, %1246 : vector<8x128xf32>
    %1535 = arith.addf %1532, %1534 : vector<8x128xf32>
    %1536 = vector.broadcast %154 : f32 to vector<8x128xf32>
    %1537 = arith.mulf %1536, %1269 : vector<8x128xf32>
    %1538 = arith.addf %1535, %1537 : vector<8x128xf32>
    %1539 = vector.broadcast %162 : f32 to vector<8x128xf32>
    %1540 = arith.mulf %1539, %1292 : vector<8x128xf32>
    %1541 = arith.addf %1538, %1540 : vector<8x128xf32>
    %1542 = vector.broadcast %170 : f32 to vector<8x128xf32>
    %1543 = arith.mulf %1542, %1315 : vector<8x128xf32>
    %1544 = arith.addf %1541, %1543 : vector<8x128xf32>
    %1545 = vector.broadcast %178 : f32 to vector<8x128xf32>
    %1546 = arith.mulf %1545, %1338 : vector<8x128xf32>
    %1547 = arith.addf %1544, %1546 : vector<8x128xf32>
    %1548 = vector.broadcast %186 : f32 to vector<8x128xf32>
    %1549 = arith.mulf %1548, %1361 : vector<8x128xf32>
    %1550 = arith.addf %1547, %1549 : vector<8x128xf32>
    %1551 = vector.broadcast %194 : f32 to vector<8x128xf32>
    %1552 = arith.mulf %1551, %1384 : vector<8x128xf32>
    %1553 = arith.addf %1550, %1552 : vector<8x128xf32>
    %1554 = vector.broadcast %202 : f32 to vector<8x128xf32>
    %1555 = arith.mulf %1554, %1407 : vector<8x128xf32>
    %1556 = arith.addf %1553, %1555 : vector<8x128xf32>
    %1557 = vector.broadcast %210 : f32 to vector<8x128xf32>
    %1558 = arith.addf %1556, %1557 : vector<8x128xf32>
    %cst_451 = arith.constant 0.000000e+00 : f32
    %1559 = vector.broadcast %cst_451 : f32 to vector<8x128xf32>
    %1560 = arith.maximumf %1558, %1559 : vector<8x128xf32>
    %1561 = vector.broadcast %83 : f32 to vector<8x128xf32>
    %1562 = arith.mulf %1561, %1062 : vector<8x128xf32>
    %1563 = vector.broadcast %91 : f32 to vector<8x128xf32>
    %1564 = arith.mulf %1563, %1085 : vector<8x128xf32>
    %1565 = arith.addf %1562, %1564 : vector<8x128xf32>
    %1566 = vector.broadcast %99 : f32 to vector<8x128xf32>
    %1567 = arith.mulf %1566, %1108 : vector<8x128xf32>
    %1568 = arith.addf %1565, %1567 : vector<8x128xf32>
    %1569 = vector.broadcast %107 : f32 to vector<8x128xf32>
    %1570 = arith.mulf %1569, %1131 : vector<8x128xf32>
    %1571 = arith.addf %1568, %1570 : vector<8x128xf32>
    %1572 = vector.broadcast %115 : f32 to vector<8x128xf32>
    %1573 = arith.mulf %1572, %1154 : vector<8x128xf32>
    %1574 = arith.addf %1571, %1573 : vector<8x128xf32>
    %1575 = vector.broadcast %123 : f32 to vector<8x128xf32>
    %1576 = arith.mulf %1575, %1177 : vector<8x128xf32>
    %1577 = arith.addf %1574, %1576 : vector<8x128xf32>
    %1578 = vector.broadcast %131 : f32 to vector<8x128xf32>
    %1579 = arith.mulf %1578, %1200 : vector<8x128xf32>
    %1580 = arith.addf %1577, %1579 : vector<8x128xf32>
    %1581 = vector.broadcast %139 : f32 to vector<8x128xf32>
    %1582 = arith.mulf %1581, %1223 : vector<8x128xf32>
    %1583 = arith.addf %1580, %1582 : vector<8x128xf32>
    %1584 = vector.broadcast %147 : f32 to vector<8x128xf32>
    %1585 = arith.mulf %1584, %1246 : vector<8x128xf32>
    %1586 = arith.addf %1583, %1585 : vector<8x128xf32>
    %1587 = vector.broadcast %155 : f32 to vector<8x128xf32>
    %1588 = arith.mulf %1587, %1269 : vector<8x128xf32>
    %1589 = arith.addf %1586, %1588 : vector<8x128xf32>
    %1590 = vector.broadcast %163 : f32 to vector<8x128xf32>
    %1591 = arith.mulf %1590, %1292 : vector<8x128xf32>
    %1592 = arith.addf %1589, %1591 : vector<8x128xf32>
    %1593 = vector.broadcast %171 : f32 to vector<8x128xf32>
    %1594 = arith.mulf %1593, %1315 : vector<8x128xf32>
    %1595 = arith.addf %1592, %1594 : vector<8x128xf32>
    %1596 = vector.broadcast %179 : f32 to vector<8x128xf32>
    %1597 = arith.mulf %1596, %1338 : vector<8x128xf32>
    %1598 = arith.addf %1595, %1597 : vector<8x128xf32>
    %1599 = vector.broadcast %187 : f32 to vector<8x128xf32>
    %1600 = arith.mulf %1599, %1361 : vector<8x128xf32>
    %1601 = arith.addf %1598, %1600 : vector<8x128xf32>
    %1602 = vector.broadcast %195 : f32 to vector<8x128xf32>
    %1603 = arith.mulf %1602, %1384 : vector<8x128xf32>
    %1604 = arith.addf %1601, %1603 : vector<8x128xf32>
    %1605 = vector.broadcast %203 : f32 to vector<8x128xf32>
    %1606 = arith.mulf %1605, %1407 : vector<8x128xf32>
    %1607 = arith.addf %1604, %1606 : vector<8x128xf32>
    %1608 = vector.broadcast %211 : f32 to vector<8x128xf32>
    %1609 = arith.addf %1607, %1608 : vector<8x128xf32>
    %cst_452 = arith.constant 0.000000e+00 : f32
    %1610 = vector.broadcast %cst_452 : f32 to vector<8x128xf32>
    %1611 = arith.maximumf %1609, %1610 : vector<8x128xf32>
    %1612 = vector.broadcast %84 : f32 to vector<8x128xf32>
    %1613 = arith.mulf %1612, %1062 : vector<8x128xf32>
    %1614 = vector.broadcast %92 : f32 to vector<8x128xf32>
    %1615 = arith.mulf %1614, %1085 : vector<8x128xf32>
    %1616 = arith.addf %1613, %1615 : vector<8x128xf32>
    %1617 = vector.broadcast %100 : f32 to vector<8x128xf32>
    %1618 = arith.mulf %1617, %1108 : vector<8x128xf32>
    %1619 = arith.addf %1616, %1618 : vector<8x128xf32>
    %1620 = vector.broadcast %108 : f32 to vector<8x128xf32>
    %1621 = arith.mulf %1620, %1131 : vector<8x128xf32>
    %1622 = arith.addf %1619, %1621 : vector<8x128xf32>
    %1623 = vector.broadcast %116 : f32 to vector<8x128xf32>
    %1624 = arith.mulf %1623, %1154 : vector<8x128xf32>
    %1625 = arith.addf %1622, %1624 : vector<8x128xf32>
    %1626 = vector.broadcast %124 : f32 to vector<8x128xf32>
    %1627 = arith.mulf %1626, %1177 : vector<8x128xf32>
    %1628 = arith.addf %1625, %1627 : vector<8x128xf32>
    %1629 = vector.broadcast %132 : f32 to vector<8x128xf32>
    %1630 = arith.mulf %1629, %1200 : vector<8x128xf32>
    %1631 = arith.addf %1628, %1630 : vector<8x128xf32>
    %1632 = vector.broadcast %140 : f32 to vector<8x128xf32>
    %1633 = arith.mulf %1632, %1223 : vector<8x128xf32>
    %1634 = arith.addf %1631, %1633 : vector<8x128xf32>
    %1635 = vector.broadcast %148 : f32 to vector<8x128xf32>
    %1636 = arith.mulf %1635, %1246 : vector<8x128xf32>
    %1637 = arith.addf %1634, %1636 : vector<8x128xf32>
    %1638 = vector.broadcast %156 : f32 to vector<8x128xf32>
    %1639 = arith.mulf %1638, %1269 : vector<8x128xf32>
    %1640 = arith.addf %1637, %1639 : vector<8x128xf32>
    %1641 = vector.broadcast %164 : f32 to vector<8x128xf32>
    %1642 = arith.mulf %1641, %1292 : vector<8x128xf32>
    %1643 = arith.addf %1640, %1642 : vector<8x128xf32>
    %1644 = vector.broadcast %172 : f32 to vector<8x128xf32>
    %1645 = arith.mulf %1644, %1315 : vector<8x128xf32>
    %1646 = arith.addf %1643, %1645 : vector<8x128xf32>
    %1647 = vector.broadcast %180 : f32 to vector<8x128xf32>
    %1648 = arith.mulf %1647, %1338 : vector<8x128xf32>
    %1649 = arith.addf %1646, %1648 : vector<8x128xf32>
    %1650 = vector.broadcast %188 : f32 to vector<8x128xf32>
    %1651 = arith.mulf %1650, %1361 : vector<8x128xf32>
    %1652 = arith.addf %1649, %1651 : vector<8x128xf32>
    %1653 = vector.broadcast %196 : f32 to vector<8x128xf32>
    %1654 = arith.mulf %1653, %1384 : vector<8x128xf32>
    %1655 = arith.addf %1652, %1654 : vector<8x128xf32>
    %1656 = vector.broadcast %204 : f32 to vector<8x128xf32>
    %1657 = arith.mulf %1656, %1407 : vector<8x128xf32>
    %1658 = arith.addf %1655, %1657 : vector<8x128xf32>
    %1659 = vector.broadcast %212 : f32 to vector<8x128xf32>
    %1660 = arith.addf %1658, %1659 : vector<8x128xf32>
    %cst_453 = arith.constant 0.000000e+00 : f32
    %1661 = vector.broadcast %cst_453 : f32 to vector<8x128xf32>
    %1662 = arith.maximumf %1660, %1661 : vector<8x128xf32>
    %1663 = vector.broadcast %85 : f32 to vector<8x128xf32>
    %1664 = arith.mulf %1663, %1062 : vector<8x128xf32>
    %1665 = vector.broadcast %93 : f32 to vector<8x128xf32>
    %1666 = arith.mulf %1665, %1085 : vector<8x128xf32>
    %1667 = arith.addf %1664, %1666 : vector<8x128xf32>
    %1668 = vector.broadcast %101 : f32 to vector<8x128xf32>
    %1669 = arith.mulf %1668, %1108 : vector<8x128xf32>
    %1670 = arith.addf %1667, %1669 : vector<8x128xf32>
    %1671 = vector.broadcast %109 : f32 to vector<8x128xf32>
    %1672 = arith.mulf %1671, %1131 : vector<8x128xf32>
    %1673 = arith.addf %1670, %1672 : vector<8x128xf32>
    %1674 = vector.broadcast %117 : f32 to vector<8x128xf32>
    %1675 = arith.mulf %1674, %1154 : vector<8x128xf32>
    %1676 = arith.addf %1673, %1675 : vector<8x128xf32>
    %1677 = vector.broadcast %125 : f32 to vector<8x128xf32>
    %1678 = arith.mulf %1677, %1177 : vector<8x128xf32>
    %1679 = arith.addf %1676, %1678 : vector<8x128xf32>
    %1680 = vector.broadcast %133 : f32 to vector<8x128xf32>
    %1681 = arith.mulf %1680, %1200 : vector<8x128xf32>
    %1682 = arith.addf %1679, %1681 : vector<8x128xf32>
    %1683 = vector.broadcast %141 : f32 to vector<8x128xf32>
    %1684 = arith.mulf %1683, %1223 : vector<8x128xf32>
    %1685 = arith.addf %1682, %1684 : vector<8x128xf32>
    %1686 = vector.broadcast %149 : f32 to vector<8x128xf32>
    %1687 = arith.mulf %1686, %1246 : vector<8x128xf32>
    %1688 = arith.addf %1685, %1687 : vector<8x128xf32>
    %1689 = vector.broadcast %157 : f32 to vector<8x128xf32>
    %1690 = arith.mulf %1689, %1269 : vector<8x128xf32>
    %1691 = arith.addf %1688, %1690 : vector<8x128xf32>
    %1692 = vector.broadcast %165 : f32 to vector<8x128xf32>
    %1693 = arith.mulf %1692, %1292 : vector<8x128xf32>
    %1694 = arith.addf %1691, %1693 : vector<8x128xf32>
    %1695 = vector.broadcast %173 : f32 to vector<8x128xf32>
    %1696 = arith.mulf %1695, %1315 : vector<8x128xf32>
    %1697 = arith.addf %1694, %1696 : vector<8x128xf32>
    %1698 = vector.broadcast %181 : f32 to vector<8x128xf32>
    %1699 = arith.mulf %1698, %1338 : vector<8x128xf32>
    %1700 = arith.addf %1697, %1699 : vector<8x128xf32>
    %1701 = vector.broadcast %189 : f32 to vector<8x128xf32>
    %1702 = arith.mulf %1701, %1361 : vector<8x128xf32>
    %1703 = arith.addf %1700, %1702 : vector<8x128xf32>
    %1704 = vector.broadcast %197 : f32 to vector<8x128xf32>
    %1705 = arith.mulf %1704, %1384 : vector<8x128xf32>
    %1706 = arith.addf %1703, %1705 : vector<8x128xf32>
    %1707 = vector.broadcast %205 : f32 to vector<8x128xf32>
    %1708 = arith.mulf %1707, %1407 : vector<8x128xf32>
    %1709 = arith.addf %1706, %1708 : vector<8x128xf32>
    %1710 = vector.broadcast %213 : f32 to vector<8x128xf32>
    %1711 = arith.addf %1709, %1710 : vector<8x128xf32>
    %cst_454 = arith.constant 0.000000e+00 : f32
    %1712 = vector.broadcast %cst_454 : f32 to vector<8x128xf32>
    %1713 = arith.maximumf %1711, %1712 : vector<8x128xf32>
    %1714 = vector.broadcast %86 : f32 to vector<8x128xf32>
    %1715 = arith.mulf %1714, %1062 : vector<8x128xf32>
    %1716 = vector.broadcast %94 : f32 to vector<8x128xf32>
    %1717 = arith.mulf %1716, %1085 : vector<8x128xf32>
    %1718 = arith.addf %1715, %1717 : vector<8x128xf32>
    %1719 = vector.broadcast %102 : f32 to vector<8x128xf32>
    %1720 = arith.mulf %1719, %1108 : vector<8x128xf32>
    %1721 = arith.addf %1718, %1720 : vector<8x128xf32>
    %1722 = vector.broadcast %110 : f32 to vector<8x128xf32>
    %1723 = arith.mulf %1722, %1131 : vector<8x128xf32>
    %1724 = arith.addf %1721, %1723 : vector<8x128xf32>
    %1725 = vector.broadcast %118 : f32 to vector<8x128xf32>
    %1726 = arith.mulf %1725, %1154 : vector<8x128xf32>
    %1727 = arith.addf %1724, %1726 : vector<8x128xf32>
    %1728 = vector.broadcast %126 : f32 to vector<8x128xf32>
    %1729 = arith.mulf %1728, %1177 : vector<8x128xf32>
    %1730 = arith.addf %1727, %1729 : vector<8x128xf32>
    %1731 = vector.broadcast %134 : f32 to vector<8x128xf32>
    %1732 = arith.mulf %1731, %1200 : vector<8x128xf32>
    %1733 = arith.addf %1730, %1732 : vector<8x128xf32>
    %1734 = vector.broadcast %142 : f32 to vector<8x128xf32>
    %1735 = arith.mulf %1734, %1223 : vector<8x128xf32>
    %1736 = arith.addf %1733, %1735 : vector<8x128xf32>
    %1737 = vector.broadcast %150 : f32 to vector<8x128xf32>
    %1738 = arith.mulf %1737, %1246 : vector<8x128xf32>
    %1739 = arith.addf %1736, %1738 : vector<8x128xf32>
    %1740 = vector.broadcast %158 : f32 to vector<8x128xf32>
    %1741 = arith.mulf %1740, %1269 : vector<8x128xf32>
    %1742 = arith.addf %1739, %1741 : vector<8x128xf32>
    %1743 = vector.broadcast %166 : f32 to vector<8x128xf32>
    %1744 = arith.mulf %1743, %1292 : vector<8x128xf32>
    %1745 = arith.addf %1742, %1744 : vector<8x128xf32>
    %1746 = vector.broadcast %174 : f32 to vector<8x128xf32>
    %1747 = arith.mulf %1746, %1315 : vector<8x128xf32>
    %1748 = arith.addf %1745, %1747 : vector<8x128xf32>
    %1749 = vector.broadcast %182 : f32 to vector<8x128xf32>
    %1750 = arith.mulf %1749, %1338 : vector<8x128xf32>
    %1751 = arith.addf %1748, %1750 : vector<8x128xf32>
    %1752 = vector.broadcast %190 : f32 to vector<8x128xf32>
    %1753 = arith.mulf %1752, %1361 : vector<8x128xf32>
    %1754 = arith.addf %1751, %1753 : vector<8x128xf32>
    %1755 = vector.broadcast %198 : f32 to vector<8x128xf32>
    %1756 = arith.mulf %1755, %1384 : vector<8x128xf32>
    %1757 = arith.addf %1754, %1756 : vector<8x128xf32>
    %1758 = vector.broadcast %206 : f32 to vector<8x128xf32>
    %1759 = arith.mulf %1758, %1407 : vector<8x128xf32>
    %1760 = arith.addf %1757, %1759 : vector<8x128xf32>
    %1761 = vector.broadcast %214 : f32 to vector<8x128xf32>
    %1762 = arith.addf %1760, %1761 : vector<8x128xf32>
    %cst_455 = arith.constant 0.000000e+00 : f32
    %1763 = vector.broadcast %cst_455 : f32 to vector<8x128xf32>
    %1764 = arith.maximumf %1762, %1763 : vector<8x128xf32>
    %1765 = vector.broadcast %87 : f32 to vector<8x128xf32>
    %1766 = arith.mulf %1765, %1062 : vector<8x128xf32>
    %1767 = vector.broadcast %95 : f32 to vector<8x128xf32>
    %1768 = arith.mulf %1767, %1085 : vector<8x128xf32>
    %1769 = arith.addf %1766, %1768 : vector<8x128xf32>
    %1770 = vector.broadcast %103 : f32 to vector<8x128xf32>
    %1771 = arith.mulf %1770, %1108 : vector<8x128xf32>
    %1772 = arith.addf %1769, %1771 : vector<8x128xf32>
    %1773 = vector.broadcast %111 : f32 to vector<8x128xf32>
    %1774 = arith.mulf %1773, %1131 : vector<8x128xf32>
    %1775 = arith.addf %1772, %1774 : vector<8x128xf32>
    %1776 = vector.broadcast %119 : f32 to vector<8x128xf32>
    %1777 = arith.mulf %1776, %1154 : vector<8x128xf32>
    %1778 = arith.addf %1775, %1777 : vector<8x128xf32>
    %1779 = vector.broadcast %127 : f32 to vector<8x128xf32>
    %1780 = arith.mulf %1779, %1177 : vector<8x128xf32>
    %1781 = arith.addf %1778, %1780 : vector<8x128xf32>
    %1782 = vector.broadcast %135 : f32 to vector<8x128xf32>
    %1783 = arith.mulf %1782, %1200 : vector<8x128xf32>
    %1784 = arith.addf %1781, %1783 : vector<8x128xf32>
    %1785 = vector.broadcast %143 : f32 to vector<8x128xf32>
    %1786 = arith.mulf %1785, %1223 : vector<8x128xf32>
    %1787 = arith.addf %1784, %1786 : vector<8x128xf32>
    %1788 = vector.broadcast %151 : f32 to vector<8x128xf32>
    %1789 = arith.mulf %1788, %1246 : vector<8x128xf32>
    %1790 = arith.addf %1787, %1789 : vector<8x128xf32>
    %1791 = vector.broadcast %159 : f32 to vector<8x128xf32>
    %1792 = arith.mulf %1791, %1269 : vector<8x128xf32>
    %1793 = arith.addf %1790, %1792 : vector<8x128xf32>
    %1794 = vector.broadcast %167 : f32 to vector<8x128xf32>
    %1795 = arith.mulf %1794, %1292 : vector<8x128xf32>
    %1796 = arith.addf %1793, %1795 : vector<8x128xf32>
    %1797 = vector.broadcast %175 : f32 to vector<8x128xf32>
    %1798 = arith.mulf %1797, %1315 : vector<8x128xf32>
    %1799 = arith.addf %1796, %1798 : vector<8x128xf32>
    %1800 = vector.broadcast %183 : f32 to vector<8x128xf32>
    %1801 = arith.mulf %1800, %1338 : vector<8x128xf32>
    %1802 = arith.addf %1799, %1801 : vector<8x128xf32>
    %1803 = vector.broadcast %191 : f32 to vector<8x128xf32>
    %1804 = arith.mulf %1803, %1361 : vector<8x128xf32>
    %1805 = arith.addf %1802, %1804 : vector<8x128xf32>
    %1806 = vector.broadcast %199 : f32 to vector<8x128xf32>
    %1807 = arith.mulf %1806, %1384 : vector<8x128xf32>
    %1808 = arith.addf %1805, %1807 : vector<8x128xf32>
    %1809 = vector.broadcast %207 : f32 to vector<8x128xf32>
    %1810 = arith.mulf %1809, %1407 : vector<8x128xf32>
    %1811 = arith.addf %1808, %1810 : vector<8x128xf32>
    %1812 = vector.broadcast %215 : f32 to vector<8x128xf32>
    %1813 = arith.addf %1811, %1812 : vector<8x128xf32>
    %cst_456 = arith.constant 0.000000e+00 : f32
    %1814 = vector.broadcast %cst_456 : f32 to vector<8x128xf32>
    %1815 = arith.maximumf %1813, %1814 : vector<8x128xf32>
    %1816 = vector.broadcast %216 : f32 to vector<8x128xf32>
    %1817 = arith.mulf %1816, %1458 : vector<8x128xf32>
    %1818 = vector.broadcast %217 : f32 to vector<8x128xf32>
    %1819 = arith.mulf %1818, %1509 : vector<8x128xf32>
    %1820 = arith.addf %1817, %1819 : vector<8x128xf32>
    %1821 = vector.broadcast %218 : f32 to vector<8x128xf32>
    %1822 = arith.mulf %1821, %1560 : vector<8x128xf32>
    %1823 = arith.addf %1820, %1822 : vector<8x128xf32>
    %1824 = vector.broadcast %219 : f32 to vector<8x128xf32>
    %1825 = arith.mulf %1824, %1611 : vector<8x128xf32>
    %1826 = arith.addf %1823, %1825 : vector<8x128xf32>
    %1827 = vector.broadcast %220 : f32 to vector<8x128xf32>
    %1828 = arith.mulf %1827, %1662 : vector<8x128xf32>
    %1829 = arith.addf %1826, %1828 : vector<8x128xf32>
    %1830 = vector.broadcast %221 : f32 to vector<8x128xf32>
    %1831 = arith.mulf %1830, %1713 : vector<8x128xf32>
    %1832 = arith.addf %1829, %1831 : vector<8x128xf32>
    %1833 = vector.broadcast %222 : f32 to vector<8x128xf32>
    %1834 = arith.mulf %1833, %1764 : vector<8x128xf32>
    %1835 = arith.addf %1832, %1834 : vector<8x128xf32>
    %1836 = vector.broadcast %223 : f32 to vector<8x128xf32>
    %1837 = arith.mulf %1836, %1815 : vector<8x128xf32>
    %1838 = arith.addf %1835, %1837 : vector<8x128xf32>
    %1839 = vector.broadcast %224 : f32 to vector<8x128xf32>
    %1840 = arith.addf %1838, %1839 : vector<8x128xf32>
    %c0_457 = arith.constant 0 : index
    %1841 = arith.index_cast %1036 : i32 to index
    %c0_458 = arith.constant 0 : index
    %1842 = vector.load %arg8[%c0_457, %1841, %c0_458] : memref<1x16x128xf32, #tpu.memory_space<vmem>>, vector<1x8x128xf32>
    %1843 = vector.shape_cast %1842 : vector<1x8x128xf32> to vector<8x128xf32>
    %1844 = vector.shape_cast %1840 : vector<8x128xf32> to vector<1x8x128xf32>
    tpu.vector_store %arg8[%c0_457, %1841, %c0_458], %1844 {strides = array<i32>} : memref<1x16x128xf32, #tpu.memory_space<vmem>>, vector<1x8x128xf32>,
    %c2_i32 = arith.constant 2 : i32
    return
  }
  func.func @transform_0(%arg0: i32, %arg1: i32) -> (i32, i32, i32, i32) {
    %c0_i32 = arith.constant 0 : i32
    %c0_i32_0 = arith.constant 0 : i32
    %c0_i32_1 = arith.constant 0 : i32
    return %arg0, %c0_i32, %arg1, %c0_i32_0 : i32, i32, i32, i32
  }
  func.func @transform_1(%arg0: i32, %arg1: i32) -> (i32, i32) {
    %c0_i32 = arith.constant 0 : i32
    %c0_i32_0 = arith.constant 0 : i32
    %c0_i32_1 = arith.constant 0 : i32
    return %c0_i32, %c0_i32_0 : i32, i32
  }
  func.func @transform_2(%arg0: i32, %arg1: i32) -> i32 {
    %c0_i32 = arith.constant 0 : i32
    %c0_i32_0 = arith.constant 0 : i32
    return %c0_i32 : i32
  }
  func.func @transform_3(%arg0: i32, %arg1: i32) -> (i32, i32) {
    %c0_i32 = arith.constant 0 : i32
    %c0_i32_0 = arith.constant 0 : i32
    %c0_i32_1 = arith.constant 0 : i32
    return %c0_i32, %c0_i32_0 : i32, i32
  }
  func.func @transform_4(%arg0: i32, %arg1: i32) -> i32 {
    %c0_i32 = arith.constant 0 : i32
    %c0_i32_0 = arith.constant 0 : i32
    return %c0_i32 : i32
  }
  func.func @transform_5(%arg0: i32, %arg1: i32) -> i32 {
    %c0_i32 = arith.constant 0 : i32
    %c0_i32_0 = arith.constant 0 : i32
    return %c0_i32 : i32
  }
  func.func @transform_6(%arg0: i32, %arg1: i32) -> (i32, i32, i32) {
    %c0_i32 = arith.constant 0 : i32
    %c0_i32_0 = arith.constant 0 : i32
    return %arg0, %arg1, %c0_i32 : i32, i32, i32
  }
}

</mosaic_0001>

<llo_original>
// kernel: _lambda_.1
$region0: #{_lambda_.1}
  #allocation0 [shape = 'u32[]', space=smem, size = 0x4, offset = 0x4, fixed_abs, tag = 'smem constant byte address 0x4 - core index']
  #allocation1 [shape = 'u32[144,128]{1,0:T(1,128)}', space=vmem, size = 0x12000, scoped, tag = 'internal scratch']
  %s0 = inlined_call_operand.vmem [shape: f32[2,4,16,128], index: 0, kind: input, shape index: {}]
  %s1 = inlined_call_operand.vmem [shape: f32[4,16], index: 1, kind: input, shape index: {}]
  %s2 = inlined_call_operand.vmem [shape: f32[16], index: 2, kind: input, shape index: {}]
  %s3 = inlined_call_operand.vmem [shape: f32[16,8], index: 3, kind: input, shape index: {}]
  %s4 = inlined_call_operand.vmem [shape: f32[8], index: 4, kind: input, shape index: {}]
  %s5 = inlined_call_operand.vmem [shape: f32[9], index: 5, kind: input, shape index: {}]
  %s6 = inlined_call_operand.vmem [shape: f32[2,16,128], index: 6, kind: output, shape index: {}]
  %s7 = sld [smem:[#allocation0]]
  $region77: #{_lambda_.1} parent=0
    _
  %s9 = ssub.s32 1, %s7
  %s10 = scalar_select 0, %s9, %s7
  $region1: #{_lambda_.1} parent=0
    #allocation2 [shape = 'u8[2048]{0}', space=smem, size = 0x800, scoped, tag = 'input window, operand 1, single buffered']
    #allocation3 [shape = 's32[2]{0}', space=sflag, size = 0x8, scoped, tag = 'scoped memory for _lambda_.1']
    #allocation4 [shape = 'u8[512]{0}', space=smem, size = 0x200, scoped, tag = 'input window, operand 2, single buffered']
    #allocation5 [shape = 's32[1]{0}', space=sflag, size = 0x4, scoped, tag = 'scoped memory for _lambda_.1']
    #allocation6 [shape = 'u8[8192]{0}', space=smem, size = 0x2000, scoped, tag = 'input window, operand 3, single buffered']
    #allocation7 [shape = 'u8[512]{0}', space=smem, size = 0x200, scoped, tag = 'input window, operand 4, single buffered']
    #allocation8 [shape = 's32[1]{0}', space=sflag, size = 0x4, scoped, tag = 'scoped memory for _lambda_.1']
    #allocation9 [shape = 'u8[512]{0}', space=smem, size = 0x200, scoped, tag = 'input window, operand 5, single buffered']
    %11 = vsyncpa [#allocation3], 0
    %12 = vsyncpa [#allocation5], 0
    %13 = vsyncpa [#allocation8], 0
    loop: start=0, step=1, limit=4
    $region2: #{_lambda_.1} parent=1 // loop_pre_header
      _
    $region3: #{_lambda_.1} parent=1 // loop_header
      %s15 = sphi 0, %s19
      %p16 = scmp.ge.s32.totalorder %s15, 4
      %s22 = sphi 0, %s34
      %s23 = sphi 0, %s30
      %s24 = sphi 0, %s22
      %s25 = sphi 0, %s23
      %s26 = sphi 0, %s24
      %s27 = sphi 0, %s25
      %s39 = sphi 0, %s41
      %s42 = sphi 0, %s39
      %s43 = sphi 0, %s42
      %s59 = sphi 0, %s43
      %s63 = sphi 0, %s63
      %s65 = sphi 0, %s63
      %s66 = sphi 0, %s65
      %s80 = sphi 0, %s66
      %s84 = sphi 0, %s84
      %s86 = sphi 0, %s84
      %s87 = sphi 0, %s86
      %s101 = sphi 0, %s87
      %s105 = sphi 0, %s105
      %s107 = sphi 0, %s105
      %s108 = sphi 0, %s107
      %s122 = sphi 0, %s108
      %s126 = sphi 0, %s126
      %s128 = sphi 0, %s126
      %s129 = sphi 0, %s128
      %s143 = sphi 0, %s129
      %s147 = sphi 0, %s147
      %s149 = sphi 0, %s147
      %s150 = sphi 0, %s149
      %s164 = sphi 0, %s150
      %s172 = sphi 0, %s174
      %s175 = sphi 0, %s172
      %s176 = sphi 0, %s175
      %s192 = sphi 0, %s176
    $region4: #{_lambda_.1} parent=1 // loop_header_branch
      %18 = sbr.rel (%p16) target = $region8
    $region5: #{_lambda_.1} parent=1 // loop_body
      %s20 = ssub.s32 %s15, 1
      %s21 = ssub.s32 %s15, 2
      %s28 = sadd.s32 1, %s23
      %p29 = scmp.ge.s32.totalorder %s28, 1
      %s30 = scalar_select %p29, 0, %s28
      %s31 = sadd.s32 1, %s22
      %s32 = scalar_select %p29, %s31, %s22
      %p33 = scmp.ge.s32.totalorder %s32, 2
      %s34 = scalar_select %p33, 0, %s32
      %s35 = ssub.s32 %s22, %s34
      %s36 = ssub.s32 %s23, %s30
      %s37 = sor.u32 %s35, %s36
      %p38 = scmp.eq.s32.totalorder %s37, 0
      %s40 = sadd.s32 %s39, 1
      %s41 = scalar_select %p38, %s39, %s40
      %p44 = pneg %p38
      %p45 = scmp.eq.s32.totalorder %s15, 1
      %p46 = por %p44, %p45
      %p47 = scmp.ne.s32.totalorder %s39, %s42
      %p48 = scmp.eq.s32.totalorder %s15, 0
      %p49 = por %p47, %p48
      %p50 = scmp.ne.s32.totalorder %s39, %s42
      %p51 = scmp.eq.s32.totalorder %s20, 1
      %p52 = por %p50, %p51
      %p53 = scmp.ne.s32.totalorder %s42, %s43
      %p54 = scmp.eq.s32.totalorder %s20, 0
      %p55 = por %p53, %p54
      %p56 = scmp.ne.s32.totalorder %s42, %s43
      %p57 = scmp.eq.s32.totalorder %s21, 1
      %p58 = por %p56, %p57
      %p60 = scmp.ne.s32.totalorder %s43, %s59
      %p61 = scmp.eq.s32.totalorder %s21, 0
      %p62 = por %p60, %p61
      %s64 = sadd.s32 %s63, 1
      %p67 = scmp.eq.s32.totalorder %s15, 1
      %p68 = scmp.ne.s32.totalorder %s63, %s65
      %p69 = scmp.eq.s32.totalorder %s15, 0
      %p70 = por %p68, %p69
      %p71 = scmp.ne.s32.totalorder %s63, %s65
      %p72 = scmp.eq.s32.totalorder %s20, 1
      %p73 = por %p71, %p72
      %p74 = scmp.ne.s32.totalorder %s65, %s66
      %p75 = scmp.eq.s32.totalorder %s20, 0
      %p76 = por %p74, %p75
      %p77 = scmp.ne.s32.totalorder %s65, %s66
      %p78 = scmp.eq.s32.totalorder %s21, 1
      %p79 = por %p77, %p78
      %p81 = scmp.ne.s32.totalorder %s66, %s80
      %p82 = scmp.eq.s32.totalorder %s21, 0
      %p83 = por %p81, %p82
      %s85 = sadd.s32 %s84, 1
      %p88 = scmp.eq.s32.totalorder %s15, 1
      %p89 = scmp.ne.s32.totalorder %s84, %s86
      %p90 = scmp.eq.s32.totalorder %s15, 0
      %p91 = por %p89, %p90
      %p92 = scmp.ne.s32.totalorder %s84, %s86
      %p93 = scmp.eq.s32.totalorder %s20, 1
      %p94 = por %p92, %p93
      %p95 = scmp.ne.s32.totalorder %s86, %s87
      %p96 = scmp.eq.s32.totalorder %s20, 0
      %p97 = por %p95, %p96
      %p98 = scmp.ne.s32.totalorder %s86, %s87
      %p99 = scmp.eq.s32.totalorder %s21, 1
      %p100 = por %p98, %p99
      %p102 = scmp.ne.s32.totalorder %s87, %s101
      %p103 = scmp.eq.s32.totalorder %s21, 0
      %p104 = por %p102, %p103
      %s106 = sadd.s32 %s105, 1
      %p109 = scmp.eq.s32.totalorder %s15, 1
      %p110 = scmp.ne.s32.totalorder %s105, %s107
      %p111 = scmp.eq.s32.totalorder %s15, 0
      %p112 = por %p110, %p111
      %p113 = scmp.ne.s32.totalorder %s105, %s107
      %p114 = scmp.eq.s32.totalorder %s20, 1
      %p115 = por %p113, %p114
      %p116 = scmp.ne.s32.totalorder %s107, %s108
      %p117 = scmp.eq.s32.totalorder %s20, 0
      %p118 = por %p116, %p117
      %p119 = scmp.ne.s32.totalorder %s107, %s108
      %p120 = scmp.eq.s32.totalorder %s21, 1
      %p121 = por %p119, %p120
      %p123 = scmp.ne.s32.totalorder %s108, %s122
      %p124 = scmp.eq.s32.totalorder %s21, 0
      %p125 = por %p123, %p124
      %s127 = sadd.s32 %s126, 1
      %p130 = scmp.eq.s32.totalorder %s15, 1
      %p131 = scmp.ne.s32.totalorder %s126, %s128
      %p132 = scmp.eq.s32.totalorder %s15, 0
      %p133 = por %p131, %p132
      %p134 = scmp.ne.s32.totalorder %s126, %s128
      %p135 = scmp.eq.s32.totalorder %s20, 1
      %p136 = por %p134, %p135
      %p137 = scmp.ne.s32.totalorder %s128, %s129
      %p138 = scmp.eq.s32.totalorder %s20, 0
      %p139 = por %p137, %p138
      %p140 = scmp.ne.s32.totalorder %s128, %s129
      %p141 = scmp.eq.s32.totalorder %s21, 1
      %p142 = por %p140, %p141
      %p144 = scmp.ne.s32.totalorder %s129, %s143
      %p145 = scmp.eq.s32.totalorder %s21, 0
      %p146 = por %p144, %p145
      %s148 = sadd.s32 %s147, 1
      %p151 = scmp.eq.s32.totalorder %s15, 1
      %p152 = scmp.ne.s32.totalorder %s147, %s149
      %p153 = scmp.eq.s32.totalorder %s15, 0
      %p154 = por %p152, %p153
      %p155 = scmp.ne.s32.totalorder %s147, %s149
      %p156 = scmp.eq.s32.totalorder %s20, 1
      %p157 = por %p155, %p156
      %p158 = scmp.ne.s32.totalorder %s149, %s150
      %p159 = scmp.eq.s32.totalorder %s20, 0
      %p160 = por %p158, %p159
      %p161 = scmp.ne.s32.totalorder %s149, %s150
      %p162 = scmp.eq.s32.totalorder %s21, 1
      %p163 = por %p161, %p162
      %p165 = scmp.ne.s32.totalorder %s150, %s164
      %p166 = scmp.eq.s32.totalorder %s21, 0
      %p167 = por %p165, %p166
      %s168 = ssub.s32 %s22, %s34
      %s169 = ssub.s32 %s23, %s30
      %s170 = sor.u32 %s168, %s169
      %p171 = scmp.eq.s32.totalorder %s170, 0
      %s173 = sadd.s32 %s172, 1
      %s174 = scalar_select %p171, %s172, %s173
      %p177 = pneg %p171
      %p178 = scmp.eq.s32.totalorder %s15, 1
      %p179 = por %p177, %p178
      %p180 = scmp.ne.s32.totalorder %s172, %s175
      %p181 = scmp.eq.s32.totalorder %s15, 0
      %p182 = por %p180, %p181
      %p183 = scmp.ne.s32.totalorder %s172, %s175
      %p184 = scmp.eq.s32.totalorder %s20, 1
      %p185 = por %p183, %p184
      %p186 = scmp.ne.s32.totalorder %s175, %s176
      %p187 = scmp.eq.s32.totalorder %s20, 0
      %p188 = por %p186, %p187
      %p189 = scmp.ne.s32.totalorder %s175, %s176
      %p190 = scmp.eq.s32.totalorder %s21, 1
      %p191 = por %p189, %p190
      %p193 = scmp.ne.s32.totalorder %s176, %s192
      %p194 = scmp.eq.s32.totalorder %s21, 0
      %p195 = por %p193, %p194
      %p196 = scmp.le.s32.totalorder 1, %s15
      %p197 = scmp.lt.s32.totalorder %s15, 3
      %p198 = pnand %p196, %p197
      %p199 = pneg %p198
      // Predicated region
      $region9: #{_lambda_.1} parent=5 // pred_check
        _
      $region10: #{_lambda_.1} parent=5 // pred_check_branch
        %201 = sbr.rel (%p198) target = $region12
      $region11: #{_lambda_.1} parent=5 // pred_region
        %s202 = ssub.s32 %s15, 1
        // Predicated region
        $region13: #{_lambda_.1} parent=11 // pred_check
          %p203 = pneg %p76
        $region14: #{_lambda_.1} parent=11 // pred_check_branch
          %205 = sbr.rel (%p203) target = $region16
        $region15: #{_lambda_.1} parent=11 // pred_region
          %s207 = ssub.s32 64, 64
          %208 = vsyncadd [#allocation3], %s207
          %s210 = sshll.u32 %s1, 4
          %s211 = int_to_ptr.vmem [resolvable:$true] %s210
          %213 = dma.vmem_to_smem %s211, 64, [#allocation2], [#allocation3]
        $region16: #{_lambda_.1} parent=11 // pred_fallthru
          _
        // Predicated region
        $region17: #{_lambda_.1} parent=11 // pred_check
          %p214 = pneg %p97
        $region18: #{_lambda_.1} parent=11 // pred_check_branch
          %216 = sbr.rel (%p214) target = $region20
        $region19: #{_lambda_.1} parent=11 // pred_region
          %s218 = ssub.s32 16, 16
          %219 = vsyncadd [#allocation5], %s218
          %s221 = sshll.u32 %s2, 4
          %s222 = int_to_ptr.vmem [resolvable:$true] %s221
          %224 = dma.vmem_to_smem %s222, 16, [#allocation4], [#allocation5]
        $region20: #{_lambda_.1} parent=11 // pred_fallthru
          _
        // Predicated region
        $region21: #{_lambda_.1} parent=11 // pred_check
          %p225 = pneg %p118
        $region22: #{_lambda_.1} parent=11 // pred_check_branch
          %227 = sbr.rel (%p225) target = $region24
        $region23: #{_lambda_.1} parent=11 // pred_region
          %s229 = ssub.s32 256, 256
          %230 = vsyncadd [#allocation5], %s229
          %s231 = sshll.u32 %s3, 4
          %s232 = int_to_ptr.vmem [resolvable:$true] %s231
          %237 = dma.vmem_to_smem %s232, 256, [#allocation6], [#allocation5], 128, 128, 8
        $region24: #{_lambda_.1} parent=11 // pred_fallthru
          _
        // Predicated region
        $region25: #{_lambda_.1} parent=11 // pred_check
          %p238 = pneg %p139
        $region26: #{_lambda_.1} parent=11 // pred_check_branch
          %240 = sbr.rel (%p238) target = $region28
        $region27: #{_lambda_.1} parent=11 // pred_region
          %s242 = ssub.s32 16, 16
          %243 = vsyncadd [#allocation8], %s242
          %s245 = sshll.u32 %s4, 4
          %s246 = int_to_ptr.vmem [resolvable:$true] %s245
          %248 = dma.vmem_to_smem %s246, 16, [#allocation7], [#allocation8]
        $region28: #{_lambda_.1} parent=11 // pred_fallthru
          _
        // Predicated region
        $region29: #{_lambda_.1} parent=11 // pred_check
          %p249 = pneg %p160
        $region30: #{_lambda_.1} parent=11 // pred_check_branch
          %251 = sbr.rel (%p249) target = $region32
        $region31: #{_lambda_.1} parent=11 // pred_region
          %s253 = ssub.s32 16, 16
          %254 = vsyncadd [#allocation8], %s253
          %s256 = sshll.u32 %s5, 4
          %s257 = int_to_ptr.vmem [resolvable:$true] %s256
          %259 = dma.vmem_to_smem %s257, 16, [#allocation9], [#allocation8]
        $region32: #{_lambda_.1} parent=11 // pred_fallthru
          _
      $region12: #{_lambda_.1} parent=5 // pred_fallthru
        _
      %p260 = scmp.lt.s32.totalorder %s15, 2
      // Predicated region
      $region33: #{_lambda_.1} parent=5 // pred_check
        %p261 = pneg %p260
      $region34: #{_lambda_.1} parent=5 // pred_check_branch
        %263 = sbr.rel (%p261) target = $region36
      $region35: #{_lambda_.1} parent=5 // pred_region
        // Predicated region
        $region37: #{_lambda_.1} parent=35 // pred_check
          %p264 = pneg %p49
        $region38: #{_lambda_.1} parent=35 // pred_check_branch
          %266 = sbr.rel (%p264) target = $region40
        $region39: #{_lambda_.1} parent=35 // pred_region
          %s267 = smul.u32 2, %s23
          %p268 = scmp.lt.s32.totalorder %s22, 1
          %s269 = scalar_select %p268, %s22, 1
          %p270 = scmp.lt.s32.totalorder %s267, 1
          %s271 = scalar_select %p270, %s267, 1
          %s272 = smul.addr %s269, 8
          %s273 = sadd.s32 %s271, %s272
          %s274 = smul.addr %s273, 8
          %s275 = scalar_lea.vmem %s0, %s274
          %s276 = smul.u32 2, %s23
        $region40: #{_lambda_.1} parent=35 // pred_fallthru
          _
      $region36: #{_lambda_.1} parent=5 // pred_fallthru
        _
      %p277 = scmp.le.s32.totalorder 1, %s15
      %p278 = scmp.lt.s32.totalorder %s15, 3
      %p279 = pnand %p277, %p278
      %p280 = pneg %p279
      // Predicated region
      $region41: #{_lambda_.1} parent=5 // pred_check
        _
      $region42: #{_lambda_.1} parent=5 // pred_check_branch
        %282 = sbr.rel (%p279) target = $region44
      $region43: #{_lambda_.1} parent=5 // pred_region
        %s283 = ssub.s32 %s15, 1
        // Predicated region
        $region45: #{_lambda_.1} parent=43 // pred_check
          %p284 = pneg %p76
        $region46: #{_lambda_.1} parent=43 // pred_check_branch
          %286 = sbr.rel (%p284) target = $region48
        $region47: #{_lambda_.1} parent=43 // pred_region
          %287 = dma.done [#allocation3], 64
        $region48: #{_lambda_.1} parent=43 // pred_fallthru
          _
        // Predicated region
        $region49: #{_lambda_.1} parent=43 // pred_check
          %p288 = pneg %p97
        $region50: #{_lambda_.1} parent=43 // pred_check_branch
          %290 = sbr.rel (%p288) target = $region52
        $region51: #{_lambda_.1} parent=43 // pred_region
          %291 = dma.done [#allocation5], 16
        $region52: #{_lambda_.1} parent=43 // pred_fallthru
          _
        // Predicated region
        $region53: #{_lambda_.1} parent=43 // pred_check
          %p292 = pneg %p118
        $region54: #{_lambda_.1} parent=43 // pred_check_branch
          %294 = sbr.rel (%p292) target = $region56
        $region55: #{_lambda_.1} parent=43 // pred_region
          %295 = dma.done [#allocation5], 256
        $region56: #{_lambda_.1} parent=43 // pred_fallthru
          _
        // Predicated region
        $region57: #{_lambda_.1} parent=43 // pred_check
          %p296 = pneg %p139
        $region58: #{_lambda_.1} parent=43 // pred_check_branch
          %298 = sbr.rel (%p296) target = $region60
        $region59: #{_lambda_.1} parent=43 // pred_region
          %299 = dma.done [#allocation8], 16
        $region60: #{_lambda_.1} parent=43 // pred_fallthru
          _
        // Predicated region
        $region61: #{_lambda_.1} parent=43 // pred_check
          %p300 = pneg %p160
        $region62: #{_lambda_.1} parent=43 // pred_check_branch
          %302 = sbr.rel (%p300) target = $region64
        $region63: #{_lambda_.1} parent=43 // pred_region
          %303 = dma.done [#allocation8], 16
        $region64: #{_lambda_.1} parent=43 // pred_fallthru
          _
        %304 = sfence
        %s305 = smul.u32 2, %s25
        %p306 = scmp.lt.s32.totalorder %s24, 1
        %s307 = scalar_select %p306, %s24, 1
        %p308 = scmp.lt.s32.totalorder %s305, 1
        %s309 = scalar_select %p308, %s305, 1
        %s310 = smul.addr %s307, 8
        %s311 = sadd.s32 %s309, %s310
        %s312 = smul.addr %s311, 8
        %s313 = scalar_lea.vmem %s0, %s312
        %p314 = pneg %p55
        %p315 = pneg %p52
        %p316 = pneg %p76
        %p317 = pneg %p73
        %p318 = pneg %p97
        %p319 = pneg %p94
        %p320 = pneg %p118
        %p321 = pneg %p115
        %p322 = pneg %p139
        %p323 = pneg %p136
        %p324 = pneg %p160
        %p325 = pneg %p157
        %p326 = pneg %p188
        %p327 = pneg %p185
        %s328 = smul.u32 2, %s25
        %p329 = scmp.lt.s32.totalorder %s24, 1
        %s330 = scalar_select %p329, %s24, 1
        %p331 = scmp.lt.s32.totalorder %s328, 1
        %s332 = scalar_select %p331, %s328, 1
        %s333 = smul.addr %s330, 2
        %s334 = sadd.s32 %s332, %s333
        %s335 = smul.addr %s334, 8
        %s336 = scalar_lea.vmem %s6, %s335
        %s337 = smul.u32 2, %s25
        %p338 = scmp.lt.s32.totalorder %s24, 1
        %s339 = scalar_select %p338, %s24, 1
        %p340 = scmp.lt.s32.totalorder %s337, 1
        %s341 = scalar_select %p340, %s337, 1
        %s342 = smul.addr %s339, 8
        %s343 = sadd.s32 %s341, %s342
        %s344 = smul.addr %s343, 8
        %s345 = scalar_lea.vmem %s0, %s344
        %s346 = smul.u32 2, %s25
        %s347 = smul.u32 2, %s25
        %p348 = scmp.lt.s32.totalorder %s24, 1
        %s349 = scalar_select %p348, %s24, 1
        %p350 = scmp.lt.s32.totalorder %s347, 1
        %s351 = scalar_select %p350, %s347, 1
        %s352 = smul.addr %s349, 2
        %s353 = sadd.s32 %s351, %s352
        %s354 = smul.addr %s353, 8
        %s355 = scalar_lea.vmem %s6, %s354
        %s356 = smul.u32 2, %s25
        %s357 = sld [smem:[#allocation2]]
        %s358 = sld [smem:[#allocation2 + $0x1]]
        %s359 = sld [smem:[#allocation2 + $0x2]]
        %s360 = sld [smem:[#allocation2 + $0x3]]
        %s361 = sld [smem:[#allocation2 + $0x4]]
        %s362 = sld [smem:[#allocation2 + $0x5]]
        %s363 = sld [smem:[#allocation2 + $0x6]]
        %s364 = sld [smem:[#allocation2 + $0x7]]
        %s365 = sld [smem:[#allocation2 + $0x8]]
        %s366 = sld [smem:[#allocation2 + $0x9]]
        %s367 = sld [smem:[#allocation2 + $0xa]]
        %s368 = sld [smem:[#allocation2 + $0xb]]
        %s369 = sld [smem:[#allocation2 + $0xc]]
        %s370 = sld [smem:[#allocation2 + $0xd]]
        %s371 = sld [smem:[#allocation2 + $0xe]]
        %s372 = sld [smem:[#allocation2 + $0xf]]
        %s373 = sld [smem:[#allocation2 + $0x80]]
        %s374 = sld [smem:[#allocation2 + $0x81]]
        %s375 = sld [smem:[#allocation2 + $0x82]]
        %s376 = sld [smem:[#allocation2 + $0x83]]
        %s377 = sld [smem:[#allocation2 + $0x84]]
        %s378 = sld [smem:[#allocation2 + $0x85]]
        %s379 = sld [smem:[#allocation2 + $0x86]]
        %s380 = sld [smem:[#allocation2 + $0x87]]
        %s381 = sld [smem:[#allocation2 + $0x88]]
        %s382 = sld [smem:[#allocation2 + $0x89]]
        %s383 = sld [smem:[#allocation2 + $0x8a]]
        %s384 = sld [smem:[#allocation2 + $0x8b]]
        %s385 = sld [smem:[#allocation2 + $0x8c]]
        %s386 = sld [smem:[#allocation2 + $0x8d]]
        %s387 = sld [smem:[#allocation2 + $0x8e]]
        %s388 = sld [smem:[#allocation2 + $0x8f]]
        %s389 = sld [smem:[#allocation2 + $0x100]]
        %s390 = sld [smem:[#allocation2 + $0x101]]
        %s391 = sld [smem:[#allocation2 + $0x102]]
        %s392 = sld [smem:[#allocation2 + $0x103]]
        %s393 = sld [smem:[#allocation2 + $0x104]]
        %s394 = sld [smem:[#allocation2 + $0x105]]
        %s395 = sld [smem:[#allocation2 + $0x106]]
        %s396 = sld [smem:[#allocation2 + $0x107]]
        %s397 = sld [smem:[#allocation2 + $0x108]]
        %s398 = sld [smem:[#allocation2 + $0x109]]
        %s399 = sld [smem:[#allocation2 + $0x10a]]
        %s400 = sld [smem:[#allocation2 + $0x10b]]
        %s401 = sld [smem:[#allocation2 + $0x10c]]
        %s402 = sld [smem:[#allocation2 + $0x10d]]
        %s403 = sld [smem:[#allocation2 + $0x10e]]
        %s404 = sld [smem:[#allocation2 + $0x10f]]
        %s405 = sld [smem:[#allocation2 + $0x180]]
        %s406 = sld [smem:[#allocation2 + $0x181]]
        %s407 = sld [smem:[#allocation2 + $0x182]]
        %s408 = sld [smem:[#allocation2 + $0x183]]
        %s409 = sld [smem:[#allocation2 + $0x184]]
        %s410 = sld [smem:[#allocation2 + $0x185]]
        %s411 = sld [smem:[#allocation2 + $0x186]]
        %s412 = sld [smem:[#allocation2 + $0x187]]
        %s413 = sld [smem:[#allocation2 + $0x188]]
        %s414 = sld [smem:[#allocation2 + $0x189]]
        %s415 = sld [smem:[#allocation2 + $0x18a]]
        %s416 = sld [smem:[#allocation2 + $0x18b]]
        %s417 = sld [smem:[#allocation2 + $0x18c]]
        %s418 = sld [smem:[#allocation2 + $0x18d]]
        %s419 = sld [smem:[#allocation2 + $0x18e]]
        %s420 = sld [smem:[#allocation2 + $0x18f]]
        %s421 = sld [smem:[#allocation4]]
        %s422 = sld [smem:[#allocation4 + $0x1]]
        %s423 = sld [smem:[#allocation4 + $0x2]]
        %s424 = sld [smem:[#allocation4 + $0x3]]
        %s425 = sld [smem:[#allocation4 + $0x4]]
        %s426 = sld [smem:[#allocation4 + $0x5]]
        %s427 = sld [smem:[#allocation4 + $0x6]]
        %s428 = sld [smem:[#allocation4 + $0x7]]
        %s429 = sld [smem:[#allocation4 + $0x8]]
        %s430 = sld [smem:[#allocation4 + $0x9]]
        %s431 = sld [smem:[#allocation4 + $0xa]]
        %s432 = sld [smem:[#allocation4 + $0xb]]
        %s433 = sld [smem:[#allocation4 + $0xc]]
        %s434 = sld [smem:[#allocation4 + $0xd]]
        %s435 = sld [smem:[#allocation4 + $0xe]]
        %s436 = sld [smem:[#allocation4 + $0xf]]
        %s437 = sld [smem:[#allocation6]]
        %s438 = sld [smem:[#allocation6 + $0x1]]
        %s439 = sld [smem:[#allocation6 + $0x2]]
        %s440 = sld [smem:[#allocation6 + $0x3]]
        %s441 = sld [smem:[#allocation6 + $0x4]]
        %s442 = sld [smem:[#allocation6 + $0x5]]
        %s443 = sld [smem:[#allocation6 + $0x6]]
        %s444 = sld [smem:[#allocation6 + $0x7]]
        %s445 = sld [smem:[#allocation6 + $0x80]]
        %s446 = sld [smem:[#allocation6 + $0x81]]
        %s447 = sld [smem:[#allocation6 + $0x82]]
        %s448 = sld [smem:[#allocation6 + $0x83]]
        %s449 = sld [smem:[#allocation6 + $0x84]]
        %s450 = sld [smem:[#allocation6 + $0x85]]
        %s451 = sld [smem:[#allocation6 + $0x86]]
        %s452 = sld [smem:[#allocation6 + $0x87]]
        %s453 = sld [smem:[#allocation6 + $0x100]]
        %s454 = sld [smem:[#allocation6 + $0x101]]
        %s455 = sld [smem:[#allocation6 + $0x102]]
        %s456 = sld [smem:[#allocation6 + $0x103]]
        %s457 = sld [smem:[#allocation6 + $0x104]]
        %s458 = sld [smem:[#allocation6 + $0x105]]
        %s459 = sld [smem:[#allocation6 + $0x106]]
        %s460 = sld [smem:[#allocation6 + $0x107]]
        %s461 = sld [smem:[#allocation6 + $0x180]]
        %s462 = sld [smem:[#allocation6 + $0x181]]
        %s463 = sld [smem:[#allocation6 + $0x182]]
        %s464 = sld [smem:[#allocation6 + $0x183]]
        %s465 = sld [smem:[#allocation6 + $0x184]]
        %s466 = sld [smem:[#allocation6 + $0x185]]
        %s467 = sld [smem:[#allocation6 + $0x186]]
        %s468 = sld [smem:[#allocation6 + $0x187]]
        %s469 = sld [smem:[#allocation6 + $0x200]]
        %s470 = sld [smem:[#allocation6 + $0x201]]
        %s471 = sld [smem:[#allocation6 + $0x202]]
        %s472 = sld [smem:[#allocation6 + $0x203]]
        %s473 = sld [smem:[#allocation6 + $0x204]]
        %s474 = sld [smem:[#allocation6 + $0x205]]
        %s475 = sld [smem:[#allocation6 + $0x206]]
        %s476 = sld [smem:[#allocation6 + $0x207]]
        %s477 = sld [smem:[#allocation6 + $0x280]]
        %s478 = sld [smem:[#allocation6 + $0x281]]
        %s479 = sld [smem:[#allocation6 + $0x282]]
        %s480 = sld [smem:[#allocation6 + $0x283]]
        %s481 = sld [smem:[#allocation6 + $0x284]]
        %s482 = sld [smem:[#allocation6 + $0x285]]
        %s483 = sld [smem:[#allocation6 + $0x286]]
        %s484 = sld [smem:[#allocation6 + $0x287]]
        %s485 = sld [smem:[#allocation6 + $0x300]]
        %s486 = sld [smem:[#allocation6 + $0x301]]
        %s487 = sld [smem:[#allocation6 + $0x302]]
        %s488 = sld [smem:[#allocation6 + $0x303]]
        %s489 = sld [smem:[#allocation6 + $0x304]]
        %s490 = sld [smem:[#allocation6 + $0x305]]
        %s491 = sld [smem:[#allocation6 + $0x306]]
        %s492 = sld [smem:[#allocation6 + $0x307]]
        %s493 = sld [smem:[#allocation6 + $0x380]]
        %s494 = sld [smem:[#allocation6 + $0x381]]
        %s495 = sld [smem:[#allocation6 + $0x382]]
        %s496 = sld [smem:[#allocation6 + $0x383]]
        %s497 = sld [smem:[#allocation6 + $0x384]]
        %s498 = sld [smem:[#allocation6 + $0x385]]
        %s499 = sld [smem:[#allocation6 + $0x386]]
        %s500 = sld [smem:[#allocation6 + $0x387]]
        %s501 = sld [smem:[#allocation6 + $0x400]]
        %s502 = sld [smem:[#allocation6 + $0x401]]
        %s503 = sld [smem:[#allocation6 + $0x402]]
        %s504 = sld [smem:[#allocation6 + $0x403]]
        %s505 = sld [smem:[#allocation6 + $0x404]]
        %s506 = sld [smem:[#allocation6 + $0x405]]
        %s507 = sld [smem:[#allocation6 + $0x406]]
        %s508 = sld [smem:[#allocation6 + $0x407]]
        %s509 = sld [smem:[#allocation6 + $0x480]]
        %s510 = sld [smem:[#allocation6 + $0x481]]
        %s511 = sld [smem:[#allocation6 + $0x482]]
        %s512 = sld [smem:[#allocation6 + $0x483]]
        %s513 = sld [smem:[#allocation6 + $0x484]]
        %s514 = sld [smem:[#allocation6 + $0x485]]
        %s515 = sld [smem:[#allocation6 + $0x486]]
        %s516 = sld [smem:[#allocation6 + $0x487]]
        %s517 = sld [smem:[#allocation6 + $0x500]]
        %s518 = sld [smem:[#allocation6 + $0x501]]
        %s519 = sld [smem:[#allocation6 + $0x502]]
        %s520 = sld [smem:[#allocation6 + $0x503]]
        %s521 = sld [smem:[#allocation6 + $0x504]]
        %s522 = sld [smem:[#allocation6 + $0x505]]
        %s523 = sld [smem:[#allocation6 + $0x506]]
        %s524 = sld [smem:[#allocation6 + $0x507]]
        %s525 = sld [smem:[#allocation6 + $0x580]]
        %s526 = sld [smem:[#allocation6 + $0x581]]
        %s527 = sld [smem:[#allocation6 + $0x582]]
        %s528 = sld [smem:[#allocation6 + $0x583]]
        %s529 = sld [smem:[#allocation6 + $0x584]]
        %s530 = sld [smem:[#allocation6 + $0x585]]
        %s531 = sld [smem:[#allocation6 + $0x586]]
        %s532 = sld [smem:[#allocation6 + $0x587]]
        %s533 = sld [smem:[#allocation6 + $0x600]]
        %s534 = sld [smem:[#allocation6 + $0x601]]
        %s535 = sld [smem:[#allocation6 + $0x602]]
        %s536 = sld [smem:[#allocation6 + $0x603]]
        %s537 = sld [smem:[#allocation6 + $0x604]]
        %s538 = sld [smem:[#allocation6 + $0x605]]
        %s539 = sld [smem:[#allocation6 + $0x606]]
        %s540 = sld [smem:[#allocation6 + $0x607]]
        %s541 = sld [smem:[#allocation6 + $0x680]]
        %s542 = sld [smem:[#allocation6 + $0x681]]
        %s543 = sld [smem:[#allocation6 + $0x682]]
        %s544 = sld [smem:[#allocation6 + $0x683]]
        %s545 = sld [smem:[#allocation6 + $0x684]]
        %s546 = sld [smem:[#allocation6 + $0x685]]
        %s547 = sld [smem:[#allocation6 + $0x686]]
        %s548 = sld [smem:[#allocation6 + $0x687]]
        %s549 = sld [smem:[#allocation6 + $0x700]]
        %s550 = sld [smem:[#allocation6 + $0x701]]
        %s551 = sld [smem:[#allocation6 + $0x702]]
        %s552 = sld [smem:[#allocation6 + $0x703]]
        %s553 = sld [smem:[#allocation6 + $0x704]]
        %s554 = sld [smem:[#allocation6 + $0x705]]
        %s555 = sld [smem:[#allocation6 + $0x706]]
        %s556 = sld [smem:[#allocation6 + $0x707]]
        %s557 = sld [smem:[#allocation6 + $0x780]]
        %s558 = sld [smem:[#allocation6 + $0x781]]
        %s559 = sld [smem:[#allocation6 + $0x782]]
        %s560 = sld [smem:[#allocation6 + $0x783]]
        %s561 = sld [smem:[#allocation6 + $0x784]]
        %s562 = sld [smem:[#allocation6 + $0x785]]
        %s563 = sld [smem:[#allocation6 + $0x786]]
        %s564 = sld [smem:[#allocation6 + $0x787]]
        %s565 = sld [smem:[#allocation7]]
        %s566 = sld [smem:[#allocation7 + $0x1]]
        %s567 = sld [smem:[#allocation7 + $0x2]]
        %s568 = sld [smem:[#allocation7 + $0x3]]
        %s569 = sld [smem:[#allocation7 + $0x4]]
        %s570 = sld [smem:[#allocation7 + $0x5]]
        %s571 = sld [smem:[#allocation7 + $0x6]]
        %s572 = sld [smem:[#allocation7 + $0x7]]
        %s573 = sld [smem:[#allocation9]]
        %s574 = sld [smem:[#allocation9 + $0x1]]
        %s575 = sld [smem:[#allocation9 + $0x2]]
        %s576 = sld [smem:[#allocation9 + $0x3]]
        %s577 = sld [smem:[#allocation9 + $0x4]]
        %s578 = sld [smem:[#allocation9 + $0x5]]
        %s579 = sld [smem:[#allocation9 + $0x6]]
        %s580 = sld [smem:[#allocation9 + $0x7]]
        %s581 = sld [smem:[#allocation9 + $0x8]]
        %v582 = vld [vmem:[%s345] sm:$0xff]
        %v583 = vld [vmem:[%s345 + $0x10] sm:$0xff]
        %v584 = vld [vmem:[%s345 + $0x20] sm:$0xff]
        %v585 = vld [vmem:[%s345 + $0x30] sm:$0xff]
        %v586 = vstv %s357
        %v587 = vmul.f32 %v586, %v582
        %v588 = vstv %s373
        %v589 = vmul.f32 %v588, %v583
        %v590 = vadd.f32 %v587, %v589
        %v591 = vstv %s389
        %v592 = vmul.f32 %v591, %v584
        %v593 = vadd.f32 %v590, %v592
        %v594 = vstv %s405
        %v595 = vmul.f32 %v594, %v585
        %v596 = vadd.f32 %v593, %v595
        %v597 = vstv %s421
        %v598 = vadd.f32 %v596, %v597
        %v599 = vmax.f32 %v598, 0.0
        %v600 = vstv %s358
        %v601 = vmul.f32 %v600, %v582
        %v602 = vstv %s374
        %v603 = vmul.f32 %v602, %v583
        %v604 = vadd.f32 %v601, %v603
        %v605 = vstv %s390
        %v606 = vmul.f32 %v605, %v584
        %v607 = vadd.f32 %v604, %v606
        %v608 = vstv %s406
        %v609 = vmul.f32 %v608, %v585
        %v610 = vadd.f32 %v607, %v609
        %v611 = vstv %s422
        %v612 = vadd.f32 %v610, %v611
        %v613 = vmax.f32 %v612, 0.0
        %v614 = vstv %s359
        %v615 = vmul.f32 %v614, %v582
        %v616 = vstv %s375
        %v617 = vmul.f32 %v616, %v583
        %v618 = vadd.f32 %v615, %v617
        %v619 = vstv %s391
        %v620 = vmul.f32 %v619, %v584
        %v621 = vadd.f32 %v618, %v620
        %v622 = vstv %s407
        %v623 = vmul.f32 %v622, %v585
        %v624 = vadd.f32 %v621, %v623
        %v625 = vstv %s423
        %v626 = vadd.f32 %v624, %v625
        %v627 = vmax.f32 %v626, 0.0
        %v628 = vstv %s360
        %v629 = vmul.f32 %v628, %v582
        %v630 = vstv %s376
        %v631 = vmul.f32 %v630, %v583
        %v632 = vadd.f32 %v629, %v631
        %v633 = vstv %s392
        %v634 = vmul.f32 %v633, %v584
        %v635 = vadd.f32 %v632, %v634
        %v636 = vstv %s408
        %v637 = vmul.f32 %v636, %v585
        %v638 = vadd.f32 %v635, %v637
        %v639 = vstv %s424
        %v640 = vadd.f32 %v638, %v639
        %v641 = vmax.f32 %v640, 0.0
        %v642 = vstv %s361
        %v643 = vmul.f32 %v642, %v582
        %v644 = vstv %s377
        %v645 = vmul.f32 %v644, %v583
        %v646 = vadd.f32 %v643, %v645
        %v647 = vstv %s393
        %v648 = vmul.f32 %v647, %v584
        %v649 = vadd.f32 %v646, %v648
        %v650 = vstv %s409
        %v651 = vmul.f32 %v650, %v585
        %v652 = vadd.f32 %v649, %v651
        %v653 = vstv %s425
        %v654 = vadd.f32 %v652, %v653
        %v655 = vmax.f32 %v654, 0.0
        %v656 = vstv %s362
        %v657 = vmul.f32 %v656, %v582
        %v658 = vstv %s378
        %v659 = vmul.f32 %v658, %v583
        %v660 = vadd.f32 %v657, %v659
        %v661 = vstv %s394
        %v662 = vmul.f32 %v661, %v584
        %v663 = vadd.f32 %v660, %v662
        %v664 = vstv %s410
        %v665 = vmul.f32 %v664, %v585
        %v666 = vadd.f32 %v663, %v665
        %v667 = vstv %s426
        %v668 = vadd.f32 %v666, %v667
        %v669 = vmax.f32 %v668, 0.0
        %v670 = vstv %s363
        %v671 = vmul.f32 %v670, %v582
        %v672 = vstv %s379
        %v673 = vmul.f32 %v672, %v583
        %v674 = vadd.f32 %v671, %v673
        %v675 = vstv %s395
        %v676 = vmul.f32 %v675, %v584
        %v677 = vadd.f32 %v674, %v676
        %v678 = vstv %s411
        %v679 = vmul.f32 %v678, %v585
        %v680 = vadd.f32 %v677, %v679
        %v681 = vstv %s427
        %v682 = vadd.f32 %v680, %v681
        %v683 = vmax.f32 %v682, 0.0
        %v684 = vstv %s364
        %v685 = vmul.f32 %v684, %v582
        %v686 = vstv %s380
        %v687 = vmul.f32 %v686, %v583
        %v688 = vadd.f32 %v685, %v687
        %v689 = vstv %s396
        %v690 = vmul.f32 %v689, %v584
        %v691 = vadd.f32 %v688, %v690
        %v692 = vstv %s412
        %v693 = vmul.f32 %v692, %v585
        %v694 = vadd.f32 %v691, %v693
        %v695 = vstv %s428
        %v696 = vadd.f32 %v694, %v695
        %v697 = vmax.f32 %v696, 0.0
        %v698 = vstv %s365
        %v699 = vmul.f32 %v698, %v582
        %v700 = vstv %s381
        %v701 = vmul.f32 %v700, %v583
        %v702 = vadd.f32 %v699, %v701
        %v703 = vstv %s397
        %v704 = vmul.f32 %v703, %v584
        %v705 = vadd.f32 %v702, %v704
        %v706 = vstv %s413
        %v707 = vmul.f32 %v706, %v585
        %v708 = vadd.f32 %v705, %v707
        %v709 = vstv %s429
        %v710 = vadd.f32 %v708, %v709
        %v711 = vmax.f32 %v710, 0.0
        %v712 = vstv %s366
        %v713 = vmul.f32 %v712, %v582
        %v714 = vstv %s382
        %v715 = vmul.f32 %v714, %v583
        %v716 = vadd.f32 %v713, %v715
        %v717 = vstv %s398
        %v718 = vmul.f32 %v717, %v584
        %v719 = vadd.f32 %v716, %v718
        %v720 = vstv %s414
        %v721 = vmul.f32 %v720, %v585
        %v722 = vadd.f32 %v719, %v721
        %v723 = vstv %s430
        %v724 = vadd.f32 %v722, %v723
        %v725 = vmax.f32 %v724, 0.0
        %v726 = vstv %s367
        %v727 = vmul.f32 %v726, %v582
        %v728 = vstv %s383
        %v729 = vmul.f32 %v728, %v583
        %v730 = vadd.f32 %v727, %v729
        %v731 = vstv %s399
        %v732 = vmul.f32 %v731, %v584
        %v733 = vadd.f32 %v730, %v732
        %v734 = vstv %s415
        %v735 = vmul.f32 %v734, %v585
        %v736 = vadd.f32 %v733, %v735
        %v737 = vstv %s431
        %v738 = vadd.f32 %v736, %v737
        %v739 = vmax.f32 %v738, 0.0
        %v740 = vstv %s368
        %v741 = vmul.f32 %v740, %v582
        %v742 = vstv %s384
        %v743 = vmul.f32 %v742, %v583
        %v744 = vadd.f32 %v741, %v743
        %v745 = vstv %s400
        %v746 = vmul.f32 %v745, %v584
        %v747 = vadd.f32 %v744, %v746
        %v748 = vstv %s416
        %v749 = vmul.f32 %v748, %v585
        %v750 = vadd.f32 %v747, %v749
        %v751 = vstv %s432
        %v752 = vadd.f32 %v750, %v751
        %v753 = vmax.f32 %v752, 0.0
        %v754 = vstv %s369
        %v755 = vmul.f32 %v754, %v582
        %v756 = vstv %s385
        %v757 = vmul.f32 %v756, %v583
        %v758 = vadd.f32 %v755, %v757
        %v759 = vstv %s401
        %v760 = vmul.f32 %v759, %v584
        %v761 = vadd.f32 %v758, %v760
        %v762 = vstv %s417
        %v763 = vmul.f32 %v762, %v585
        %v764 = vadd.f32 %v761, %v763
        %v765 = vstv %s433
        %v766 = vadd.f32 %v764, %v765
        %v767 = vmax.f32 %v766, 0.0
        %v768 = vstv %s370
        %v769 = vmul.f32 %v768, %v582
        %v770 = vstv %s386
        %v771 = vmul.f32 %v770, %v583
        %v772 = vadd.f32 %v769, %v771
        %v773 = vstv %s402
        %v774 = vmul.f32 %v773, %v584
        %v775 = vadd.f32 %v772, %v774
        %v776 = vstv %s418
        %v777 = vmul.f32 %v776, %v585
        %v778 = vadd.f32 %v775, %v777
        %v779 = vstv %s434
        %v780 = vadd.f32 %v778, %v779
        %v781 = vmax.f32 %v780, 0.0
        %v782 = vstv %s371
        %v783 = vmul.f32 %v782, %v582
        %v784 = vstv %s387
        %v785 = vmul.f32 %v784, %v583
        %v786 = vadd.f32 %v783, %v785
        %v787 = vstv %s403
        %v788 = vmul.f32 %v787, %v584
        %v789 = vadd.f32 %v786, %v788
        %v790 = vstv %s419
        %v791 = vmul.f32 %v790, %v585
        %v792 = vadd.f32 %v789, %v791
        %v793 = vstv %s435
        %v794 = vadd.f32 %v792, %v793
        %v795 = vmax.f32 %v794, 0.0
        %v796 = vstv %s372
        %v797 = vmul.f32 %v796, %v582
        %v798 = vstv %s388
        %v799 = vmul.f32 %v798, %v583
        %v800 = vadd.f32 %v797, %v799
        %v801 = vstv %s404
        %v802 = vmul.f32 %v801, %v584
        %v803 = vadd.f32 %v800, %v802
        %v804 = vstv %s420
        %v805 = vmul.f32 %v804, %v585
        %v806 = vadd.f32 %v803, %v805
        %v807 = vstv %s436
        %v808 = vadd.f32 %v806, %v807
        %v809 = vmax.f32 %v808, 0.0
        %v810 = vstv %s437
        %v811 = vmul.f32 %v810, %v599
        %v812 = vstv %s445
        %v813 = vmul.f32 %v812, %v613
        %v814 = vadd.f32 %v811, %v813
        %v815 = vstv %s453
        %v816 = vmul.f32 %v815, %v627
        %v817 = vadd.f32 %v814, %v816
        %v818 = vstv %s461
        %v819 = vmul.f32 %v818, %v641
        %v820 = vadd.f32 %v817, %v819
        %v821 = vstv %s469
        %v822 = vmul.f32 %v821, %v655
        %v823 = vadd.f32 %v820, %v822
        %v824 = vstv %s477
        %v825 = vmul.f32 %v824, %v669
        %v826 = vadd.f32 %v823, %v825
        %v827 = vstv %s485
        %v828 = vmul.f32 %v827, %v683
        %v829 = vadd.f32 %v826, %v828
        %v830 = vstv %s493
        %v831 = vmul.f32 %v830, %v697
        %v832 = vadd.f32 %v829, %v831
        %v833 = vstv %s501
        %v834 = vmul.f32 %v833, %v711
        %v835 = vadd.f32 %v832, %v834
        %v836 = vstv %s509
        %v837 = vmul.f32 %v836, %v725
        %v838 = vadd.f32 %v835, %v837
        %v839 = vstv %s517
        %v840 = vmul.f32 %v839, %v739
        %v841 = vadd.f32 %v838, %v840
        %v842 = vstv %s525
        %v843 = vmul.f32 %v842, %v753
        %v844 = vadd.f32 %v841, %v843
        %v845 = vstv %s533
        %v846 = vmul.f32 %v845, %v767
        %v847 = vadd.f32 %v844, %v846
        %v848 = vstv %s541
        %v849 = vmul.f32 %v848, %v781
        %v850 = vadd.f32 %v847, %v849
        %v851 = vstv %s549
        %v852 = vmul.f32 %v851, %v795
        %v853 = vadd.f32 %v850, %v852
        %v854 = vstv %s557
        %v855 = vmul.f32 %v854, %v809
        %v856 = vadd.f32 %v853, %v855
        %v857 = vstv %s565
        %v858 = vadd.f32 %v856, %v857
        %v859 = vmax.f32 %v858, 0.0
        %v860 = vstv %s438
        %v861 = vmul.f32 %v860, %v599
        %v862 = vstv %s446
        %v863 = vmul.f32 %v862, %v613
        %v864 = vadd.f32 %v861, %v863
        %v865 = vstv %s454
        %v866 = vmul.f32 %v865, %v627
        %v867 = vadd.f32 %v864, %v866
        %v868 = vstv %s462
        %v869 = vmul.f32 %v868, %v641
        %v870 = vadd.f32 %v867, %v869
        %v871 = vstv %s470
        %v872 = vmul.f32 %v871, %v655
        %v873 = vadd.f32 %v870, %v872
        %v874 = vstv %s478
        %v875 = vmul.f32 %v874, %v669
        %v876 = vadd.f32 %v873, %v875
        %v877 = vstv %s486
        %v878 = vmul.f32 %v877, %v683
        %v879 = vadd.f32 %v876, %v878
        %v880 = vstv %s494
        %v881 = vmul.f32 %v880, %v697
        %v882 = vadd.f32 %v879, %v881
        %v883 = vstv %s502
        %v884 = vmul.f32 %v883, %v711
        %v885 = vadd.f32 %v882, %v884
        %v886 = vstv %s510
        %v887 = vmul.f32 %v886, %v725
        %v888 = vadd.f32 %v885, %v887
        %v889 = vstv %s518
        %v890 = vmul.f32 %v889, %v739
        %v891 = vadd.f32 %v888, %v890
        %v892 = vstv %s526
        %v893 = vmul.f32 %v892, %v753
        %v894 = vadd.f32 %v891, %v893
        %v895 = vstv %s534
        %v896 = vmul.f32 %v895, %v767
        %v897 = vadd.f32 %v894, %v896
        %v898 = vstv %s542
        %v899 = vmul.f32 %v898, %v781
        %v900 = vadd.f32 %v897, %v899
        %v901 = vstv %s550
        %v902 = vmul.f32 %v901, %v795
        %v903 = vadd.f32 %v900, %v902
        %v904 = vstv %s558
        %v905 = vmul.f32 %v904, %v809
        %v906 = vadd.f32 %v903, %v905
        %v907 = vstv %s566
        %v908 = vadd.f32 %v906, %v907
        %v909 = vmax.f32 %v908, 0.0
        %v910 = vstv %s439
        %v911 = vmul.f32 %v910, %v599
        %v912 = vstv %s447
        %v913 = vmul.f32 %v912, %v613
        %v914 = vadd.f32 %v911, %v913
        %v915 = vstv %s455
        %v916 = vmul.f32 %v915, %v627
        %v917 = vadd.f32 %v914, %v916
        %v918 = vstv %s463
        %v919 = vmul.f32 %v918, %v641
        %v920 = vadd.f32 %v917, %v919
        %v921 = vstv %s471
        %v922 = vmul.f32 %v921, %v655
        %v923 = vadd.f32 %v920, %v922
        %v924 = vstv %s479
        %v925 = vmul.f32 %v924, %v669
        %v926 = vadd.f32 %v923, %v925
        %v927 = vstv %s487
        %v928 = vmul.f32 %v927, %v683
        %v929 = vadd.f32 %v926, %v928
        %v930 = vstv %s495
        %v931 = vmul.f32 %v930, %v697
        %v932 = vadd.f32 %v929, %v931
        %v933 = vstv %s503
        %v934 = vmul.f32 %v933, %v711
        %v935 = vadd.f32 %v932, %v934
        %v936 = vstv %s511
        %v937 = vmul.f32 %v936, %v725
        %v938 = vadd.f32 %v935, %v937
        %v939 = vstv %s519
        %v940 = vmul.f32 %v939, %v739
        %v941 = vadd.f32 %v938, %v940
        %v942 = vstv %s527
        %v943 = vmul.f32 %v942, %v753
        %v944 = vadd.f32 %v941, %v943
        %v945 = vstv %s535
        %v946 = vmul.f32 %v945, %v767
        %v947 = vadd.f32 %v944, %v946
        %v948 = vstv %s543
        %v949 = vmul.f32 %v948, %v781
        %v950 = vadd.f32 %v947, %v949
        %v951 = vstv %s551
        %v952 = vmul.f32 %v951, %v795
        %v953 = vadd.f32 %v950, %v952
        %v954 = vstv %s559
        %v955 = vmul.f32 %v954, %v809
        %v956 = vadd.f32 %v953, %v955
        %v957 = vstv %s567
        %v958 = vadd.f32 %v956, %v957
        %v959 = vmax.f32 %v958, 0.0
        %v960 = vstv %s440
        %v961 = vmul.f32 %v960, %v599
        %v962 = vstv %s448
        %v963 = vmul.f32 %v962, %v613
        %v964 = vadd.f32 %v961, %v963
        %v965 = vstv %s456
        %v966 = vmul.f32 %v965, %v627
        %v967 = vadd.f32 %v964, %v966
        %v968 = vstv %s464
        %v969 = vmul.f32 %v968, %v641
        %v970 = vadd.f32 %v967, %v969
        %v971 = vstv %s472
        %v972 = vmul.f32 %v971, %v655
        %v973 = vadd.f32 %v970, %v972
        %v974 = vstv %s480
        %v975 = vmul.f32 %v974, %v669
        %v976 = vadd.f32 %v973, %v975
        %v977 = vstv %s488
        %v978 = vmul.f32 %v977, %v683
        %v979 = vadd.f32 %v976, %v978
        %v980 = vstv %s496
        %v981 = vmul.f32 %v980, %v697
        %v982 = vadd.f32 %v979, %v981
        %v983 = vstv %s504
        %v984 = vmul.f32 %v983, %v711
        %v985 = vadd.f32 %v982, %v984
        %v986 = vstv %s512
        %v987 = vmul.f32 %v986, %v725
        %v988 = vadd.f32 %v985, %v987
        %v989 = vstv %s520
        %v990 = vmul.f32 %v989, %v739
        %v991 = vadd.f32 %v988, %v990
        %v992 = vstv %s528
        %v993 = vmul.f32 %v992, %v753
        %v994 = vadd.f32 %v991, %v993
        %v995 = vstv %s536
        %v996 = vmul.f32 %v995, %v767
        %v997 = vadd.f32 %v994, %v996
        %v998 = vstv %s544
        %v999 = vmul.f32 %v998, %v781
        %v1000 = vadd.f32 %v997, %v999
        %v1001 = vstv %s552
        %v1002 = vmul.f32 %v1001, %v795
        %v1003 = vadd.f32 %v1000, %v1002
        %v1004 = vstv %s560
        %v1005 = vmul.f32 %v1004, %v809
        %v1006 = vadd.f32 %v1003, %v1005
        %v1007 = vstv %s568
        %v1008 = vadd.f32 %v1006, %v1007
        %v1009 = vmax.f32 %v1008, 0.0
        %v1010 = vstv %s441
        %v1011 = vmul.f32 %v1010, %v599
        %v1012 = vstv %s449
        %v1013 = vmul.f32 %v1012, %v613
        %v1014 = vadd.f32 %v1011, %v1013
        %v1015 = vstv %s457
        %v1016 = vmul.f32 %v1015, %v627
        %v1017 = vadd.f32 %v1014, %v1016
        %v1018 = vstv %s465
        %v1019 = vmul.f32 %v1018, %v641
        %v1020 = vadd.f32 %v1017, %v1019
        %v1021 = vstv %s473
        %v1022 = vmul.f32 %v1021, %v655
        %v1023 = vadd.f32 %v1020, %v1022
        %v1024 = vstv %s481
        %v1025 = vmul.f32 %v1024, %v669
        %v1026 = vadd.f32 %v1023, %v1025
        %v1027 = vstv %s489
        %v1028 = vmul.f32 %v1027, %v683
        %v1029 = vadd.f32 %v1026, %v1028
        %v1030 = vstv %s497
        %v1031 = vmul.f32 %v1030, %v697
        %v1032 = vadd.f32 %v1029, %v1031
        %v1033 = vstv %s505
        %v1034 = vmul.f32 %v1033, %v711
        %v1035 = vadd.f32 %v1032, %v1034
        %v1036 = vstv %s513
        %v1037 = vmul.f32 %v1036, %v725
        %v1038 = vadd.f32 %v1035, %v1037
        %v1039 = vstv %s521
        %v1040 = vmul.f32 %v1039, %v739
        %v1041 = vadd.f32 %v1038, %v1040
        %v1042 = vstv %s529
        %v1043 = vmul.f32 %v1042, %v753
        %v1044 = vadd.f32 %v1041, %v1043
        %v1045 = vstv %s537
        %v1046 = vmul.f32 %v1045, %v767
        %v1047 = vadd.f32 %v1044, %v1046
        %v1048 = vstv %s545
        %v1049 = vmul.f32 %v1048, %v781
        %v1050 = vadd.f32 %v1047, %v1049
        %v1051 = vstv %s553
        %v1052 = vmul.f32 %v1051, %v795
        %v1053 = vadd.f32 %v1050, %v1052
        %v1054 = vstv %s561
        %v1055 = vmul.f32 %v1054, %v809
        %v1056 = vadd.f32 %v1053, %v1055
        %v1057 = vstv %s569
        %v1058 = vadd.f32 %v1056, %v1057
        %v1059 = vmax.f32 %v1058, 0.0
        %v1060 = vstv %s442
        %v1061 = vmul.f32 %v1060, %v599
        %v1062 = vstv %s450
        %v1063 = vmul.f32 %v1062, %v613
        %v1064 = vadd.f32 %v1061, %v1063
        %v1065 = vstv %s458
        %v1066 = vmul.f32 %v1065, %v627
        %v1067 = vadd.f32 %v1064, %v1066
        %v1068 = vstv %s466
        %v1069 = vmul.f32 %v1068, %v641
        %v1070 = vadd.f32 %v1067, %v1069
        %v1071 = vstv %s474
        %v1072 = vmul.f32 %v1071, %v655
        %v1073 = vadd.f32 %v1070, %v1072
        %v1074 = vstv %s482
        %v1075 = vmul.f32 %v1074, %v669
        %v1076 = vadd.f32 %v1073, %v1075
        %v1077 = vstv %s490
        %v1078 = vmul.f32 %v1077, %v683
        %v1079 = vadd.f32 %v1076, %v1078
        %v1080 = vstv %s498
        %v1081 = vmul.f32 %v1080, %v697
        %v1082 = vadd.f32 %v1079, %v1081
        %v1083 = vstv %s506
        %v1084 = vmul.f32 %v1083, %v711
        %v1085 = vadd.f32 %v1082, %v1084
        %v1086 = vstv %s514
        %v1087 = vmul.f32 %v1086, %v725
        %v1088 = vadd.f32 %v1085, %v1087
        %v1089 = vstv %s522
        %v1090 = vmul.f32 %v1089, %v739
        %v1091 = vadd.f32 %v1088, %v1090
        %v1092 = vstv %s530
        %v1093 = vmul.f32 %v1092, %v753
        %v1094 = vadd.f32 %v1091, %v1093
        %v1095 = vstv %s538
        %v1096 = vmul.f32 %v1095, %v767
        %v1097 = vadd.f32 %v1094, %v1096
        %v1098 = vstv %s546
        %v1099 = vmul.f32 %v1098, %v781
        %v1100 = vadd.f32 %v1097, %v1099
        %v1101 = vstv %s554
        %v1102 = vmul.f32 %v1101, %v795
        %v1103 = vadd.f32 %v1100, %v1102
        %v1104 = vstv %s562
        %v1105 = vmul.f32 %v1104, %v809
        %v1106 = vadd.f32 %v1103, %v1105
        %v1107 = vstv %s570
        %v1108 = vadd.f32 %v1106, %v1107
        %v1109 = vmax.f32 %v1108, 0.0
        %v1110 = vstv %s443
        %v1111 = vmul.f32 %v1110, %v599
        %v1112 = vstv %s451
        %v1113 = vmul.f32 %v1112, %v613
        %v1114 = vadd.f32 %v1111, %v1113
        %v1115 = vstv %s459
        %v1116 = vmul.f32 %v1115, %v627
        %v1117 = vadd.f32 %v1114, %v1116
        %v1118 = vstv %s467
        %v1119 = vmul.f32 %v1118, %v641
        %v1120 = vadd.f32 %v1117, %v1119
        %v1121 = vstv %s475
        %v1122 = vmul.f32 %v1121, %v655
        %v1123 = vadd.f32 %v1120, %v1122
        %v1124 = vstv %s483
        %v1125 = vmul.f32 %v1124, %v669
        %v1126 = vadd.f32 %v1123, %v1125
        %v1127 = vstv %s491
        %v1128 = vmul.f32 %v1127, %v683
        %v1129 = vadd.f32 %v1126, %v1128
        %v1130 = vstv %s499
        %v1131 = vmul.f32 %v1130, %v697
        %v1132 = vadd.f32 %v1129, %v1131
        %v1133 = vstv %s507
        %v1134 = vmul.f32 %v1133, %v711
        %v1135 = vadd.f32 %v1132, %v1134
        %v1136 = vstv %s515
        %v1137 = vmul.f32 %v1136, %v725
        %v1138 = vadd.f32 %v1135, %v1137
        %v1139 = vstv %s523
        %v1140 = vmul.f32 %v1139, %v739
        %v1141 = vadd.f32 %v1138, %v1140
        %v1142 = vstv %s531
        %v1143 = vmul.f32 %v1142, %v753
        %v1144 = vadd.f32 %v1141, %v1143
        %v1145 = vstv %s539
        %v1146 = vmul.f32 %v1145, %v767
        %v1147 = vadd.f32 %v1144, %v1146
        %v1148 = vstv %s547
        %v1149 = vmul.f32 %v1148, %v781
        %v1150 = vadd.f32 %v1147, %v1149
        %v1151 = vstv %s555
        %v1152 = vmul.f32 %v1151, %v795
        %v1153 = vadd.f32 %v1150, %v1152
        %v1154 = vstv %s563
        %v1155 = vmul.f32 %v1154, %v809
        %v1156 = vadd.f32 %v1153, %v1155
        %v1157 = vstv %s571
        %v1158 = vadd.f32 %v1156, %v1157
        %v1159 = vmax.f32 %v1158, 0.0
        %v1160 = vstv %s444
        %v1161 = vmul.f32 %v1160, %v599
        %v1162 = vstv %s452
        %v1163 = vmul.f32 %v1162, %v613
        %v1164 = vadd.f32 %v1161, %v1163
        %v1165 = vstv %s460
        %v1166 = vmul.f32 %v1165, %v627
        %v1167 = vadd.f32 %v1164, %v1166
        %v1168 = vstv %s468
        %v1169 = vmul.f32 %v1168, %v641
        %v1170 = vadd.f32 %v1167, %v1169
        %v1171 = vstv %s476
        %v1172 = vmul.f32 %v1171, %v655
        %v1173 = vadd.f32 %v1170, %v1172
        %v1174 = vstv %s484
        %v1175 = vmul.f32 %v1174, %v669
        %v1176 = vadd.f32 %v1173, %v1175
        %v1177 = vstv %s492
        %v1178 = vmul.f32 %v1177, %v683
        %v1179 = vadd.f32 %v1176, %v1178
        %v1180 = vstv %s500
        %v1181 = vmul.f32 %v1180, %v697
        %v1182 = vadd.f32 %v1179, %v1181
        %v1183 = vstv %s508
        %v1184 = vmul.f32 %v1183, %v711
        %v1185 = vadd.f32 %v1182, %v1184
        %v1186 = vstv %s516
        %v1187 = vmul.f32 %v1186, %v725
        %v1188 = vadd.f32 %v1185, %v1187
        %v1189 = vstv %s524
        %v1190 = vmul.f32 %v1189, %v739
        %v1191 = vadd.f32 %v1188, %v1190
        %v1192 = vstv %s532
        %v1193 = vmul.f32 %v1192, %v753
        %v1194 = vadd.f32 %v1191, %v1193
        %v1195 = vstv %s540
        %v1196 = vmul.f32 %v1195, %v767
        %v1197 = vadd.f32 %v1194, %v1196
        %v1198 = vstv %s548
        %v1199 = vmul.f32 %v1198, %v781
        %v1200 = vadd.f32 %v1197, %v1199
        %v1201 = vstv %s556
        %v1202 = vmul.f32 %v1201, %v795
        %v1203 = vadd.f32 %v1200, %v1202
        %v1204 = vstv %s564
        %v1205 = vmul.f32 %v1204, %v809
        %v1206 = vadd.f32 %v1203, %v1205
        %v1207 = vstv %s572
        %v1208 = vadd.f32 %v1206, %v1207
        %v1209 = vmax.f32 %v1208, 0.0
        %v1210 = vstv %s573
        %v1211 = vmul.f32 %v1210, %v859
        %v1212 = vstv %s574
        %v1213 = vmul.f32 %v1212, %v909
        %v1214 = vadd.f32 %v1211, %v1213
        %v1215 = vstv %s575
        %v1216 = vmul.f32 %v1215, %v959
        %v1217 = vadd.f32 %v1214, %v1216
        %v1218 = vstv %s576
        %v1219 = vmul.f32 %v1218, %v1009
        %v1220 = vadd.f32 %v1217, %v1219
        %v1221 = vstv %s577
        %v1222 = vmul.f32 %v1221, %v1059
        %v1223 = vadd.f32 %v1220, %v1222
        %v1224 = vstv %s578
        %v1225 = vmul.f32 %v1224, %v1109
        %v1226 = vadd.f32 %v1223, %v1225
        %v1227 = vstv %s579
        %v1228 = vmul.f32 %v1227, %v1159
        %v1229 = vadd.f32 %v1226, %v1228
        %v1230 = vstv %s580
        %v1231 = vmul.f32 %v1230, %v1209
        %v1232 = vadd.f32 %v1229, %v1231
        %v1233 = vstv %s581
        %v1234 = vadd.f32 %v1232, %v1233
        %1235 = vst [vmem:[%s355] sm:$0xff] %v1234
        %s1236 = scalar_lea.vmem %s345, 8
        %v1237 = vld [vmem:[%s1236] sm:$0xff]
        %v1238 = vld [vmem:[%s1236 + $0x10] sm:$0xff]
        %v1239 = vld [vmem:[%s1236 + $0x20] sm:$0xff]
        %v1240 = vld [vmem:[%s1236 + $0x30] sm:$0xff]
        %v1241 = vmul.f32 %v586, %v1237
        %v1242 = vmul.f32 %v588, %v1238
        %v1243 = vadd.f32 %v1241, %v1242
        %v1244 = vmul.f32 %v591, %v1239
        %v1245 = vadd.f32 %v1243, %v1244
        %v1246 = vmul.f32 %v594, %v1240
        %v1247 = vadd.f32 %v1245, %v1246
        %v1248 = vadd.f32 %v1247, %v597
        %v1249 = vmax.f32 %v1248, 0.0
        %v1250 = vmul.f32 %v600, %v1237
        %v1251 = vmul.f32 %v602, %v1238
        %v1252 = vadd.f32 %v1250, %v1251
        %v1253 = vmul.f32 %v605, %v1239
        %v1254 = vadd.f32 %v1252, %v1253
        %v1255 = vmul.f32 %v608, %v1240
        %v1256 = vadd.f32 %v1254, %v1255
        %v1257 = vadd.f32 %v1256, %v611
        %v1258 = vmax.f32 %v1257, 0.0
        %v1259 = vmul.f32 %v614, %v1237
        %v1260 = vmul.f32 %v616, %v1238
        %v1261 = vadd.f32 %v1259, %v1260
        %v1262 = vmul.f32 %v619, %v1239
        %v1263 = vadd.f32 %v1261, %v1262
        %v1264 = vmul.f32 %v622, %v1240
        %v1265 = vadd.f32 %v1263, %v1264
        %v1266 = vadd.f32 %v1265, %v625
        %v1267 = vmax.f32 %v1266, 0.0
        %v1268 = vmul.f32 %v628, %v1237
        %v1269 = vmul.f32 %v630, %v1238
        %v1270 = vadd.f32 %v1268, %v1269
        %v1271 = vmul.f32 %v633, %v1239
        %v1272 = vadd.f32 %v1270, %v1271
        %v1273 = vmul.f32 %v636, %v1240
        %v1274 = vadd.f32 %v1272, %v1273
        %v1275 = vadd.f32 %v1274, %v639
        %v1276 = vmax.f32 %v1275, 0.0
        %v1277 = vmul.f32 %v642, %v1237
        %v1278 = vmul.f32 %v644, %v1238
        %v1279 = vadd.f32 %v1277, %v1278
        %v1280 = vmul.f32 %v647, %v1239
        %v1281 = vadd.f32 %v1279, %v1280
        %v1282 = vmul.f32 %v650, %v1240
        %v1283 = vadd.f32 %v1281, %v1282
        %v1284 = vadd.f32 %v1283, %v653
        %v1285 = vmax.f32 %v1284, 0.0
        %v1286 = vmul.f32 %v656, %v1237
        %v1287 = vmul.f32 %v658, %v1238
        %v1288 = vadd.f32 %v1286, %v1287
        %v1289 = vmul.f32 %v661, %v1239
        %v1290 = vadd.f32 %v1288, %v1289
        %v1291 = vmul.f32 %v664, %v1240
        %v1292 = vadd.f32 %v1290, %v1291
        %v1293 = vadd.f32 %v1292, %v667
        %v1294 = vmax.f32 %v1293, 0.0
        %v1295 = vmul.f32 %v670, %v1237
        %v1296 = vmul.f32 %v672, %v1238
        %v1297 = vadd.f32 %v1295, %v1296
        %v1298 = vmul.f32 %v675, %v1239
        %v1299 = vadd.f32 %v1297, %v1298
        %v1300 = vmul.f32 %v678, %v1240
        %v1301 = vadd.f32 %v1299, %v1300
        %v1302 = vadd.f32 %v1301, %v681
        %v1303 = vmax.f32 %v1302, 0.0
        %v1304 = vmul.f32 %v684, %v1237
        %v1305 = vmul.f32 %v686, %v1238
        %v1306 = vadd.f32 %v1304, %v1305
        %v1307 = vmul.f32 %v689, %v1239
        %v1308 = vadd.f32 %v1306, %v1307
        %v1309 = vmul.f32 %v692, %v1240
        %v1310 = vadd.f32 %v1308, %v1309
        %v1311 = vadd.f32 %v1310, %v695
        %v1312 = vmax.f32 %v1311, 0.0
        %v1313 = vmul.f32 %v698, %v1237
        %v1314 = vmul.f32 %v700, %v1238
        %v1315 = vadd.f32 %v1313, %v1314
        %v1316 = vmul.f32 %v703, %v1239
        %v1317 = vadd.f32 %v1315, %v1316
        %v1318 = vmul.f32 %v706, %v1240
        %v1319 = vadd.f32 %v1317, %v1318
        %v1320 = vadd.f32 %v1319, %v709
        %v1321 = vmax.f32 %v1320, 0.0
        %v1322 = vmul.f32 %v712, %v1237
        %v1323 = vmul.f32 %v714, %v1238
        %v1324 = vadd.f32 %v1322, %v1323
        %v1325 = vmul.f32 %v717, %v1239
        %v1326 = vadd.f32 %v1324, %v1325
        %v1327 = vmul.f32 %v720, %v1240
        %v1328 = vadd.f32 %v1326, %v1327
        %v1329 = vadd.f32 %v1328, %v723
        %v1330 = vmax.f32 %v1329, 0.0
        %v1331 = vmul.f32 %v726, %v1237
        %v1332 = vmul.f32 %v728, %v1238
        %v1333 = vadd.f32 %v1331, %v1332
        %v1334 = vmul.f32 %v731, %v1239
        %v1335 = vadd.f32 %v1333, %v1334
        %v1336 = vmul.f32 %v734, %v1240
        %v1337 = vadd.f32 %v1335, %v1336
        %v1338 = vadd.f32 %v1337, %v737
        %v1339 = vmax.f32 %v1338, 0.0
        %v1340 = vmul.f32 %v740, %v1237
        %v1341 = vmul.f32 %v742, %v1238
        %v1342 = vadd.f32 %v1340, %v1341
        %v1343 = vmul.f32 %v745, %v1239
        %v1344 = vadd.f32 %v1342, %v1343
        %v1345 = vmul.f32 %v748, %v1240
        %v1346 = vadd.f32 %v1344, %v1345
        %v1347 = vadd.f32 %v1346, %v751
        %v1348 = vmax.f32 %v1347, 0.0
        %v1349 = vmul.f32 %v754, %v1237
        %v1350 = vmul.f32 %v756, %v1238
        %v1351 = vadd.f32 %v1349, %v1350
        %v1352 = vmul.f32 %v759, %v1239
        %v1353 = vadd.f32 %v1351, %v1352
        %v1354 = vmul.f32 %v762, %v1240
        %v1355 = vadd.f32 %v1353, %v1354
        %v1356 = vadd.f32 %v1355, %v765
        %v1357 = vmax.f32 %v1356, 0.0
        %v1358 = vmul.f32 %v768, %v1237
        %v1359 = vmul.f32 %v770, %v1238
        %v1360 = vadd.f32 %v1358, %v1359
        %v1361 = vmul.f32 %v773, %v1239
        %v1362 = vadd.f32 %v1360, %v1361
        %v1363 = vmul.f32 %v776, %v1240
        %v1364 = vadd.f32 %v1362, %v1363
        %v1365 = vadd.f32 %v1364, %v779
        %v1366 = vmax.f32 %v1365, 0.0
        %v1367 = vmul.f32 %v782, %v1237
        %v1368 = vmul.f32 %v784, %v1238
        %v1369 = vadd.f32 %v1367, %v1368
        %v1370 = vmul.f32 %v787, %v1239
        %v1371 = vadd.f32 %v1369, %v1370
        %v1372 = vmul.f32 %v790, %v1240
        %v1373 = vadd.f32 %v1371, %v1372
        %v1374 = vadd.f32 %v1373, %v793
        %v1375 = vmax.f32 %v1374, 0.0
        %v1376 = vmul.f32 %v796, %v1237
        %v1377 = vmul.f32 %v798, %v1238
        %v1378 = vadd.f32 %v1376, %v1377
        %v1379 = vmul.f32 %v801, %v1239
        %v1380 = vadd.f32 %v1378, %v1379
        %v1381 = vmul.f32 %v804, %v1240
        %v1382 = vadd.f32 %v1380, %v1381
        %v1383 = vadd.f32 %v1382, %v807
        %v1384 = vmax.f32 %v1383, 0.0
        %v1385 = vmul.f32 %v810, %v1249
        %v1386 = vmul.f32 %v812, %v1258
        %v1387 = vadd.f32 %v1385, %v1386
        %v1388 = vmul.f32 %v815, %v1267
        %v1389 = vadd.f32 %v1387, %v1388
        %v1390 = vmul.f32 %v818, %v1276
        %v1391 = vadd.f32 %v1389, %v1390
        %v1392 = vmul.f32 %v821, %v1285
        %v1393 = vadd.f32 %v1391, %v1392
        %v1394 = vmul.f32 %v824, %v1294
        %v1395 = vadd.f32 %v1393, %v1394
        %v1396 = vmul.f32 %v827, %v1303
        %v1397 = vadd.f32 %v1395, %v1396
        %v1398 = vmul.f32 %v830, %v1312
        %v1399 = vadd.f32 %v1397, %v1398
        %v1400 = vmul.f32 %v833, %v1321
        %v1401 = vadd.f32 %v1399, %v1400
        %v1402 = vmul.f32 %v836, %v1330
        %v1403 = vadd.f32 %v1401, %v1402
        %v1404 = vmul.f32 %v839, %v1339
        %v1405 = vadd.f32 %v1403, %v1404
        %v1406 = vmul.f32 %v842, %v1348
        %v1407 = vadd.f32 %v1405, %v1406
        %v1408 = vmul.f32 %v845, %v1357
        %v1409 = vadd.f32 %v1407, %v1408
        %v1410 = vmul.f32 %v848, %v1366
        %v1411 = vadd.f32 %v1409, %v1410
        %v1412 = vmul.f32 %v851, %v1375
        %v1413 = vadd.f32 %v1411, %v1412
        %v1414 = vmul.f32 %v854, %v1384
        %v1415 = vadd.f32 %v1413, %v1414
        %v1416 = vadd.f32 %v1415, %v857
        %v1417 = vmax.f32 %v1416, 0.0
        %v1418 = vmul.f32 %v860, %v1249
        %v1419 = vmul.f32 %v862, %v1258
        %v1420 = vadd.f32 %v1418, %v1419
        %v1421 = vmul.f32 %v865, %v1267
        %v1422 = vadd.f32 %v1420, %v1421
        %v1423 = vmul.f32 %v868, %v1276
        %v1424 = vadd.f32 %v1422, %v1423
        %v1425 = vmul.f32 %v871, %v1285
        %v1426 = vadd.f32 %v1424, %v1425
        %v1427 = vmul.f32 %v874, %v1294
        %v1428 = vadd.f32 %v1426, %v1427
        %v1429 = vmul.f32 %v877, %v1303
        %v1430 = vadd.f32 %v1428, %v1429
        %v1431 = vmul.f32 %v880, %v1312
        %v1432 = vadd.f32 %v1430, %v1431
        %v1433 = vmul.f32 %v883, %v1321
        %v1434 = vadd.f32 %v1432, %v1433
        %v1435 = vmul.f32 %v886, %v1330
        %v1436 = vadd.f32 %v1434, %v1435
        %v1437 = vmul.f32 %v889, %v1339
        %v1438 = vadd.f32 %v1436, %v1437
        %v1439 = vmul.f32 %v892, %v1348
        %v1440 = vadd.f32 %v1438, %v1439
        %v1441 = vmul.f32 %v895, %v1357
        %v1442 = vadd.f32 %v1440, %v1441
        %v1443 = vmul.f32 %v898, %v1366
        %v1444 = vadd.f32 %v1442, %v1443
        %v1445 = vmul.f32 %v901, %v1375
        %v1446 = vadd.f32 %v1444, %v1445
        %v1447 = vmul.f32 %v904, %v1384
        %v1448 = vadd.f32 %v1446, %v1447
        %v1449 = vadd.f32 %v1448, %v907
        %v1450 = vmax.f32 %v1449, 0.0
        %v1451 = vmul.f32 %v910, %v1249
        %v1452 = vmul.f32 %v912, %v1258
        %v1453 = vadd.f32 %v1451, %v1452
        %v1454 = vmul.f32 %v915, %v1267
        %v1455 = vadd.f32 %v1453, %v1454
        %v1456 = vmul.f32 %v918, %v1276
        %v1457 = vadd.f32 %v1455, %v1456
        %v1458 = vmul.f32 %v921, %v1285
        %v1459 = vadd.f32 %v1457, %v1458
        %v1460 = vmul.f32 %v924, %v1294
        %v1461 = vadd.f32 %v1459, %v1460
        %v1462 = vmul.f32 %v927, %v1303
        %v1463 = vadd.f32 %v1461, %v1462
        %v1464 = vmul.f32 %v930, %v1312
        %v1465 = vadd.f32 %v1463, %v1464
        %v1466 = vmul.f32 %v933, %v1321
        %v1467 = vadd.f32 %v1465, %v1466
        %v1468 = vmul.f32 %v936, %v1330
        %v1469 = vadd.f32 %v1467, %v1468
        %v1470 = vmul.f32 %v939, %v1339
        %v1471 = vadd.f32 %v1469, %v1470
        %v1472 = vmul.f32 %v942, %v1348
        %v1473 = vadd.f32 %v1471, %v1472
        %v1474 = vmul.f32 %v945, %v1357
        %v1475 = vadd.f32 %v1473, %v1474
        %v1476 = vmul.f32 %v948, %v1366
        %v1477 = vadd.f32 %v1475, %v1476
        %v1478 = vmul.f32 %v951, %v1375
        %v1479 = vadd.f32 %v1477, %v1478
        %v1480 = vmul.f32 %v954, %v1384
        %v1481 = vadd.f32 %v1479, %v1480
        %v1482 = vadd.f32 %v1481, %v957
        %v1483 = vmax.f32 %v1482, 0.0
        %v1484 = vmul.f32 %v960, %v1249
        %v1485 = vmul.f32 %v962, %v1258
        %v1486 = vadd.f32 %v1484, %v1485
        %v1487 = vmul.f32 %v965, %v1267
        %v1488 = vadd.f32 %v1486, %v1487
        %v1489 = vmul.f32 %v968, %v1276
        %v1490 = vadd.f32 %v1488, %v1489
        %v1491 = vmul.f32 %v971, %v1285
        %v1492 = vadd.f32 %v1490, %v1491
        %v1493 = vmul.f32 %v974, %v1294
        %v1494 = vadd.f32 %v1492, %v1493
        %v1495 = vmul.f32 %v977, %v1303
        %v1496 = vadd.f32 %v1494, %v1495
        %v1497 = vmul.f32 %v980, %v1312
        %v1498 = vadd.f32 %v1496, %v1497
        %v1499 = vmul.f32 %v983, %v1321
        %v1500 = vadd.f32 %v1498, %v1499
        %v1501 = vmul.f32 %v986, %v1330
        %v1502 = vadd.f32 %v1500, %v1501
        %v1503 = vmul.f32 %v989, %v1339
        %v1504 = vadd.f32 %v1502, %v1503
        %v1505 = vmul.f32 %v992, %v1348
        %v1506 = vadd.f32 %v1504, %v1505
        %v1507 = vmul.f32 %v995, %v1357
        %v1508 = vadd.f32 %v1506, %v1507
        %v1509 = vmul.f32 %v998, %v1366
        %v1510 = vadd.f32 %v1508, %v1509
        %v1511 = vmul.f32 %v1001, %v1375
        %v1512 = vadd.f32 %v1510, %v1511
        %v1513 = vmul.f32 %v1004, %v1384
        %v1514 = vadd.f32 %v1512, %v1513
        %v1515 = vadd.f32 %v1514, %v1007
        %v1516 = vmax.f32 %v1515, 0.0
        %v1517 = vmul.f32 %v1010, %v1249
        %v1518 = vmul.f32 %v1012, %v1258
        %v1519 = vadd.f32 %v1517, %v1518
        %v1520 = vmul.f32 %v1015, %v1267
        %v1521 = vadd.f32 %v1519, %v1520
        %v1522 = vmul.f32 %v1018, %v1276
        %v1523 = vadd.f32 %v1521, %v1522
        %v1524 = vmul.f32 %v1021, %v1285
        %v1525 = vadd.f32 %v1523, %v1524
        %v1526 = vmul.f32 %v1024, %v1294
        %v1527 = vadd.f32 %v1525, %v1526
        %v1528 = vmul.f32 %v1027, %v1303
        %v1529 = vadd.f32 %v1527, %v1528
        %v1530 = vmul.f32 %v1030, %v1312
        %v1531 = vadd.f32 %v1529, %v1530
        %v1532 = vmul.f32 %v1033, %v1321
        %v1533 = vadd.f32 %v1531, %v1532
        %v1534 = vmul.f32 %v1036, %v1330
        %v1535 = vadd.f32 %v1533, %v1534
        %v1536 = vmul.f32 %v1039, %v1339
        %v1537 = vadd.f32 %v1535, %v1536
        %v1538 = vmul.f32 %v1042, %v1348
        %v1539 = vadd.f32 %v1537, %v1538
        %v1540 = vmul.f32 %v1045, %v1357
        %v1541 = vadd.f32 %v1539, %v1540
        %v1542 = vmul.f32 %v1048, %v1366
        %v1543 = vadd.f32 %v1541, %v1542
        %v1544 = vmul.f32 %v1051, %v1375
        %v1545 = vadd.f32 %v1543, %v1544
        %v1546 = vmul.f32 %v1054, %v1384
        %v1547 = vadd.f32 %v1545, %v1546
        %v1548 = vadd.f32 %v1547, %v1057
        %v1549 = vmax.f32 %v1548, 0.0
        %v1550 = vmul.f32 %v1060, %v1249
        %v1551 = vmul.f32 %v1062, %v1258
        %v1552 = vadd.f32 %v1550, %v1551
        %v1553 = vmul.f32 %v1065, %v1267
        %v1554 = vadd.f32 %v1552, %v1553
        %v1555 = vmul.f32 %v1068, %v1276
        %v1556 = vadd.f32 %v1554, %v1555
        %v1557 = vmul.f32 %v1071, %v1285
        %v1558 = vadd.f32 %v1556, %v1557
        %v1559 = vmul.f32 %v1074, %v1294
        %v1560 = vadd.f32 %v1558, %v1559
        %v1561 = vmul.f32 %v1077, %v1303
        %v1562 = vadd.f32 %v1560, %v1561
        %v1563 = vmul.f32 %v1080, %v1312
        %v1564 = vadd.f32 %v1562, %v1563
        %v1565 = vmul.f32 %v1083, %v1321
        %v1566 = vadd.f32 %v1564, %v1565
        %v1567 = vmul.f32 %v1086, %v1330
        %v1568 = vadd.f32 %v1566, %v1567
        %v1569 = vmul.f32 %v1089, %v1339
        %v1570 = vadd.f32 %v1568, %v1569
        %v1571 = vmul.f32 %v1092, %v1348
        %v1572 = vadd.f32 %v1570, %v1571
        %v1573 = vmul.f32 %v1095, %v1357
        %v1574 = vadd.f32 %v1572, %v1573
        %v1575 = vmul.f32 %v1098, %v1366
        %v1576 = vadd.f32 %v1574, %v1575
        %v1577 = vmul.f32 %v1101, %v1375
        %v1578 = vadd.f32 %v1576, %v1577
        %v1579 = vmul.f32 %v1104, %v1384
        %v1580 = vadd.f32 %v1578, %v1579
        %v1581 = vadd.f32 %v1580, %v1107
        %v1582 = vmax.f32 %v1581, 0.0
        %v1583 = vmul.f32 %v1110, %v1249
        %v1584 = vmul.f32 %v1112, %v1258
        %v1585 = vadd.f32 %v1583, %v1584
        %v1586 = vmul.f32 %v1115, %v1267
        %v1587 = vadd.f32 %v1585, %v1586
        %v1588 = vmul.f32 %v1118, %v1276
        %v1589 = vadd.f32 %v1587, %v1588
        %v1590 = vmul.f32 %v1121, %v1285
        %v1591 = vadd.f32 %v1589, %v1590
        %v1592 = vmul.f32 %v1124, %v1294
        %v1593 = vadd.f32 %v1591, %v1592
        %v1594 = vmul.f32 %v1127, %v1303
        %v1595 = vadd.f32 %v1593, %v1594
        %v1596 = vmul.f32 %v1130, %v1312
        %v1597 = vadd.f32 %v1595, %v1596
        %v1598 = vmul.f32 %v1133, %v1321
        %v1599 = vadd.f32 %v1597, %v1598
        %v1600 = vmul.f32 %v1136, %v1330
        %v1601 = vadd.f32 %v1599, %v1600
        %v1602 = vmul.f32 %v1139, %v1339
        %v1603 = vadd.f32 %v1601, %v1602
        %v1604 = vmul.f32 %v1142, %v1348
        %v1605 = vadd.f32 %v1603, %v1604
        %v1606 = vmul.f32 %v1145, %v1357
        %v1607 = vadd.f32 %v1605, %v1606
        %v1608 = vmul.f32 %v1148, %v1366
        %v1609 = vadd.f32 %v1607, %v1608
        %v1610 = vmul.f32 %v1151, %v1375
        %v1611 = vadd.f32 %v1609, %v1610
        %v1612 = vmul.f32 %v1154, %v1384
        %v1613 = vadd.f32 %v1611, %v1612
        %v1614 = vadd.f32 %v1613, %v1157
        %v1615 = vmax.f32 %v1614, 0.0
        %v1616 = vmul.f32 %v1160, %v1249
        %v1617 = vmul.f32 %v1162, %v1258
        %v1618 = vadd.f32 %v1616, %v1617
        %v1619 = vmul.f32 %v1165, %v1267
        %v1620 = vadd.f32 %v1618, %v1619
        %v1621 = vmul.f32 %v1168, %v1276
        %v1622 = vadd.f32 %v1620, %v1621
        %v1623 = vmul.f32 %v1171, %v1285
        %v1624 = vadd.f32 %v1622, %v1623
        %v1625 = vmul.f32 %v1174, %v1294
        %v1626 = vadd.f32 %v1624, %v1625
        %v1627 = vmul.f32 %v1177, %v1303
        %v1628 = vadd.f32 %v1626, %v1627
        %v1629 = vmul.f32 %v1180, %v1312
        %v1630 = vadd.f32 %v1628, %v1629
        %v1631 = vmul.f32 %v1183, %v1321
        %v1632 = vadd.f32 %v1630, %v1631
        %v1633 = vmul.f32 %v1186, %v1330
        %v1634 = vadd.f32 %v1632, %v1633
        %v1635 = vmul.f32 %v1189, %v1339
        %v1636 = vadd.f32 %v1634, %v1635
        %v1637 = vmul.f32 %v1192, %v1348
        %v1638 = vadd.f32 %v1636, %v1637
        %v1639 = vmul.f32 %v1195, %v1357
        %v1640 = vadd.f32 %v1638, %v1639
        %v1641 = vmul.f32 %v1198, %v1366
        %v1642 = vadd.f32 %v1640, %v1641
        %v1643 = vmul.f32 %v1201, %v1375
        %v1644 = vadd.f32 %v1642, %v1643
        %v1645 = vmul.f32 %v1204, %v1384
        %v1646 = vadd.f32 %v1644, %v1645
        %v1647 = vadd.f32 %v1646, %v1207
        %v1648 = vmax.f32 %v1647, 0.0
        %v1649 = vmul.f32 %v1210, %v1417
        %v1650 = vmul.f32 %v1212, %v1450
        %v1651 = vadd.f32 %v1649, %v1650
        %v1652 = vmul.f32 %v1215, %v1483
        %v1653 = vadd.f32 %v1651, %v1652
        %v1654 = vmul.f32 %v1218, %v1516
        %v1655 = vadd.f32 %v1653, %v1654
        %v1656 = vmul.f32 %v1221, %v1549
        %v1657 = vadd.f32 %v1655, %v1656
        %v1658 = vmul.f32 %v1224, %v1582
        %v1659 = vadd.f32 %v1657, %v1658
        %v1660 = vmul.f32 %v1227, %v1615
        %v1661 = vadd.f32 %v1659, %v1660
        %v1662 = vmul.f32 %v1230, %v1648
        %v1663 = vadd.f32 %v1661, %v1662
        %v1664 = vadd.f32 %v1663, %v1233
        %s1665 = scalar_lea.vmem %s355, 8
        %1666 = vst [vmem:[%s1665] sm:$0xff] %v1664
        %s1667 = smul.u32 2, %s25
        %p1668 = scmp.lt.s32.totalorder %s24, 1
        %s1669 = scalar_select %p1668, %s24, 1
        %p1670 = scmp.lt.s32.totalorder %s1667, 1
        %s1671 = scalar_select %p1670, %s1667, 1
        %s1672 = smul.addr %s1669, 2
        %s1673 = sadd.s32 %s1671, %s1672
        %s1674 = smul.addr %s1673, 8
        %s1675 = scalar_lea.vmem %s6, %s1674
        // Predicated region
        $region65: #{_lambda_.1} parent=43 // pred_check
          %p1676 = pneg %p185
        $region66: #{_lambda_.1} parent=43 // pred_check_branch
          %1678 = sbr.rel (%p1676) target = $region68
        $region67: #{_lambda_.1} parent=43 // pred_region
          %s1679 = smul.u32 2, %s25
        $region68: #{_lambda_.1} parent=43 // pred_fallthru
          _
      $region44: #{_lambda_.1} parent=5 // pred_fallthru
        _
      %p1680 = scmp.le.s32.totalorder 2, %s15
      // Predicated region
      $region69: #{_lambda_.1} parent=5 // pred_check
        %p1681 = pneg %p1680
      $region70: #{_lambda_.1} parent=5 // pred_check_branch
        %1683 = sbr.rel (%p1681) target = $region72
      $region71: #{_lambda_.1} parent=5 // pred_region
        %s1684 = ssub.s32 %s15, 2
        // Predicated region
        $region73: #{_lambda_.1} parent=71 // pred_check
          %p1685 = pneg %p191
        $region74: #{_lambda_.1} parent=71 // pred_check_branch
          %1687 = sbr.rel (%p1685) target = $region76
        $region75: #{_lambda_.1} parent=71 // pred_region
          %s1688 = smul.u32 2, %s27
          %p1689 = scmp.lt.s32.totalorder %s26, 1
          %s1690 = scalar_select %p1689, %s26, 1
          %p1691 = scmp.lt.s32.totalorder %s1688, 1
          %s1692 = scalar_select %p1691, %s1688, 1
          %s1693 = smul.addr %s1690, 2
          %s1694 = sadd.s32 %s1692, %s1693
          %s1695 = smul.addr %s1694, 8
          %s1696 = scalar_lea.vmem %s6, %s1695
        $region76: #{_lambda_.1} parent=71 // pred_fallthru
          _
      $region72: #{_lambda_.1} parent=5 // pred_fallthru
        _
    $region6: #{_lambda_.1} parent=1 // loop_footer
      %s19 = sadd.s32 1, %s15
    $region7: #{_lambda_.1} parent=1 // loop_footer_branch
      %14 = sbr.rel target = $region3
    $region8: #{_lambda_.1} parent=1 // loop_exit
      _
    %1697 = vsyncpa [#allocation3], 1
    %s1698 = scalar_lea.sflag [#allocation3], 1
    %1699 = vsyncpa %s1698, 1
    %1700 = vsyncpa [#allocation5], 1
    %1701 = vsyncpa [#allocation8], 1

</llo_original>
